<compile_context>
chip_gen: v7x
topology: tpu7x:2x2x1
jax: 0.10.0
libtpu: 0.0.40
codegen_flags: <defaults>
</compile_context>

<pallas_src>
import functools
import math

import numpy as np

import jax
import jax.numpy as jnp
from jax import lax
from jax.experimental import pallas as pl
from jax.experimental.pallas import tpu as pltpu


# ----------------------------- config ----------------------------------------
class Config:
    vocab_size = 50
    hidden_size = 32
    num_hidden_layers = 2
    num_attention_heads = 4
    intermediate_size = 64
    max_position_embeddings = 16
    layer_norm_eps = 1e-12


# ----------------------- in-kernel math helpers -------------------------------
def _mm(a, b):
    """MXU matmul: bf16 operands, f32 accumulation."""
    return jnp.dot(a.astype(jnp.bfloat16), b.astype(jnp.bfloat16),
                   preferred_element_type=jnp.float32)


def _mm_nt(a, b):
    """a @ b.T on the MXU (contract last axes, no explicit transpose)."""
    return lax.dot_general(a.astype(jnp.bfloat16), b.astype(jnp.bfloat16),
                           (((1,), (1,)), ((), ())),
                           preferred_element_type=jnp.float32)


def _layernorm(x, g, b, eps):
    mu = jnp.mean(x, axis=-1, keepdims=True)
    var = jnp.mean(jnp.square(x - mu), axis=-1, keepdims=True)
    return (x - mu) * lax.rsqrt(var + jnp.float32(eps)) * g + b


def _gelu_tanh(x):
    # TODO(synk): torch.nn.GELU defaults to the exact erf form; the tanh
    # approximation is used here (~1e-3 deviation from the PyTorch reference).
    c = jnp.float32(0.7978845608028654)
    return 0.5 * x * (1.0 + jnp.tanh(c * (x + 0.044715 * x * x * x)))


def _ffn(x, w1, b1, w2, b2):
    h = _mm(x, w1) + b1
    h = _gelu_tanh(h)
    return _mm(h, w2) + b2


def _attention(q, k, v, head_mask, score_mask, o_w, o_b, *, num_heads):
    """All heads of one (self or cross) attention with 3 MXU ops.

    q: (Nq, H) f32; k, v: (Nkv, H) f32.
    head_mask : (num_heads*Nkv, H) f32; head_mask[h*Nkv + r, c] = 1 iff lane c
        belongs to head h.  Tiling K/V by head on the sublane axis and masking
        makes one NT matmul produce every head's scores side by side.
    score_mask: (Nq, num_heads*Nkv) additive f32 mask (0 allowed / -1e30).
    """
    H = q.shape[1]
    d_head = H // num_heads
    scale = jnp.float32(1.0 / math.sqrt(d_head))

    k_heads = jnp.concatenate([k] * num_heads, axis=0) * head_mask   # (nH*Nkv, H)
    v_heads = jnp.concatenate([v] * num_heads, axis=0) * head_mask   # (nH*Nkv, H)

    # scores[i, h*Nkv + r] = <q_i, k_r> restricted to head h's lanes.
    scores = _mm_nt(q * scale, k_heads) + score_mask                 # (Nq, nH*Nkv)
    # Row-global max is a valid shift for every head segment of the row.
    scores = scores - jnp.max(scores, axis=-1, keepdims=True)
    p = jnp.exp(scores)

    # One matmul yields both P@V (numerator, head-concatenated layout) and
    # P@head_mask (per-head denominator broadcast across that head's lanes).
    rhs = jnp.concatenate([v_heads, head_mask], axis=1)              # (nH*Nkv, 2H)
    pv = _mm(p, rhs)                                                 # (Nq, 2H)
    ctx = pv[:, :H] / jnp.maximum(pv[:, H:], jnp.float32(1e-30))     # (Nq, H)
    return _mm(ctx, o_w) + o_b


# ------------------------------ fused kernel ----------------------------------
def _decoder_kernel(ids_dec_ref, ids_enc_ref, tok_dec_ref, tok_enc_ref, vec_ref,
                    qkvw_ref, ow_ref, f1w_ref, f2w_ref, b3h_ref, bi_ref,
                    hm_dec_ref, hm_enc_ref, sm_dec_ref, sm_enc_ref, sm_x_ref,
                    out_ref, *, layout, num_layers, num_heads, eps):
    H = tok_dec_ref.shape[1]
    L = num_layers
    n_dec = ids_dec_ref.shape[0]
    n_enc = ids_enc_ref.shape[0]
    vocab = tok_dec_ref.shape[0]

    def vrow(name):                       # (1, H) slice of the vector slab
        i = layout[name]
        return vec_ref[i:i + 1, :]

    def vrows(name, n):                   # (n, H) slice of the vector slab
        i = layout[name]
        return vec_ref[i:i + n, :]

    # ---- embeddings: one-hot gather on the MXU, + pos, + LayerNorm ----------
    def embed(ids_ref, tok_ref, pos_name, g_name, b_name, n):
        ids = ids_ref[...]                                       # (n, 1) int32
        iota = lax.broadcasted_iota(jnp.int32, (n, vocab), 1)
        onehot = jnp.where(iota == ids, 1.0, 0.0)                # (n, V) f32
        x = _mm(onehot, tok_ref[...])                            # (n, H) f32
        x = x + vrows(pos_name, n)
        return _layernorm(x, vrow(g_name), vrow(b_name), eps)

    x_dec = embed(ids_dec_ref, tok_dec_ref, "dec_pos",
                  "dec_emb_ln_g", "dec_emb_ln_b", n_dec)
    x_enc = embed(ids_enc_ref, tok_enc_ref, "enc_pos",
                  "enc_emb_ln_g", "enc_emb_ln_b", n_enc)

    hm_dec, hm_enc = hm_dec_ref[...], hm_enc_ref[...]
    sm_dec, sm_enc, sm_x = sm_dec_ref[...], sm_enc_ref[...], sm_x_ref[...]

    # ---------------- encoder stack ------------------------------------------
    for l in range(L):
        qkv = _mm(x_enc, qkvw_ref[l]) + b3h_ref[l:l + 1, :]
        q, k, v = qkv[:, :H], qkv[:, H:2 * H], qkv[:, 2 * H:]
        a = _attention(q, k, v, hm_enc, sm_enc, ow_ref[l], vrow(f"enc{l}_o_b"),
                       num_heads=num_heads)
        x_enc = _layernorm(x_enc + a, vrow(f"enc{l}_ln1_g"), vrow(f"enc{l}_ln1_b"), eps)
        f = _ffn(x_enc, f1w_ref[l], bi_ref[l:l + 1, :], f2w_ref[l], vrow(f"enc{l}_f2_b"))
        x_enc = _layernorm(x_enc + f, vrow(f"enc{l}_ln2_g"), vrow(f"enc{l}_ln2_b"), eps)

    # ---------------- decoder stack ------------------------------------------
    for l in range(L):
        # causal self-attention
        qkv = _mm(x_dec, qkvw_ref[L + l]) + b3h_ref[L + l:L + l + 1, :]
        q, k, v = qkv[:, :H], qkv[:, H:2 * H], qkv[:, 2 * H:]
        a = _attention(q, k, v, hm_dec, sm_dec, ow_ref[L + l], vrow(f"dec{l}_so_b"),
                       num_heads=num_heads)
        x_dec = _layernorm(x_dec + a, vrow(f"dec{l}_ln1_g"), vrow(f"dec{l}_ln1_b"), eps)

        # cross-attention over the encoder output
        w_c = qkvw_ref[2 * L + l]
        b_c = b3h_ref[2 * L + l:2 * L + l + 1, :]
        q = _mm(x_dec, w_c[:, :H]) + b_c[:, :H]
        kv = _mm(x_enc, w_c[:, H:]) + b_c[:, H:]
        k, v = kv[:, :H], kv[:, H:]
        a = _attention(q, k, v, hm_enc, sm_x, ow_ref[2 * L + l], vrow(f"dec{l}_co_b"),
                       num_heads=num_heads)
        x_dec = _layernorm(x_dec + a, vrow(f"dec{l}_ln2_g"), vrow(f"dec{l}_ln2_b"), eps)

        # feed-forward
        f = _ffn(x_dec, f1w_ref[L + l], bi_ref[L + l:L + l + 1, :], f2w_ref[L + l],
                 vrow(f"dec{l}_f2_b"))
        x_dec = _layernorm(x_dec + f, vrow(f"dec{l}_ln3_g"), vrow(f"dec{l}_ln3_b"), eps)

    # ---------------- final linear + single store ------------------------------
    out = _mm(x_dec, ow_ref[3 * L]) + vrow("fin_b")
    out_ref[...] = out


# ------------------------ host-side constant masks ----------------------------
def _head_mask(num_heads, d_head, n_kv):
    """(num_heads*n_kv, num_heads*d_head): 1 where column head == row head."""
    row_h = np.repeat(np.arange(num_heads), n_kv)
    col_h = np.repeat(np.arange(num_heads), d_head)
    return (row_h[:, None] == col_h[None, :]).astype(np.float32)


def _score_mask(B, s_q, s_kv, num_heads, causal):
    """(B*s_q, num_heads*B*s_kv) additive mask: 0 allowed / -1e30 disallowed."""
    b_q = np.repeat(np.arange(B), s_q)
    i_q = np.tile(np.arange(s_q), B)
    b_k = np.tile(np.repeat(np.arange(B), s_kv), num_heads)
    j_k = np.tile(np.tile(np.arange(s_kv), B), num_heads)
    ok = b_q[:, None] == b_k[None, :]
    if causal:
        ok &= j_k[None, :] <= i_q[:, None]
    return np.where(ok, 0.0, -1e30).astype(np.float32)


# --------------------------- weight packing -----------------------------------
def _pack_params(params, cfg, B, S_t, S_s):
    """Pack ~50 parameter tensors into 9 dense slabs + a static row layout."""
    H, I, L = cfg.hidden_size, cfg.intermediate_size, cfg.num_hidden_layers
    bf16 = jnp.bfloat16
    enc, dec = params["enc"], params["dec"]

    qkvw = jnp.concatenate([enc["qkv_w"], dec["sqkv_w"], dec["cqkv_w"]], 0).astype(bf16)
    ow = jnp.concatenate([enc["o_w"], dec["so_w"], dec["co_w"],
                          params["fin_w"][None]], 0).astype(bf16)
    f1w = jnp.concatenate([enc["f1_w"], dec["f1_w"]], 0).astype(bf16)
    f2w = jnp.concatenate([enc["f2_w"], dec["f2_w"]], 0).astype(bf16)
    b3h = jnp.concatenate([enc["qkv_b"], dec["sqkv_b"], dec["cqkv_b"]], 0).reshape(3 * L, 3 * H)
    bi = jnp.concatenate([enc["f1_b"], dec["f1_b"]], 0).reshape(2 * L, I)

    rows, layout = [], {}
    off = 0

    def add(name, arr):
        nonlocal off
        arr = arr.reshape(-1, H)
        layout[name] = off
        off += arr.shape[0]
        rows.append(arr)

    add("dec_pos", jnp.tile(params["dec_emb"]["pos"][:S_t], (B, 1)))
    add("enc_pos", jnp.tile(params["enc_emb"]["pos"][:S_s], (B, 1)))
    add("dec_emb_ln_g", params["dec_emb"]["ln_g"])
    add("dec_emb_ln_b", params["dec_emb"]["ln_b"])
    add("enc_emb_ln_g", params["enc_emb"]["ln_g"])
    add("enc_emb_ln_b", params["enc_emb"]["ln_b"])
    for l in range(L):
        add(f"enc{l}_o_b", enc["o_b"][l])
        add(f"enc{l}_ln1_g", enc["ln1_g"][l]); add(f"enc{l}_ln1_b", enc["ln1_b"][l])
        add(f"enc{l}_f2_b", enc["f2_b"][l])
        add(f"enc{l}_ln2_g", enc["ln2_g"][l]); add(f"enc{l}_ln2_b", enc["ln2_b"][l])
    for l in range(L):
        add(f"dec{l}_so_b", dec["so_b"][l])
        add(f"dec{l}_ln1_g", dec["ln1_g"][l]); add(f"dec{l}_ln1_b", dec["ln1_b"][l])
        add(f"dec{l}_co_b", dec["co_b"][l])
        add(f"dec{l}_ln2_g", dec["ln2_g"][l]); add(f"dec{l}_ln2_b", dec["ln2_b"][l])
        add(f"dec{l}_f2_b", dec["f2_b"][l])
        add(f"dec{l}_ln3_g", dec["ln3_g"][l]); add(f"dec{l}_ln3_b", dec["ln3_b"][l])
    add("fin_b", params["fin_b"])
    vecs = jnp.concatenate(rows, 0).astype(jnp.float32)

    slabs = dict(tok_dec=params["dec_emb"]["tok"].astype(bf16),
                 tok_enc=params["enc_emb"]["tok"].astype(bf16),
                 vecs=vecs, qkvw=qkvw, ow=ow, f1w=f1w, f2w=f2w, b3h=b3h, bi=bi)
    return slabs, layout


# --------------------------- forward wrapper -----------------------------------
def decoder_forward(params, targets, query, cfg):
    B, S_t = targets.shape
    _, S_s = query.shape
    H, nH = cfg.hidden_size, cfg.num_attention_heads
    d_head = H // nH
    n_dec, n_enc = B * S_t, B * S_s

    slabs, layout = _pack_params(params, cfg, B, S_t, S_s)

    ids_dec = targets.reshape(n_dec, 1).astype(jnp.int32)
    ids_enc = query.reshape(n_enc, 1).astype(jnp.int32)

    # Constant masks: built once at trace time (hoisted out of the kernel).
    hm_dec = jnp.asarray(_head_mask(nH, d_head, n_dec))
    hm_enc = jnp.asarray(_head_mask(nH, d_head, n_enc))
    sm_dec = jnp.asarray(_score_mask(B, S_t, S_t, nH, causal=True))
    sm_enc = jnp.asarray(_score_mask(B, S_s, S_s, nH, causal=False))
    sm_x = jnp.asarray(_score_mask(B, S_t, S_s, nH, causal=False))

    inputs = (ids_dec, ids_enc, slabs["tok_dec"], slabs["tok_enc"], slabs["vecs"],
              slabs["qkvw"], slabs["ow"], slabs["f1w"], slabs["f2w"],
              slabs["b3h"], slabs["bi"], hm_dec, hm_enc, sm_dec, sm_enc, sm_x)

    kernel = functools.partial(
        _decoder_kernel,
        layout=layout,
        num_layers=cfg.num_hidden_layers,
        num_heads=nH,
        eps=cfg.layer_norm_eps,
    )

    out = pl.pallas_call(
        kernel,
        out_shape=jax.ShapeDtypeStruct((n_dec, H), jnp.float32),
        in_specs=[pl.BlockSpec(memory_space=pltpu.MemorySpace.VMEM) for _ in inputs],
        out_specs=pl.BlockSpec(memory_space=pltpu.MemorySpace.VMEM),
    )(*inputs)
    return out.reshape(B, S_t, H)


# ----------------------------- parameter init ----------------------------------
def init_params(key, cfg):
    H, I = cfg.hidden_size, cfg.intermediate_size
    L, V, P = cfg.num_hidden_layers, cfg.vocab_size, cfg.max_position_embeddings
    keys = iter(jax.random.split(key, 64))

    def w(shape):
        return jax.random.normal(next(keys), shape, jnp.float32) * 0.02

    def zeros(shape):
        return jnp.zeros(shape, jnp.float32)

    def ones(shape):
        return jnp.ones(shape, jnp.float32)

    def emb():
        return {"tok": w((V, H)), "pos": w((P, H)),
                "ln_g": ones((1, H)), "ln_b": zeros((1, H))}

    enc = {
        "qkv_w": w((L, H, 3 * H)), "qkv_b": zeros((L, 1, 3 * H)),
        "o_w": w((L, H, H)), "o_b": zeros((L, 1, H)),
        "ln1_g": ones((L, 1, H)), "ln1_b": zeros((L, 1, H)),
        "f1_w": w((L, H, I)), "f1_b": zeros((L, 1, I)),
        "f2_w": w((L, I, H)), "f2_b": zeros((L, 1, H)),
        "ln2_g": ones((L, 1, H)), "ln2_b": zeros((L, 1, H)),
    }
    dec = {
        "sqkv_w": w((L, H, 3 * H)), "sqkv_b": zeros((L, 1, 3 * H)),
        "so_w": w((L, H, H)), "so_b": zeros((L, 1, H)),
        "ln1_g": ones((L, 1, H)), "ln1_b": zeros((L, 1, H)),
        "cqkv_w": w((L, H, 3 * H)), "cqkv_b": zeros((L, 1, 3 * H)),
        "co_w": w((L, H, H)), "co_b": zeros((L, 1, H)),
        "ln2_g": ones((L, 1, H)), "ln2_b": zeros((L, 1, H)),
        "f1_w": w((L, H, I)), "f1_b": zeros((L, 1, I)),
        "f2_w": w((L, I, H)), "f2_b": zeros((L, 1, H)),
        "ln3_g": ones((L, 1, H)), "ln3_b": zeros((L, 1, H)),
    }
    return {"dec_emb": emb(), "enc_emb": emb(), "enc": enc, "dec": dec,
            "fin_w": w((H, H)), "fin_b": zeros((1, H))}


# ---------------------------------- main ----------------------------------------
if __name__ == "__main__":
    cfg = Config()
    root = jax.random.PRNGKey(0)
    pkey, tkey, qkey = jax.random.split(root, 3)

    params = init_params(pkey, cfg)

    B, S_tgt, S_src = 2, 8, 8
    targets = jax.random.randint(tkey, (B, S_tgt), 0, cfg.vocab_size, dtype=jnp.int32)
    query = jax.random.randint(qkey, (B, S_src), 0, cfg.vocab_size, dtype=jnp.int32)

    fwd = jax.jit(functools.partial(decoder_forward, cfg=cfg))
    out = fwd(params, targets, query)
    jax.block_until_ready(out)

    assert out.shape == (B, S_tgt, cfg.hidden_size)
    assert bool(jnp.isfinite(out).all())
    print("KERNEL_OK")
</pallas_src>

<mosaic_0001>
module attributes {stable_mosaic.version = 11 : i64} {
  func.func @_decoder_kernel(%arg0: memref<16x1xi32, #tpu.memory_space<vmem>>, %arg1: memref<16x1xi32, #tpu.memory_space<vmem>>, %arg2: memref<50x32xbf16, #tpu.memory_space<vmem>>, %arg3: memref<50x32xbf16, #tpu.memory_space<vmem>>, %arg4: memref<67x32xf32, #tpu.memory_space<vmem>>, %arg5: memref<6x32x96xbf16, #tpu.memory_space<vmem>>, %arg6: memref<7x32x32xbf16, #tpu.memory_space<vmem>>, %arg7: memref<4x32x64xbf16, #tpu.memory_space<vmem>>, %arg8: memref<4x64x32xbf16, #tpu.memory_space<vmem>>, %arg9: memref<6x96xf32, #tpu.memory_space<vmem>>, %arg10: memref<4x64xf32, #tpu.memory_space<vmem>>, %arg11: memref<64x32xf32, #tpu.memory_space<vmem>>, %arg12: memref<64x32xf32, #tpu.memory_space<vmem>>, %arg13: memref<16x64xf32, #tpu.memory_space<vmem>>, %arg14: memref<16x64xf32, #tpu.memory_space<vmem>>, %arg15: memref<16x64xf32, #tpu.memory_space<vmem>>, %arg16: memref<16x32xf32, #tpu.memory_space<vmem>>) attributes {dimension_semantics = [], scalar_prefetch = 0 : i64, scratch_operands = 0 : i64, tpu.core_type = #tpu.core_type<tc>} {
    %c0 = arith.constant 0 : index
    %c0_0 = arith.constant 0 : index
    %0 = vector.load %arg0[%c0, %c0_0] : memref<16x1xi32, #tpu.memory_space<vmem>>, vector<16x1xi32>
    %1 = tpu.iota {dimensions = array<i32: 1>} : vector<16x50xi32>
    %2 = vector.broadcast %0 : vector<16x1xi32> to vector<16x50xi32>
    %3 = arith.cmpi eq, %1, %2 : vector<16x50xi32>
    %cst = arith.constant 1.000000e+00 : f32
    %cst_1 = arith.constant 0.000000e+00 : f32
    %4 = vector.broadcast %cst : f32 to vector<16x50xf32>
    %5 = vector.broadcast %cst_1 : f32 to vector<16x50xf32>
    %6 = arith.select %3, %4, %5 : vector<16x50xi1>, vector<16x50xf32>
    %c0_2 = arith.constant 0 : index
    %c0_3 = arith.constant 0 : index
    %7 = vector.load %arg2[%c0_2, %c0_3] : memref<50x32xbf16, #tpu.memory_space<vmem>>, vector<50x32xbf16>
    %8 = arith.truncf %6 : vector<16x50xf32> to vector<16x50xbf16>
    %cst_4 = arith.constant dense<0.000000e+00> : vector<16x32xf32>
    %9 = tpu.matmul %8, %7, %cst_4 {dimension_numbers = #tpu.dot_dimension_numbers<[1], [0], [0], [1], [0, 0, 1, 1], [], []>} : vector<16x50xbf16>, vector<50x32xbf16>, vector<16x32xf32> -> vector<16x32xf32>
    %c0_5 = arith.constant 0 : index
    %c0_6 = arith.constant 0 : index
    %10 = vector.load %arg4[%c0_5, %c0_6] : memref<67x32xf32, #tpu.memory_space<vmem>>, vector<16x32xf32>
    %11 = arith.addf %9, %10 : vector<16x32xf32>
    %c32 = arith.constant 32 : index
    %c0_7 = arith.constant 0 : index
    %12 = vector.load %arg4[%c32, %c0_7] : memref<67x32xf32, #tpu.memory_space<vmem>>, vector<1x32xf32>
    %c33 = arith.constant 33 : index
    %c0_8 = arith.constant 0 : index
    %13 = vector.load %arg4[%c33, %c0_8] : memref<67x32xf32, #tpu.memory_space<vmem>>, vector<1x32xf32>
    %cst_9 = arith.constant dense<0.000000e+00> : vector<16xf32>
    %14 = vector.multi_reduction <add>, %11, %cst_9 [1] : vector<16x32xf32> to vector<16xf32>
    %15 = vector.shape_cast %14 : vector<16xf32> to vector<16x1xf32>
    %cst_10 = arith.constant 3.200000e+01 : f32
    %16 = vector.broadcast %cst_10 : f32 to vector<16x1xf32>
    %17 = arith.divf %15, %16 : vector<16x1xf32>
    %18 = vector.broadcast %17 : vector<16x1xf32> to vector<16x32xf32>
    %19 = arith.subf %11, %18 : vector<16x32xf32>
    %20 = arith.mulf %19, %19 : vector<16x32xf32>
    %cst_11 = arith.constant dense<0.000000e+00> : vector<16xf32>
    %21 = vector.multi_reduction <add>, %20, %cst_11 [1] : vector<16x32xf32> to vector<16xf32>
    %22 = vector.shape_cast %21 : vector<16xf32> to vector<16x1xf32>
    %cst_12 = arith.constant 3.200000e+01 : f32
    %23 = vector.broadcast %cst_12 : f32 to vector<16x1xf32>
    %24 = arith.divf %22, %23 : vector<16x1xf32>
    %25 = vector.broadcast %17 : vector<16x1xf32> to vector<16x32xf32>
    %26 = arith.subf %11, %25 : vector<16x32xf32>
    %cst_13 = arith.constant 9.99999996E-13 : f32
    %27 = vector.broadcast %cst_13 : f32 to vector<16x1xf32>
    %28 = arith.addf %24, %27 : vector<16x1xf32>
    %29 = math.rsqrt %28 : vector<16x1xf32>
    %30 = vector.broadcast %29 : vector<16x1xf32> to vector<16x32xf32>
    %31 = arith.mulf %26, %30 : vector<16x32xf32>
    %32 = vector.broadcast %12 : vector<1x32xf32> to vector<16x32xf32>
    %33 = arith.mulf %31, %32 : vector<16x32xf32>
    %34 = vector.broadcast %13 : vector<1x32xf32> to vector<16x32xf32>
    %35 = arith.addf %33, %34 : vector<16x32xf32>
    %c0_14 = arith.constant 0 : index
    %c0_15 = arith.constant 0 : index
    %36 = vector.load %arg1[%c0_14, %c0_15] : memref<16x1xi32, #tpu.memory_space<vmem>>, vector<16x1xi32>
    %37 = tpu.iota {dimensions = array<i32: 1>} : vector<16x50xi32>
    %38 = vector.broadcast %36 : vector<16x1xi32> to vector<16x50xi32>
    %39 = arith.cmpi eq, %37, %38 : vector<16x50xi32>
    %cst_16 = arith.constant 1.000000e+00 : f32
    %cst_17 = arith.constant 0.000000e+00 : f32
    %40 = vector.broadcast %cst_16 : f32 to vector<16x50xf32>
    %41 = vector.broadcast %cst_17 : f32 to vector<16x50xf32>
    %42 = arith.select %39, %40, %41 : vector<16x50xi1>, vector<16x50xf32>
    %c0_18 = arith.constant 0 : index
    %c0_19 = arith.constant 0 : index
    %43 = vector.load %arg3[%c0_18, %c0_19] : memref<50x32xbf16, #tpu.memory_space<vmem>>, vector<50x32xbf16>
    %44 = arith.truncf %42 : vector<16x50xf32> to vector<16x50xbf16>
    %cst_20 = arith.constant dense<0.000000e+00> : vector<16x32xf32>
    %45 = tpu.matmul %44, %43, %cst_20 {dimension_numbers = #tpu.dot_dimension_numbers<[1], [0], [0], [1], [0, 0, 1, 1], [], []>} : vector<16x50xbf16>, vector<50x32xbf16>, vector<16x32xf32> -> vector<16x32xf32>
    %c16 = arith.constant 16 : index
    %c0_21 = arith.constant 0 : index
    %46 = vector.load %arg4[%c16, %c0_21] : memref<67x32xf32, #tpu.memory_space<vmem>>, vector<16x32xf32>
    %47 = arith.addf %45, %46 : vector<16x32xf32>
    %c34 = arith.constant 34 : index
    %c0_22 = arith.constant 0 : index
    %48 = vector.load %arg4[%c34, %c0_22] : memref<67x32xf32, #tpu.memory_space<vmem>>, vector<1x32xf32>
    %c35 = arith.constant 35 : index
    %c0_23 = arith.constant 0 : index
    %49 = vector.load %arg4[%c35, %c0_23] : memref<67x32xf32, #tpu.memory_space<vmem>>, vector<1x32xf32>
    %cst_24 = arith.constant dense<0.000000e+00> : vector<16xf32>
    %50 = vector.multi_reduction <add>, %47, %cst_24 [1] : vector<16x32xf32> to vector<16xf32>
    %51 = vector.shape_cast %50 : vector<16xf32> to vector<16x1xf32>
    %cst_25 = arith.constant 3.200000e+01 : f32
    %52 = vector.broadcast %cst_25 : f32 to vector<16x1xf32>
    %53 = arith.divf %51, %52 : vector<16x1xf32>
    %54 = vector.broadcast %53 : vector<16x1xf32> to vector<16x32xf32>
    %55 = arith.subf %47, %54 : vector<16x32xf32>
    %56 = arith.mulf %55, %55 : vector<16x32xf32>
    %cst_26 = arith.constant dense<0.000000e+00> : vector<16xf32>
    %57 = vector.multi_reduction <add>, %56, %cst_26 [1] : vector<16x32xf32> to vector<16xf32>
    %58 = vector.shape_cast %57 : vector<16xf32> to vector<16x1xf32>
    %cst_27 = arith.constant 3.200000e+01 : f32
    %59 = vector.broadcast %cst_27 : f32 to vector<16x1xf32>
    %60 = arith.divf %58, %59 : vector<16x1xf32>
    %61 = vector.broadcast %53 : vector<16x1xf32> to vector<16x32xf32>
    %62 = arith.subf %47, %61 : vector<16x32xf32>
    %cst_28 = arith.constant 9.99999996E-13 : f32
    %63 = vector.broadcast %cst_28 : f32 to vector<16x1xf32>
    %64 = arith.addf %60, %63 : vector<16x1xf32>
    %65 = math.rsqrt %64 : vector<16x1xf32>
    %66 = vector.broadcast %65 : vector<16x1xf32> to vector<16x32xf32>
    %67 = arith.mulf %62, %66 : vector<16x32xf32>
    %68 = vector.broadcast %48 : vector<1x32xf32> to vector<16x32xf32>
    %69 = arith.mulf %67, %68 : vector<16x32xf32>
    %70 = vector.broadcast %49 : vector<1x32xf32> to vector<16x32xf32>
    %71 = arith.addf %69, %70 : vector<16x32xf32>
    %c0_29 = arith.constant 0 : index
    %c0_30 = arith.constant 0 : index
    %72 = vector.load %arg11[%c0_29, %c0_30] : memref<64x32xf32, #tpu.memory_space<vmem>>, vector<64x32xf32>
    %c0_31 = arith.constant 0 : index
    %c0_32 = arith.constant 0 : index
    %73 = vector.load %arg12[%c0_31, %c0_32] : memref<64x32xf32, #tpu.memory_space<vmem>>, vector<64x32xf32>
    %c0_33 = arith.constant 0 : index
    %c0_34 = arith.constant 0 : index
    %74 = vector.load %arg13[%c0_33, %c0_34] : memref<16x64xf32, #tpu.memory_space<vmem>>, vector<16x64xf32>
    %c0_35 = arith.constant 0 : index
    %c0_36 = arith.constant 0 : index
    %75 = vector.load %arg14[%c0_35, %c0_36] : memref<16x64xf32, #tpu.memory_space<vmem>>, vector<16x64xf32>
    %c0_37 = arith.constant 0 : index
    %c0_38 = arith.constant 0 : index
    %76 = vector.load %arg15[%c0_37, %c0_38] : memref<16x64xf32, #tpu.memory_space<vmem>>, vector<16x64xf32>
    %c0_39 = arith.constant 0 : index
    %c0_40 = arith.constant 0 : index
    %c0_41 = arith.constant 0 : index
    %77 = vector.load %arg5[%c0_39, %c0_40, %c0_41] : memref<6x32x96xbf16, #tpu.memory_space<vmem>>, vector<1x32x96xbf16>
    %78 = vector.shape_cast %77 : vector<1x32x96xbf16> to vector<32x96xbf16>
    %79 = arith.truncf %71 : vector<16x32xf32> to vector<16x32xbf16>
    %cst_42 = arith.constant dense<0.000000e+00> : vector<16x96xf32>
    %80 = tpu.matmul %79, %78, %cst_42 {dimension_numbers = #tpu.dot_dimension_numbers<[1], [0], [0], [1], [0, 0, 1, 1], [], []>} : vector<16x32xbf16>, vector<32x96xbf16>, vector<16x96xf32> -> vector<16x96xf32>
    %c0_43 = arith.constant 0 : index
    %c0_44 = arith.constant 0 : index
    %81 = vector.load %arg9[%c0_43, %c0_44] : memref<6x96xf32, #tpu.memory_space<vmem>>, vector<1x96xf32>
    %82 = vector.broadcast %81 : vector<1x96xf32> to vector<16x96xf32>
    %83 = arith.addf %80, %82 : vector<16x96xf32>
    %84 = vector.extract_strided_slice %83 {offsets = [0, 0], sizes = [16, 32], strides = [1, 1]} : vector<16x96xf32> to vector<16x32xf32>
    %85 = vector.extract_strided_slice %83 {offsets = [0, 32], sizes = [16, 32], strides = [1, 1]} : vector<16x96xf32> to vector<16x32xf32>
    %86 = vector.extract_strided_slice %83 {offsets = [0, 64], sizes = [16, 32], strides = [1, 1]} : vector<16x96xf32> to vector<16x32xf32>
    %c0_45 = arith.constant 0 : index
    %c0_46 = arith.constant 0 : index
    %c0_47 = arith.constant 0 : index
    %87 = vector.load %arg6[%c0_45, %c0_46, %c0_47] : memref<7x32x32xbf16, #tpu.memory_space<vmem>>, vector<1x32x32xbf16>
    %88 = vector.shape_cast %87 : vector<1x32x32xbf16> to vector<32x32xbf16>
    %c36 = arith.constant 36 : index
    %c0_48 = arith.constant 0 : index
    %89 = vector.load %arg4[%c36, %c0_48] : memref<67x32xf32, #tpu.memory_space<vmem>>, vector<1x32xf32>
    %90 = tpu.concatenate %85, %85, %85, %85 in 0 : vector<16x32xf32>, vector<16x32xf32>, vector<16x32xf32>, vector<16x32xf32> -> vector<64x32xf32>
    %91 = arith.mulf %90, %73 : vector<64x32xf32>
    %92 = tpu.concatenate %86, %86, %86, %86 in 0 : vector<16x32xf32>, vector<16x32xf32>, vector<16x32xf32>, vector<16x32xf32> -> vector<64x32xf32>
    %93 = arith.mulf %92, %73 : vector<64x32xf32>
    %cst_49 = arith.constant 0.353553385 : f32
    %94 = vector.broadcast %cst_49 : f32 to vector<16x32xf32>
    %95 = arith.mulf %84, %94 : vector<16x32xf32>
    %96 = arith.truncf %95 : vector<16x32xf32> to vector<16x32xbf16>
    %97 = arith.truncf %91 : vector<64x32xf32> to vector<64x32xbf16>
    %cst_50 = arith.constant dense<0.000000e+00> : vector<16x64xf32>
    %98 = tpu.matmul %96, %97, %cst_50 {dimension_numbers = #tpu.dot_dimension_numbers<[1], [1], [0], [0], [0, 0, 1, 0], [], []>} : vector<16x32xbf16>, vector<64x32xbf16>, vector<16x64xf32> -> vector<16x64xf32>
    %99 = arith.addf %98, %75 : vector<16x64xf32>
    %cst_51 = arith.constant dense<0xFF800000> : vector<16xf32>
    %100 = vector.multi_reduction <maximumf>, %99, %cst_51 [1] : vector<16x64xf32> to vector<16xf32>
    %101 = vector.shape_cast %100 : vector<16xf32> to vector<16x1xf32>
    %102 = vector.broadcast %101 : vector<16x1xf32> to vector<16x64xf32>
    %103 = arith.subf %99, %102 : vector<16x64xf32>
    %104 = math.exp %103 : vector<16x64xf32>
    %105 = tpu.concatenate %93, %73 in 1 : vector<64x32xf32>, vector<64x32xf32> -> vector<64x64xf32>
    %106 = arith.truncf %104 : vector<16x64xf32> to vector<16x64xbf16>
    %107 = arith.truncf %105 : vector<64x64xf32> to vector<64x64xbf16>
    %cst_52 = arith.constant dense<0.000000e+00> : vector<16x64xf32>
    %108 = tpu.matmul %106, %107, %cst_52 {dimension_numbers = #tpu.dot_dimension_numbers<[1], [0], [0], [1], [0, 0, 1, 1], [], []>} : vector<16x64xbf16>, vector<64x64xbf16>, vector<16x64xf32> -> vector<16x64xf32>
    %109 = vector.extract_strided_slice %108 {offsets = [0, 0], sizes = [16, 32], strides = [1, 1]} : vector<16x64xf32> to vector<16x32xf32>
    %110 = vector.extract_strided_slice %108 {offsets = [0, 32], sizes = [16, 32], strides = [1, 1]} : vector<16x64xf32> to vector<16x32xf32>
    %cst_53 = arith.constant 1.000000e-30 : f32
    %111 = vector.broadcast %cst_53 : f32 to vector<16x32xf32>
    %112 = arith.maximumf %110, %111 : vector<16x32xf32>
    %113 = arith.divf %109, %112 : vector<16x32xf32>
    %114 = arith.truncf %113 : vector<16x32xf32> to vector<16x32xbf16>
    %cst_54 = arith.constant dense<0.000000e+00> : vector<16x32xf32>
    %115 = tpu.matmul %114, %88, %cst_54 {dimension_numbers = #tpu.dot_dimension_numbers<[1], [0], [0], [1], [0, 0, 1, 1], [], []>} : vector<16x32xbf16>, vector<32x32xbf16>, vector<16x32xf32> -> vector<16x32xf32>
    %116 = vector.broadcast %89 : vector<1x32xf32> to vector<16x32xf32>
    %117 = arith.addf %115, %116 : vector<16x32xf32>
    %118 = arith.addf %71, %117 : vector<16x32xf32>
    %c37 = arith.constant 37 : index
    %c0_55 = arith.constant 0 : index
    %119 = vector.load %arg4[%c37, %c0_55] : memref<67x32xf32, #tpu.memory_space<vmem>>, vector<1x32xf32>
    %c38 = arith.constant 38 : index
    %c0_56 = arith.constant 0 : index
    %120 = vector.load %arg4[%c38, %c0_56] : memref<67x32xf32, #tpu.memory_space<vmem>>, vector<1x32xf32>
    %cst_57 = arith.constant dense<0.000000e+00> : vector<16xf32>
    %121 = vector.multi_reduction <add>, %118, %cst_57 [1] : vector<16x32xf32> to vector<16xf32>
    %122 = vector.shape_cast %121 : vector<16xf32> to vector<16x1xf32>
    %cst_58 = arith.constant 3.200000e+01 : f32
    %123 = vector.broadcast %cst_58 : f32 to vector<16x1xf32>
    %124 = arith.divf %122, %123 : vector<16x1xf32>
    %125 = vector.broadcast %124 : vector<16x1xf32> to vector<16x32xf32>
    %126 = arith.subf %118, %125 : vector<16x32xf32>
    %127 = arith.mulf %126, %126 : vector<16x32xf32>
    %cst_59 = arith.constant dense<0.000000e+00> : vector<16xf32>
    %128 = vector.multi_reduction <add>, %127, %cst_59 [1] : vector<16x32xf32> to vector<16xf32>
    %129 = vector.shape_cast %128 : vector<16xf32> to vector<16x1xf32>
    %cst_60 = arith.constant 3.200000e+01 : f32
    %130 = vector.broadcast %cst_60 : f32 to vector<16x1xf32>
    %131 = arith.divf %129, %130 : vector<16x1xf32>
    %132 = vector.broadcast %124 : vector<16x1xf32> to vector<16x32xf32>
    %133 = arith.subf %118, %132 : vector<16x32xf32>
    %cst_61 = arith.constant 9.99999996E-13 : f32
    %134 = vector.broadcast %cst_61 : f32 to vector<16x1xf32>
    %135 = arith.addf %131, %134 : vector<16x1xf32>
    %136 = math.rsqrt %135 : vector<16x1xf32>
    %137 = vector.broadcast %136 : vector<16x1xf32> to vector<16x32xf32>
    %138 = arith.mulf %133, %137 : vector<16x32xf32>
    %139 = vector.broadcast %119 : vector<1x32xf32> to vector<16x32xf32>
    %140 = arith.mulf %138, %139 : vector<16x32xf32>
    %141 = vector.broadcast %120 : vector<1x32xf32> to vector<16x32xf32>
    %142 = arith.addf %140, %141 : vector<16x32xf32>
    %c0_62 = arith.constant 0 : index
    %c0_63 = arith.constant 0 : index
    %c0_64 = arith.constant 0 : index
    %143 = vector.load %arg7[%c0_62, %c0_63, %c0_64] : memref<4x32x64xbf16, #tpu.memory_space<vmem>>, vector<1x32x64xbf16>
    %144 = vector.shape_cast %143 : vector<1x32x64xbf16> to vector<32x64xbf16>
    %c0_65 = arith.constant 0 : index
    %c0_66 = arith.constant 0 : index
    %145 = vector.load %arg10[%c0_65, %c0_66] : memref<4x64xf32, #tpu.memory_space<vmem>>, vector<1x64xf32>
    %c0_67 = arith.constant 0 : index
    %c0_68 = arith.constant 0 : index
    %c0_69 = arith.constant 0 : index
    %146 = vector.load %arg8[%c0_67, %c0_68, %c0_69] : memref<4x64x32xbf16, #tpu.memory_space<vmem>>, vector<1x64x32xbf16>
    %147 = vector.shape_cast %146 : vector<1x64x32xbf16> to vector<64x32xbf16>
    %c39 = arith.constant 39 : index
    %c0_70 = arith.constant 0 : index
    %148 = vector.load %arg4[%c39, %c0_70] : memref<67x32xf32, #tpu.memory_space<vmem>>, vector<1x32xf32>
    %149 = arith.truncf %142 : vector<16x32xf32> to vector<16x32xbf16>
    %cst_71 = arith.constant dense<0.000000e+00> : vector<16x64xf32>
    %150 = tpu.matmul %149, %144, %cst_71 {dimension_numbers = #tpu.dot_dimension_numbers<[1], [0], [0], [1], [0, 0, 1, 1], [], []>} : vector<16x32xbf16>, vector<32x64xbf16>, vector<16x64xf32> -> vector<16x64xf32>
    %151 = vector.broadcast %145 : vector<1x64xf32> to vector<16x64xf32>
    %152 = arith.addf %150, %151 : vector<16x64xf32>
    %cst_72 = arith.constant 5.000000e-01 : f32
    %153 = vector.broadcast %cst_72 : f32 to vector<16x64xf32>
    %154 = arith.mulf %153, %152 : vector<16x64xf32>
    %cst_73 = arith.constant 4.471500e-02 : f32
    %155 = vector.broadcast %cst_73 : f32 to vector<16x64xf32>
    %156 = arith.mulf %155, %152 : vector<16x64xf32>
    %157 = arith.mulf %156, %152 : vector<16x64xf32>
    %158 = arith.mulf %157, %152 : vector<16x64xf32>
    %159 = arith.addf %152, %158 : vector<16x64xf32>
    %cst_74 = arith.constant 0.797884583 : f32
    %160 = vector.broadcast %cst_74 : f32 to vector<16x64xf32>
    %161 = arith.mulf %160, %159 : vector<16x64xf32>
    %162 = math.tanh %161 : vector<16x64xf32>
    %cst_75 = arith.constant 1.000000e+00 : f32
    %163 = vector.broadcast %cst_75 : f32 to vector<16x64xf32>
    %164 = arith.addf %163, %162 : vector<16x64xf32>
    %165 = arith.mulf %154, %164 : vector<16x64xf32>
    %166 = arith.truncf %165 : vector<16x64xf32> to vector<16x64xbf16>
    %cst_76 = arith.constant dense<0.000000e+00> : vector<16x32xf32>
    %167 = tpu.matmul %166, %147, %cst_76 {dimension_numbers = #tpu.dot_dimension_numbers<[1], [0], [0], [1], [0, 0, 1, 1], [], []>} : vector<16x64xbf16>, vector<64x32xbf16>, vector<16x32xf32> -> vector<16x32xf32>
    %168 = vector.broadcast %148 : vector<1x32xf32> to vector<16x32xf32>
    %169 = arith.addf %167, %168 : vector<16x32xf32>
    %170 = arith.addf %142, %169 : vector<16x32xf32>
    %c40 = arith.constant 40 : index
    %c0_77 = arith.constant 0 : index
    %171 = vector.load %arg4[%c40, %c0_77] : memref<67x32xf32, #tpu.memory_space<vmem>>, vector<1x32xf32>
    %c41 = arith.constant 41 : index
    %c0_78 = arith.constant 0 : index
    %172 = vector.load %arg4[%c41, %c0_78] : memref<67x32xf32, #tpu.memory_space<vmem>>, vector<1x32xf32>
    %cst_79 = arith.constant dense<0.000000e+00> : vector<16xf32>
    %173 = vector.multi_reduction <add>, %170, %cst_79 [1] : vector<16x32xf32> to vector<16xf32>
    %174 = vector.shape_cast %173 : vector<16xf32> to vector<16x1xf32>
    %cst_80 = arith.constant 3.200000e+01 : f32
    %175 = vector.broadcast %cst_80 : f32 to vector<16x1xf32>
    %176 = arith.divf %174, %175 : vector<16x1xf32>
    %177 = vector.broadcast %176 : vector<16x1xf32> to vector<16x32xf32>
    %178 = arith.subf %170, %177 : vector<16x32xf32>
    %179 = arith.mulf %178, %178 : vector<16x32xf32>
    %cst_81 = arith.constant dense<0.000000e+00> : vector<16xf32>
    %180 = vector.multi_reduction <add>, %179, %cst_81 [1] : vector<16x32xf32> to vector<16xf32>
    %181 = vector.shape_cast %180 : vector<16xf32> to vector<16x1xf32>
    %cst_82 = arith.constant 3.200000e+01 : f32
    %182 = vector.broadcast %cst_82 : f32 to vector<16x1xf32>
    %183 = arith.divf %181, %182 : vector<16x1xf32>
    %184 = vector.broadcast %176 : vector<16x1xf32> to vector<16x32xf32>
    %185 = arith.subf %170, %184 : vector<16x32xf32>
    %cst_83 = arith.constant 9.99999996E-13 : f32
    %186 = vector.broadcast %cst_83 : f32 to vector<16x1xf32>
    %187 = arith.addf %183, %186 : vector<16x1xf32>
    %188 = math.rsqrt %187 : vector<16x1xf32>
    %189 = vector.broadcast %188 : vector<16x1xf32> to vector<16x32xf32>
    %190 = arith.mulf %185, %189 : vector<16x32xf32>
    %191 = vector.broadcast %171 : vector<1x32xf32> to vector<16x32xf32>
    %192 = arith.mulf %190, %191 : vector<16x32xf32>
    %193 = vector.broadcast %172 : vector<1x32xf32> to vector<16x32xf32>
    %194 = arith.addf %192, %193 : vector<16x32xf32>
    %c1 = arith.constant 1 : index
    %c0_84 = arith.constant 0 : index
    %c0_85 = arith.constant 0 : index
    %195 = vector.load %arg5[%c1, %c0_84, %c0_85] : memref<6x32x96xbf16, #tpu.memory_space<vmem>>, vector<1x32x96xbf16>
    %196 = vector.shape_cast %195 : vector<1x32x96xbf16> to vector<32x96xbf16>
    %197 = arith.truncf %194 : vector<16x32xf32> to vector<16x32xbf16>
    %cst_86 = arith.constant dense<0.000000e+00> : vector<16x96xf32>
    %198 = tpu.matmul %197, %196, %cst_86 {dimension_numbers = #tpu.dot_dimension_numbers<[1], [0], [0], [1], [0, 0, 1, 1], [], []>} : vector<16x32xbf16>, vector<32x96xbf16>, vector<16x96xf32> -> vector<16x96xf32>
    %c1_87 = arith.constant 1 : index
    %c0_88 = arith.constant 0 : index
    %199 = vector.load %arg9[%c1_87, %c0_88] : memref<6x96xf32, #tpu.memory_space<vmem>>, vector<1x96xf32>
    %200 = vector.broadcast %199 : vector<1x96xf32> to vector<16x96xf32>
    %201 = arith.addf %198, %200 : vector<16x96xf32>
    %202 = vector.extract_strided_slice %201 {offsets = [0, 0], sizes = [16, 32], strides = [1, 1]} : vector<16x96xf32> to vector<16x32xf32>
    %203 = vector.extract_strided_slice %201 {offsets = [0, 32], sizes = [16, 32], strides = [1, 1]} : vector<16x96xf32> to vector<16x32xf32>
    %204 = vector.extract_strided_slice %201 {offsets = [0, 64], sizes = [16, 32], strides = [1, 1]} : vector<16x96xf32> to vector<16x32xf32>
    %c1_89 = arith.constant 1 : index
    %c0_90 = arith.constant 0 : index
    %c0_91 = arith.constant 0 : index
    %205 = vector.load %arg6[%c1_89, %c0_90, %c0_91] : memref<7x32x32xbf16, #tpu.memory_space<vmem>>, vector<1x32x32xbf16>
    %206 = vector.shape_cast %205 : vector<1x32x32xbf16> to vector<32x32xbf16>
    %c42 = arith.constant 42 : index
    %c0_92 = arith.constant 0 : index
    %207 = vector.load %arg4[%c42, %c0_92] : memref<67x32xf32, #tpu.memory_space<vmem>>, vector<1x32xf32>
    %208 = tpu.concatenate %203, %203, %203, %203 in 0 : vector<16x32xf32>, vector<16x32xf32>, vector<16x32xf32>, vector<16x32xf32> -> vector<64x32xf32>
    %209 = arith.mulf %208, %73 : vector<64x32xf32>
    %210 = tpu.concatenate %204, %204, %204, %204 in 0 : vector<16x32xf32>, vector<16x32xf32>, vector<16x32xf32>, vector<16x32xf32> -> vector<64x32xf32>
    %211 = arith.mulf %210, %73 : vector<64x32xf32>
    %cst_93 = arith.constant 0.353553385 : f32
    %212 = vector.broadcast %cst_93 : f32 to vector<16x32xf32>
    %213 = arith.mulf %202, %212 : vector<16x32xf32>
    %214 = arith.truncf %213 : vector<16x32xf32> to vector<16x32xbf16>
    %215 = arith.truncf %209 : vector<64x32xf32> to vector<64x32xbf16>
    %cst_94 = arith.constant dense<0.000000e+00> : vector<16x64xf32>
    %216 = tpu.matmul %214, %215, %cst_94 {dimension_numbers = #tpu.dot_dimension_numbers<[1], [1], [0], [0], [0, 0, 1, 0], [], []>} : vector<16x32xbf16>, vector<64x32xbf16>, vector<16x64xf32> -> vector<16x64xf32>
    %217 = arith.addf %216, %75 : vector<16x64xf32>
    %cst_95 = arith.constant dense<0xFF800000> : vector<16xf32>
    %218 = vector.multi_reduction <maximumf>, %217, %cst_95 [1] : vector<16x64xf32> to vector<16xf32>
    %219 = vector.shape_cast %218 : vector<16xf32> to vector<16x1xf32>
    %220 = vector.broadcast %219 : vector<16x1xf32> to vector<16x64xf32>
    %221 = arith.subf %217, %220 : vector<16x64xf32>
    %222 = math.exp %221 : vector<16x64xf32>
    %223 = tpu.concatenate %211, %73 in 1 : vector<64x32xf32>, vector<64x32xf32> -> vector<64x64xf32>
    %224 = arith.truncf %222 : vector<16x64xf32> to vector<16x64xbf16>
    %225 = arith.truncf %223 : vector<64x64xf32> to vector<64x64xbf16>
    %cst_96 = arith.constant dense<0.000000e+00> : vector<16x64xf32>
    %226 = tpu.matmul %224, %225, %cst_96 {dimension_numbers = #tpu.dot_dimension_numbers<[1], [0], [0], [1], [0, 0, 1, 1], [], []>} : vector<16x64xbf16>, vector<64x64xbf16>, vector<16x64xf32> -> vector<16x64xf32>
    %227 = vector.extract_strided_slice %226 {offsets = [0, 0], sizes = [16, 32], strides = [1, 1]} : vector<16x64xf32> to vector<16x32xf32>
    %228 = vector.extract_strided_slice %226 {offsets = [0, 32], sizes = [16, 32], strides = [1, 1]} : vector<16x64xf32> to vector<16x32xf32>
    %cst_97 = arith.constant 1.000000e-30 : f32
    %229 = vector.broadcast %cst_97 : f32 to vector<16x32xf32>
    %230 = arith.maximumf %228, %229 : vector<16x32xf32>
    %231 = arith.divf %227, %230 : vector<16x32xf32>
    %232 = arith.truncf %231 : vector<16x32xf32> to vector<16x32xbf16>
    %cst_98 = arith.constant dense<0.000000e+00> : vector<16x32xf32>
    %233 = tpu.matmul %232, %206, %cst_98 {dimension_numbers = #tpu.dot_dimension_numbers<[1], [0], [0], [1], [0, 0, 1, 1], [], []>} : vector<16x32xbf16>, vector<32x32xbf16>, vector<16x32xf32> -> vector<16x32xf32>
    %234 = vector.broadcast %207 : vector<1x32xf32> to vector<16x32xf32>
    %235 = arith.addf %233, %234 : vector<16x32xf32>
    %236 = arith.addf %194, %235 : vector<16x32xf32>
    %c43 = arith.constant 43 : index
    %c0_99 = arith.constant 0 : index
    %237 = vector.load %arg4[%c43, %c0_99] : memref<67x32xf32, #tpu.memory_space<vmem>>, vector<1x32xf32>
    %c44 = arith.constant 44 : index
    %c0_100 = arith.constant 0 : index
    %238 = vector.load %arg4[%c44, %c0_100] : memref<67x32xf32, #tpu.memory_space<vmem>>, vector<1x32xf32>
    %cst_101 = arith.constant dense<0.000000e+00> : vector<16xf32>
    %239 = vector.multi_reduction <add>, %236, %cst_101 [1] : vector<16x32xf32> to vector<16xf32>
    %240 = vector.shape_cast %239 : vector<16xf32> to vector<16x1xf32>
    %cst_102 = arith.constant 3.200000e+01 : f32
    %241 = vector.broadcast %cst_102 : f32 to vector<16x1xf32>
    %242 = arith.divf %240, %241 : vector<16x1xf32>
    %243 = vector.broadcast %242 : vector<16x1xf32> to vector<16x32xf32>
    %244 = arith.subf %236, %243 : vector<16x32xf32>
    %245 = arith.mulf %244, %244 : vector<16x32xf32>
    %cst_103 = arith.constant dense<0.000000e+00> : vector<16xf32>
    %246 = vector.multi_reduction <add>, %245, %cst_103 [1] : vector<16x32xf32> to vector<16xf32>
    %247 = vector.shape_cast %246 : vector<16xf32> to vector<16x1xf32>
    %cst_104 = arith.constant 3.200000e+01 : f32
    %248 = vector.broadcast %cst_104 : f32 to vector<16x1xf32>
    %249 = arith.divf %247, %248 : vector<16x1xf32>
    %250 = vector.broadcast %242 : vector<16x1xf32> to vector<16x32xf32>
    %251 = arith.subf %236, %250 : vector<16x32xf32>
    %cst_105 = arith.constant 9.99999996E-13 : f32
    %252 = vector.broadcast %cst_105 : f32 to vector<16x1xf32>
    %253 = arith.addf %249, %252 : vector<16x1xf32>
    %254 = math.rsqrt %253 : vector<16x1xf32>
    %255 = vector.broadcast %254 : vector<16x1xf32> to vector<16x32xf32>
    %256 = arith.mulf %251, %255 : vector<16x32xf32>
    %257 = vector.broadcast %237 : vector<1x32xf32> to vector<16x32xf32>
    %258 = arith.mulf %256, %257 : vector<16x32xf32>
    %259 = vector.broadcast %238 : vector<1x32xf32> to vector<16x32xf32>
    %260 = arith.addf %258, %259 : vector<16x32xf32>
    %c1_106 = arith.constant 1 : index
    %c0_107 = arith.constant 0 : index
    %c0_108 = arith.constant 0 : index
    %261 = vector.load %arg7[%c1_106, %c0_107, %c0_108] : memref<4x32x64xbf16, #tpu.memory_space<vmem>>, vector<1x32x64xbf16>
    %262 = vector.shape_cast %261 : vector<1x32x64xbf16> to vector<32x64xbf16>
    %c1_109 = arith.constant 1 : index
    %c0_110 = arith.constant 0 : index
    %263 = vector.load %arg10[%c1_109, %c0_110] : memref<4x64xf32, #tpu.memory_space<vmem>>, vector<1x64xf32>
    %c1_111 = arith.constant 1 : index
    %c0_112 = arith.constant 0 : index
    %c0_113 = arith.constant 0 : index
    %264 = vector.load %arg8[%c1_111, %c0_112, %c0_113] : memref<4x64x32xbf16, #tpu.memory_space<vmem>>, vector<1x64x32xbf16>
    %265 = vector.shape_cast %264 : vector<1x64x32xbf16> to vector<64x32xbf16>
    %c45 = arith.constant 45 : index
    %c0_114 = arith.constant 0 : index
    %266 = vector.load %arg4[%c45, %c0_114] : memref<67x32xf32, #tpu.memory_space<vmem>>, vector<1x32xf32>
    %267 = arith.truncf %260 : vector<16x32xf32> to vector<16x32xbf16>
    %cst_115 = arith.constant dense<0.000000e+00> : vector<16x64xf32>
    %268 = tpu.matmul %267, %262, %cst_115 {dimension_numbers = #tpu.dot_dimension_numbers<[1], [0], [0], [1], [0, 0, 1, 1], [], []>} : vector<16x32xbf16>, vector<32x64xbf16>, vector<16x64xf32> -> vector<16x64xf32>
    %269 = vector.broadcast %263 : vector<1x64xf32> to vector<16x64xf32>
    %270 = arith.addf %268, %269 : vector<16x64xf32>
    %cst_116 = arith.constant 5.000000e-01 : f32
    %271 = vector.broadcast %cst_116 : f32 to vector<16x64xf32>
    %272 = arith.mulf %271, %270 : vector<16x64xf32>
    %cst_117 = arith.constant 4.471500e-02 : f32
    %273 = vector.broadcast %cst_117 : f32 to vector<16x64xf32>
    %274 = arith.mulf %273, %270 : vector<16x64xf32>
    %275 = arith.mulf %274, %270 : vector<16x64xf32>
    %276 = arith.mulf %275, %270 : vector<16x64xf32>
    %277 = arith.addf %270, %276 : vector<16x64xf32>
    %cst_118 = arith.constant 0.797884583 : f32
    %278 = vector.broadcast %cst_118 : f32 to vector<16x64xf32>
    %279 = arith.mulf %278, %277 : vector<16x64xf32>
    %280 = math.tanh %279 : vector<16x64xf32>
    %cst_119 = arith.constant 1.000000e+00 : f32
    %281 = vector.broadcast %cst_119 : f32 to vector<16x64xf32>
    %282 = arith.addf %281, %280 : vector<16x64xf32>
    %283 = arith.mulf %272, %282 : vector<16x64xf32>
    %284 = arith.truncf %283 : vector<16x64xf32> to vector<16x64xbf16>
    %cst_120 = arith.constant dense<0.000000e+00> : vector<16x32xf32>
    %285 = tpu.matmul %284, %265, %cst_120 {dimension_numbers = #tpu.dot_dimension_numbers<[1], [0], [0], [1], [0, 0, 1, 1], [], []>} : vector<16x64xbf16>, vector<64x32xbf16>, vector<16x32xf32> -> vector<16x32xf32>
    %286 = vector.broadcast %266 : vector<1x32xf32> to vector<16x32xf32>
    %287 = arith.addf %285, %286 : vector<16x32xf32>
    %288 = arith.addf %260, %287 : vector<16x32xf32>
    %c46 = arith.constant 46 : index
    %c0_121 = arith.constant 0 : index
    %289 = vector.load %arg4[%c46, %c0_121] : memref<67x32xf32, #tpu.memory_space<vmem>>, vector<1x32xf32>
    %c47 = arith.constant 47 : index
    %c0_122 = arith.constant 0 : index
    %290 = vector.load %arg4[%c47, %c0_122] : memref<67x32xf32, #tpu.memory_space<vmem>>, vector<1x32xf32>
    %cst_123 = arith.constant dense<0.000000e+00> : vector<16xf32>
    %291 = vector.multi_reduction <add>, %288, %cst_123 [1] : vector<16x32xf32> to vector<16xf32>
    %292 = vector.shape_cast %291 : vector<16xf32> to vector<16x1xf32>
    %cst_124 = arith.constant 3.200000e+01 : f32
    %293 = vector.broadcast %cst_124 : f32 to vector<16x1xf32>
    %294 = arith.divf %292, %293 : vector<16x1xf32>
    %295 = vector.broadcast %294 : vector<16x1xf32> to vector<16x32xf32>
    %296 = arith.subf %288, %295 : vector<16x32xf32>
    %297 = arith.mulf %296, %296 : vector<16x32xf32>
    %cst_125 = arith.constant dense<0.000000e+00> : vector<16xf32>
    %298 = vector.multi_reduction <add>, %297, %cst_125 [1] : vector<16x32xf32> to vector<16xf32>
    %299 = vector.shape_cast %298 : vector<16xf32> to vector<16x1xf32>
    %cst_126 = arith.constant 3.200000e+01 : f32
    %300 = vector.broadcast %cst_126 : f32 to vector<16x1xf32>
    %301 = arith.divf %299, %300 : vector<16x1xf32>
    %302 = vector.broadcast %294 : vector<16x1xf32> to vector<16x32xf32>
    %303 = arith.subf %288, %302 : vector<16x32xf32>
    %cst_127 = arith.constant 9.99999996E-13 : f32
    %304 = vector.broadcast %cst_127 : f32 to vector<16x1xf32>
    %305 = arith.addf %301, %304 : vector<16x1xf32>
    %306 = math.rsqrt %305 : vector<16x1xf32>
    %307 = vector.broadcast %306 : vector<16x1xf32> to vector<16x32xf32>
    %308 = arith.mulf %303, %307 : vector<16x32xf32>
    %309 = vector.broadcast %289 : vector<1x32xf32> to vector<16x32xf32>
    %310 = arith.mulf %308, %309 : vector<16x32xf32>
    %311 = vector.broadcast %290 : vector<1x32xf32> to vector<16x32xf32>
    %312 = arith.addf %310, %311 : vector<16x32xf32>
    %c2 = arith.constant 2 : index
    %c0_128 = arith.constant 0 : index
    %c0_129 = arith.constant 0 : index
    %313 = vector.load %arg5[%c2, %c0_128, %c0_129] : memref<6x32x96xbf16, #tpu.memory_space<vmem>>, vector<1x32x96xbf16>
    %314 = vector.shape_cast %313 : vector<1x32x96xbf16> to vector<32x96xbf16>
    %315 = arith.truncf %35 : vector<16x32xf32> to vector<16x32xbf16>
    %cst_130 = arith.constant dense<0.000000e+00> : vector<16x96xf32>
    %316 = tpu.matmul %315, %314, %cst_130 {dimension_numbers = #tpu.dot_dimension_numbers<[1], [0], [0], [1], [0, 0, 1, 1], [], []>} : vector<16x32xbf16>, vector<32x96xbf16>, vector<16x96xf32> -> vector<16x96xf32>
    %c2_131 = arith.constant 2 : index
    %c0_132 = arith.constant 0 : index
    %317 = vector.load %arg9[%c2_131, %c0_132] : memref<6x96xf32, #tpu.memory_space<vmem>>, vector<1x96xf32>
    %318 = vector.broadcast %317 : vector<1x96xf32> to vector<16x96xf32>
    %319 = arith.addf %316, %318 : vector<16x96xf32>
    %320 = vector.extract_strided_slice %319 {offsets = [0, 0], sizes = [16, 32], strides = [1, 1]} : vector<16x96xf32> to vector<16x32xf32>
    %321 = vector.extract_strided_slice %319 {offsets = [0, 32], sizes = [16, 32], strides = [1, 1]} : vector<16x96xf32> to vector<16x32xf32>
    %322 = vector.extract_strided_slice %319 {offsets = [0, 64], sizes = [16, 32], strides = [1, 1]} : vector<16x96xf32> to vector<16x32xf32>
    %c2_133 = arith.constant 2 : index
    %c0_134 = arith.constant 0 : index
    %c0_135 = arith.constant 0 : index
    %323 = vector.load %arg6[%c2_133, %c0_134, %c0_135] : memref<7x32x32xbf16, #tpu.memory_space<vmem>>, vector<1x32x32xbf16>
    %324 = vector.shape_cast %323 : vector<1x32x32xbf16> to vector<32x32xbf16>
    %c48 = arith.constant 48 : index
    %c0_136 = arith.constant 0 : index
    %325 = vector.load %arg4[%c48, %c0_136] : memref<67x32xf32, #tpu.memory_space<vmem>>, vector<1x32xf32>
    %326 = tpu.concatenate %321, %321, %321, %321 in 0 : vector<16x32xf32>, vector<16x32xf32>, vector<16x32xf32>, vector<16x32xf32> -> vector<64x32xf32>
    %327 = arith.mulf %326, %72 : vector<64x32xf32>
    %328 = tpu.concatenate %322, %322, %322, %322 in 0 : vector<16x32xf32>, vector<16x32xf32>, vector<16x32xf32>, vector<16x32xf32> -> vector<64x32xf32>
    %329 = arith.mulf %328, %72 : vector<64x32xf32>
    %cst_137 = arith.constant 0.353553385 : f32
    %330 = vector.broadcast %cst_137 : f32 to vector<16x32xf32>
    %331 = arith.mulf %320, %330 : vector<16x32xf32>
    %332 = arith.truncf %331 : vector<16x32xf32> to vector<16x32xbf16>
    %333 = arith.truncf %327 : vector<64x32xf32> to vector<64x32xbf16>
    %cst_138 = arith.constant dense<0.000000e+00> : vector<16x64xf32>
    %334 = tpu.matmul %332, %333, %cst_138 {dimension_numbers = #tpu.dot_dimension_numbers<[1], [1], [0], [0], [0, 0, 1, 0], [], []>} : vector<16x32xbf16>, vector<64x32xbf16>, vector<16x64xf32> -> vector<16x64xf32>
    %335 = arith.addf %334, %74 : vector<16x64xf32>
    %cst_139 = arith.constant dense<0xFF800000> : vector<16xf32>
    %336 = vector.multi_reduction <maximumf>, %335, %cst_139 [1] : vector<16x64xf32> to vector<16xf32>
    %337 = vector.shape_cast %336 : vector<16xf32> to vector<16x1xf32>
    %338 = vector.broadcast %337 : vector<16x1xf32> to vector<16x64xf32>
    %339 = arith.subf %335, %338 : vector<16x64xf32>
    %340 = math.exp %339 : vector<16x64xf32>
    %341 = tpu.concatenate %329, %72 in 1 : vector<64x32xf32>, vector<64x32xf32> -> vector<64x64xf32>
    %342 = arith.truncf %340 : vector<16x64xf32> to vector<16x64xbf16>
    %343 = arith.truncf %341 : vector<64x64xf32> to vector<64x64xbf16>
    %cst_140 = arith.constant dense<0.000000e+00> : vector<16x64xf32>
    %344 = tpu.matmul %342, %343, %cst_140 {dimension_numbers = #tpu.dot_dimension_numbers<[1], [0], [0], [1], [0, 0, 1, 1], [], []>} : vector<16x64xbf16>, vector<64x64xbf16>, vector<16x64xf32> -> vector<16x64xf32>
    %345 = vector.extract_strided_slice %344 {offsets = [0, 0], sizes = [16, 32], strides = [1, 1]} : vector<16x64xf32> to vector<16x32xf32>
    %346 = vector.extract_strided_slice %344 {offsets = [0, 32], sizes = [16, 32], strides = [1, 1]} : vector<16x64xf32> to vector<16x32xf32>
    %cst_141 = arith.constant 1.000000e-30 : f32
    %347 = vector.broadcast %cst_141 : f32 to vector<16x32xf32>
    %348 = arith.maximumf %346, %347 : vector<16x32xf32>
    %349 = arith.divf %345, %348 : vector<16x32xf32>
    %350 = arith.truncf %349 : vector<16x32xf32> to vector<16x32xbf16>
    %cst_142 = arith.constant dense<0.000000e+00> : vector<16x32xf32>
    %351 = tpu.matmul %350, %324, %cst_142 {dimension_numbers = #tpu.dot_dimension_numbers<[1], [0], [0], [1], [0, 0, 1, 1], [], []>} : vector<16x32xbf16>, vector<32x32xbf16>, vector<16x32xf32> -> vector<16x32xf32>
    %352 = vector.broadcast %325 : vector<1x32xf32> to vector<16x32xf32>
    %353 = arith.addf %351, %352 : vector<16x32xf32>
    %354 = arith.addf %35, %353 : vector<16x32xf32>
    %c49 = arith.constant 49 : index
    %c0_143 = arith.constant 0 : index
    %355 = vector.load %arg4[%c49, %c0_143] : memref<67x32xf32, #tpu.memory_space<vmem>>, vector<1x32xf32>
    %c50 = arith.constant 50 : index
    %c0_144 = arith.constant 0 : index
    %356 = vector.load %arg4[%c50, %c0_144] : memref<67x32xf32, #tpu.memory_space<vmem>>, vector<1x32xf32>
    %cst_145 = arith.constant dense<0.000000e+00> : vector<16xf32>
    %357 = vector.multi_reduction <add>, %354, %cst_145 [1] : vector<16x32xf32> to vector<16xf32>
    %358 = vector.shape_cast %357 : vector<16xf32> to vector<16x1xf32>
    %cst_146 = arith.constant 3.200000e+01 : f32
    %359 = vector.broadcast %cst_146 : f32 to vector<16x1xf32>
    %360 = arith.divf %358, %359 : vector<16x1xf32>
    %361 = vector.broadcast %360 : vector<16x1xf32> to vector<16x32xf32>
    %362 = arith.subf %354, %361 : vector<16x32xf32>
    %363 = arith.mulf %362, %362 : vector<16x32xf32>
    %cst_147 = arith.constant dense<0.000000e+00> : vector<16xf32>
    %364 = vector.multi_reduction <add>, %363, %cst_147 [1] : vector<16x32xf32> to vector<16xf32>
    %365 = vector.shape_cast %364 : vector<16xf32> to vector<16x1xf32>
    %cst_148 = arith.constant 3.200000e+01 : f32
    %366 = vector.broadcast %cst_148 : f32 to vector<16x1xf32>
    %367 = arith.divf %365, %366 : vector<16x1xf32>
    %368 = vector.broadcast %360 : vector<16x1xf32> to vector<16x32xf32>
    %369 = arith.subf %354, %368 : vector<16x32xf32>
    %cst_149 = arith.constant 9.99999996E-13 : f32
    %370 = vector.broadcast %cst_149 : f32 to vector<16x1xf32>
    %371 = arith.addf %367, %370 : vector<16x1xf32>
    %372 = math.rsqrt %371 : vector<16x1xf32>
    %373 = vector.broadcast %372 : vector<16x1xf32> to vector<16x32xf32>
    %374 = arith.mulf %369, %373 : vector<16x32xf32>
    %375 = vector.broadcast %355 : vector<1x32xf32> to vector<16x32xf32>
    %376 = arith.mulf %374, %375 : vector<16x32xf32>
    %377 = vector.broadcast %356 : vector<1x32xf32> to vector<16x32xf32>
    %378 = arith.addf %376, %377 : vector<16x32xf32>
    %c4 = arith.constant 4 : index
    %c0_150 = arith.constant 0 : index
    %c0_151 = arith.constant 0 : index
    %379 = vector.load %arg5[%c4, %c0_150, %c0_151] : memref<6x32x96xbf16, #tpu.memory_space<vmem>>, vector<1x32x96xbf16>
    %380 = vector.shape_cast %379 : vector<1x32x96xbf16> to vector<32x96xbf16>
    %c4_152 = arith.constant 4 : index
    %c0_153 = arith.constant 0 : index
    %381 = vector.load %arg9[%c4_152, %c0_153] : memref<6x96xf32, #tpu.memory_space<vmem>>, vector<1x96xf32>
    %382 = vector.extract_strided_slice %380 {offsets = [0, 0], sizes = [32, 32], strides = [1, 1]} : vector<32x96xbf16> to vector<32x32xbf16>
    %383 = arith.truncf %378 : vector<16x32xf32> to vector<16x32xbf16>
    %cst_154 = arith.constant dense<0.000000e+00> : vector<16x32xf32>
    %384 = tpu.matmul %383, %382, %cst_154 {dimension_numbers = #tpu.dot_dimension_numbers<[1], [0], [0], [1], [0, 0, 1, 1], [], []>} : vector<16x32xbf16>, vector<32x32xbf16>, vector<16x32xf32> -> vector<16x32xf32>
    %385 = vector.extract_strided_slice %381 {offsets = [0, 0], sizes = [1, 32], strides = [1, 1]} : vector<1x96xf32> to vector<1x32xf32>
    %386 = vector.broadcast %385 : vector<1x32xf32> to vector<16x32xf32>
    %387 = arith.addf %384, %386 : vector<16x32xf32>
    %388 = vector.extract_strided_slice %380 {offsets = [0, 32], sizes = [32, 64], strides = [1, 1]} : vector<32x96xbf16> to vector<32x64xbf16>
    %389 = arith.truncf %312 : vector<16x32xf32> to vector<16x32xbf16>
    %cst_155 = arith.constant dense<0.000000e+00> : vector<16x64xf32>
    %390 = tpu.matmul %389, %388, %cst_155 {dimension_numbers = #tpu.dot_dimension_numbers<[1], [0], [0], [1], [0, 0, 1, 1], [], []>} : vector<16x32xbf16>, vector<32x64xbf16>, vector<16x64xf32> -> vector<16x64xf32>
    %391 = vector.extract_strided_slice %381 {offsets = [0, 32], sizes = [1, 64], strides = [1, 1]} : vector<1x96xf32> to vector<1x64xf32>
    %392 = vector.broadcast %391 : vector<1x64xf32> to vector<16x64xf32>
    %393 = arith.addf %390, %392 : vector<16x64xf32>
    %394 = vector.extract_strided_slice %393 {offsets = [0, 0], sizes = [16, 32], strides = [1, 1]} : vector<16x64xf32> to vector<16x32xf32>
    %395 = vector.extract_strided_slice %393 {offsets = [0, 32], sizes = [16, 32], strides = [1, 1]} : vector<16x64xf32> to vector<16x32xf32>
    %c4_156 = arith.constant 4 : index
    %c0_157 = arith.constant 0 : index
    %c0_158 = arith.constant 0 : index
    %396 = vector.load %arg6[%c4_156, %c0_157, %c0_158] : memref<7x32x32xbf16, #tpu.memory_space<vmem>>, vector<1x32x32xbf16>
    %397 = vector.shape_cast %396 : vector<1x32x32xbf16> to vector<32x32xbf16>
    %c51 = arith.constant 51 : index
    %c0_159 = arith.constant 0 : index
    %398 = vector.load %arg4[%c51, %c0_159] : memref<67x32xf32, #tpu.memory_space<vmem>>, vector<1x32xf32>
    %399 = tpu.concatenate %394, %394, %394, %394 in 0 : vector<16x32xf32>, vector<16x32xf32>, vector<16x32xf32>, vector<16x32xf32> -> vector<64x32xf32>
    %400 = arith.mulf %399, %73 : vector<64x32xf32>
    %401 = tpu.concatenate %395, %395, %395, %395 in 0 : vector<16x32xf32>, vector<16x32xf32>, vector<16x32xf32>, vector<16x32xf32> -> vector<64x32xf32>
    %402 = arith.mulf %401, %73 : vector<64x32xf32>
    %cst_160 = arith.constant 0.353553385 : f32
    %403 = vector.broadcast %cst_160 : f32 to vector<16x32xf32>
    %404 = arith.mulf %387, %403 : vector<16x32xf32>
    %405 = arith.truncf %404 : vector<16x32xf32> to vector<16x32xbf16>
    %406 = arith.truncf %400 : vector<64x32xf32> to vector<64x32xbf16>
    %cst_161 = arith.constant dense<0.000000e+00> : vector<16x64xf32>
    %407 = tpu.matmul %405, %406, %cst_161 {dimension_numbers = #tpu.dot_dimension_numbers<[1], [1], [0], [0], [0, 0, 1, 0], [], []>} : vector<16x32xbf16>, vector<64x32xbf16>, vector<16x64xf32> -> vector<16x64xf32>
    %408 = arith.addf %407, %76 : vector<16x64xf32>
    %cst_162 = arith.constant dense<0xFF800000> : vector<16xf32>
    %409 = vector.multi_reduction <maximumf>, %408, %cst_162 [1] : vector<16x64xf32> to vector<16xf32>
    %410 = vector.shape_cast %409 : vector<16xf32> to vector<16x1xf32>
    %411 = vector.broadcast %410 : vector<16x1xf32> to vector<16x64xf32>
    %412 = arith.subf %408, %411 : vector<16x64xf32>
    %413 = math.exp %412 : vector<16x64xf32>
    %414 = tpu.concatenate %402, %73 in 1 : vector<64x32xf32>, vector<64x32xf32> -> vector<64x64xf32>
    %415 = arith.truncf %413 : vector<16x64xf32> to vector<16x64xbf16>
    %416 = arith.truncf %414 : vector<64x64xf32> to vector<64x64xbf16>
    %cst_163 = arith.constant dense<0.000000e+00> : vector<16x64xf32>
    %417 = tpu.matmul %415, %416, %cst_163 {dimension_numbers = #tpu.dot_dimension_numbers<[1], [0], [0], [1], [0, 0, 1, 1], [], []>} : vector<16x64xbf16>, vector<64x64xbf16>, vector<16x64xf32> -> vector<16x64xf32>
    %418 = vector.extract_strided_slice %417 {offsets = [0, 0], sizes = [16, 32], strides = [1, 1]} : vector<16x64xf32> to vector<16x32xf32>
    %419 = vector.extract_strided_slice %417 {offsets = [0, 32], sizes = [16, 32], strides = [1, 1]} : vector<16x64xf32> to vector<16x32xf32>
    %cst_164 = arith.constant 1.000000e-30 : f32
    %420 = vector.broadcast %cst_164 : f32 to vector<16x32xf32>
    %421 = arith.maximumf %419, %420 : vector<16x32xf32>
    %422 = arith.divf %418, %421 : vector<16x32xf32>
    %423 = arith.truncf %422 : vector<16x32xf32> to vector<16x32xbf16>
    %cst_165 = arith.constant dense<0.000000e+00> : vector<16x32xf32>
    %424 = tpu.matmul %423, %397, %cst_165 {dimension_numbers = #tpu.dot_dimension_numbers<[1], [0], [0], [1], [0, 0, 1, 1], [], []>} : vector<16x32xbf16>, vector<32x32xbf16>, vector<16x32xf32> -> vector<16x32xf32>
    %425 = vector.broadcast %398 : vector<1x32xf32> to vector<16x32xf32>
    %426 = arith.addf %424, %425 : vector<16x32xf32>
    %427 = arith.addf %378, %426 : vector<16x32xf32>
    %c52 = arith.constant 52 : index
    %c0_166 = arith.constant 0 : index
    %428 = vector.load %arg4[%c52, %c0_166] : memref<67x32xf32, #tpu.memory_space<vmem>>, vector<1x32xf32>
    %c53 = arith.constant 53 : index
    %c0_167 = arith.constant 0 : index
    %429 = vector.load %arg4[%c53, %c0_167] : memref<67x32xf32, #tpu.memory_space<vmem>>, vector<1x32xf32>
    %cst_168 = arith.constant dense<0.000000e+00> : vector<16xf32>
    %430 = vector.multi_reduction <add>, %427, %cst_168 [1] : vector<16x32xf32> to vector<16xf32>
    %431 = vector.shape_cast %430 : vector<16xf32> to vector<16x1xf32>
    %cst_169 = arith.constant 3.200000e+01 : f32
    %432 = vector.broadcast %cst_169 : f32 to vector<16x1xf32>
    %433 = arith.divf %431, %432 : vector<16x1xf32>
    %434 = vector.broadcast %433 : vector<16x1xf32> to vector<16x32xf32>
    %435 = arith.subf %427, %434 : vector<16x32xf32>
    %436 = arith.mulf %435, %435 : vector<16x32xf32>
    %cst_170 = arith.constant dense<0.000000e+00> : vector<16xf32>
    %437 = vector.multi_reduction <add>, %436, %cst_170 [1] : vector<16x32xf32> to vector<16xf32>
    %438 = vector.shape_cast %437 : vector<16xf32> to vector<16x1xf32>
    %cst_171 = arith.constant 3.200000e+01 : f32
    %439 = vector.broadcast %cst_171 : f32 to vector<16x1xf32>
    %440 = arith.divf %438, %439 : vector<16x1xf32>
    %441 = vector.broadcast %433 : vector<16x1xf32> to vector<16x32xf32>
    %442 = arith.subf %427, %441 : vector<16x32xf32>
    %cst_172 = arith.constant 9.99999996E-13 : f32
    %443 = vector.broadcast %cst_172 : f32 to vector<16x1xf32>
    %444 = arith.addf %440, %443 : vector<16x1xf32>
    %445 = math.rsqrt %444 : vector<16x1xf32>
    %446 = vector.broadcast %445 : vector<16x1xf32> to vector<16x32xf32>
    %447 = arith.mulf %442, %446 : vector<16x32xf32>
    %448 = vector.broadcast %428 : vector<1x32xf32> to vector<16x32xf32>
    %449 = arith.mulf %447, %448 : vector<16x32xf32>
    %450 = vector.broadcast %429 : vector<1x32xf32> to vector<16x32xf32>
    %451 = arith.addf %449, %450 : vector<16x32xf32>
    %c2_173 = arith.constant 2 : index
    %c0_174 = arith.constant 0 : index
    %c0_175 = arith.constant 0 : index
    %452 = vector.load %arg7[%c2_173, %c0_174, %c0_175] : memref<4x32x64xbf16, #tpu.memory_space<vmem>>, vector<1x32x64xbf16>
    %453 = vector.shape_cast %452 : vector<1x32x64xbf16> to vector<32x64xbf16>
    %c2_176 = arith.constant 2 : index
    %c0_177 = arith.constant 0 : index
    %454 = vector.load %arg10[%c2_176, %c0_177] : memref<4x64xf32, #tpu.memory_space<vmem>>, vector<1x64xf32>
    %c2_178 = arith.constant 2 : index
    %c0_179 = arith.constant 0 : index
    %c0_180 = arith.constant 0 : index
    %455 = vector.load %arg8[%c2_178, %c0_179, %c0_180] : memref<4x64x32xbf16, #tpu.memory_space<vmem>>, vector<1x64x32xbf16>
    %456 = vector.shape_cast %455 : vector<1x64x32xbf16> to vector<64x32xbf16>
    %c54 = arith.constant 54 : index
    %c0_181 = arith.constant 0 : index
    %457 = vector.load %arg4[%c54, %c0_181] : memref<67x32xf32, #tpu.memory_space<vmem>>, vector<1x32xf32>
    %458 = arith.truncf %451 : vector<16x32xf32> to vector<16x32xbf16>
    %cst_182 = arith.constant dense<0.000000e+00> : vector<16x64xf32>
    %459 = tpu.matmul %458, %453, %cst_182 {dimension_numbers = #tpu.dot_dimension_numbers<[1], [0], [0], [1], [0, 0, 1, 1], [], []>} : vector<16x32xbf16>, vector<32x64xbf16>, vector<16x64xf32> -> vector<16x64xf32>
    %460 = vector.broadcast %454 : vector<1x64xf32> to vector<16x64xf32>
    %461 = arith.addf %459, %460 : vector<16x64xf32>
    %cst_183 = arith.constant 5.000000e-01 : f32
    %462 = vector.broadcast %cst_183 : f32 to vector<16x64xf32>
    %463 = arith.mulf %462, %461 : vector<16x64xf32>
    %cst_184 = arith.constant 4.471500e-02 : f32
    %464 = vector.broadcast %cst_184 : f32 to vector<16x64xf32>
    %465 = arith.mulf %464, %461 : vector<16x64xf32>
    %466 = arith.mulf %465, %461 : vector<16x64xf32>
    %467 = arith.mulf %466, %461 : vector<16x64xf32>
    %468 = arith.addf %461, %467 : vector<16x64xf32>
    %cst_185 = arith.constant 0.797884583 : f32
    %469 = vector.broadcast %cst_185 : f32 to vector<16x64xf32>
    %470 = arith.mulf %469, %468 : vector<16x64xf32>
    %471 = math.tanh %470 : vector<16x64xf32>
    %cst_186 = arith.constant 1.000000e+00 : f32
    %472 = vector.broadcast %cst_186 : f32 to vector<16x64xf32>
    %473 = arith.addf %472, %471 : vector<16x64xf32>
    %474 = arith.mulf %463, %473 : vector<16x64xf32>
    %475 = arith.truncf %474 : vector<16x64xf32> to vector<16x64xbf16>
    %cst_187 = arith.constant dense<0.000000e+00> : vector<16x32xf32>
    %476 = tpu.matmul %475, %456, %cst_187 {dimension_numbers = #tpu.dot_dimension_numbers<[1], [0], [0], [1], [0, 0, 1, 1], [], []>} : vector<16x64xbf16>, vector<64x32xbf16>, vector<16x32xf32> -> vector<16x32xf32>
    %477 = vector.broadcast %457 : vector<1x32xf32> to vector<16x32xf32>
    %478 = arith.addf %476, %477 : vector<16x32xf32>
    %479 = arith.addf %451, %478 : vector<16x32xf32>
    %c55 = arith.constant 55 : index
    %c0_188 = arith.constant 0 : index
    %480 = vector.load %arg4[%c55, %c0_188] : memref<67x32xf32, #tpu.memory_space<vmem>>, vector<1x32xf32>
    %c56 = arith.constant 56 : index
    %c0_189 = arith.constant 0 : index
    %481 = vector.load %arg4[%c56, %c0_189] : memref<67x32xf32, #tpu.memory_space<vmem>>, vector<1x32xf32>
    %cst_190 = arith.constant dense<0.000000e+00> : vector<16xf32>
    %482 = vector.multi_reduction <add>, %479, %cst_190 [1] : vector<16x32xf32> to vector<16xf32>
    %483 = vector.shape_cast %482 : vector<16xf32> to vector<16x1xf32>
    %cst_191 = arith.constant 3.200000e+01 : f32
    %484 = vector.broadcast %cst_191 : f32 to vector<16x1xf32>
    %485 = arith.divf %483, %484 : vector<16x1xf32>
    %486 = vector.broadcast %485 : vector<16x1xf32> to vector<16x32xf32>
    %487 = arith.subf %479, %486 : vector<16x32xf32>
    %488 = arith.mulf %487, %487 : vector<16x32xf32>
    %cst_192 = arith.constant dense<0.000000e+00> : vector<16xf32>
    %489 = vector.multi_reduction <add>, %488, %cst_192 [1] : vector<16x32xf32> to vector<16xf32>
    %490 = vector.shape_cast %489 : vector<16xf32> to vector<16x1xf32>
    %cst_193 = arith.constant 3.200000e+01 : f32
    %491 = vector.broadcast %cst_193 : f32 to vector<16x1xf32>
    %492 = arith.divf %490, %491 : vector<16x1xf32>
    %493 = vector.broadcast %485 : vector<16x1xf32> to vector<16x32xf32>
    %494 = arith.subf %479, %493 : vector<16x32xf32>
    %cst_194 = arith.constant 9.99999996E-13 : f32
    %495 = vector.broadcast %cst_194 : f32 to vector<16x1xf32>
    %496 = arith.addf %492, %495 : vector<16x1xf32>
    %497 = math.rsqrt %496 : vector<16x1xf32>
    %498 = vector.broadcast %497 : vector<16x1xf32> to vector<16x32xf32>
    %499 = arith.mulf %494, %498 : vector<16x32xf32>
    %500 = vector.broadcast %480 : vector<1x32xf32> to vector<16x32xf32>
    %501 = arith.mulf %499, %500 : vector<16x32xf32>
    %502 = vector.broadcast %481 : vector<1x32xf32> to vector<16x32xf32>
    %503 = arith.addf %501, %502 : vector<16x32xf32>
    %c3 = arith.constant 3 : index
    %c0_195 = arith.constant 0 : index
    %c0_196 = arith.constant 0 : index
    %504 = vector.load %arg5[%c3, %c0_195, %c0_196] : memref<6x32x96xbf16, #tpu.memory_space<vmem>>, vector<1x32x96xbf16>
    %505 = vector.shape_cast %504 : vector<1x32x96xbf16> to vector<32x96xbf16>
    %506 = arith.truncf %503 : vector<16x32xf32> to vector<16x32xbf16>
    %cst_197 = arith.constant dense<0.000000e+00> : vector<16x96xf32>
    %507 = tpu.matmul %506, %505, %cst_197 {dimension_numbers = #tpu.dot_dimension_numbers<[1], [0], [0], [1], [0, 0, 1, 1], [], []>} : vector<16x32xbf16>, vector<32x96xbf16>, vector<16x96xf32> -> vector<16x96xf32>
    %c3_198 = arith.constant 3 : index
    %c0_199 = arith.constant 0 : index
    %508 = vector.load %arg9[%c3_198, %c0_199] : memref<6x96xf32, #tpu.memory_space<vmem>>, vector<1x96xf32>
    %509 = vector.broadcast %508 : vector<1x96xf32> to vector<16x96xf32>
    %510 = arith.addf %507, %509 : vector<16x96xf32>
    %511 = vector.extract_strided_slice %510 {offsets = [0, 0], sizes = [16, 32], strides = [1, 1]} : vector<16x96xf32> to vector<16x32xf32>
    %512 = vector.extract_strided_slice %510 {offsets = [0, 32], sizes = [16, 32], strides = [1, 1]} : vector<16x96xf32> to vector<16x32xf32>
    %513 = vector.extract_strided_slice %510 {offsets = [0, 64], sizes = [16, 32], strides = [1, 1]} : vector<16x96xf32> to vector<16x32xf32>
    %c3_200 = arith.constant 3 : index
    %c0_201 = arith.constant 0 : index
    %c0_202 = arith.constant 0 : index
    %514 = vector.load %arg6[%c3_200, %c0_201, %c0_202] : memref<7x32x32xbf16, #tpu.memory_space<vmem>>, vector<1x32x32xbf16>
    %515 = vector.shape_cast %514 : vector<1x32x32xbf16> to vector<32x32xbf16>
    %c57 = arith.constant 57 : index
    %c0_203 = arith.constant 0 : index
    %516 = vector.load %arg4[%c57, %c0_203] : memref<67x32xf32, #tpu.memory_space<vmem>>, vector<1x32xf32>
    %517 = tpu.concatenate %512, %512, %512, %512 in 0 : vector<16x32xf32>, vector<16x32xf32>, vector<16x32xf32>, vector<16x32xf32> -> vector<64x32xf32>
    %518 = arith.mulf %517, %72 : vector<64x32xf32>
    %519 = tpu.concatenate %513, %513, %513, %513 in 0 : vector<16x32xf32>, vector<16x32xf32>, vector<16x32xf32>, vector<16x32xf32> -> vector<64x32xf32>
    %520 = arith.mulf %519, %72 : vector<64x32xf32>
    %cst_204 = arith.constant 0.353553385 : f32
    %521 = vector.broadcast %cst_204 : f32 to vector<16x32xf32>
    %522 = arith.mulf %511, %521 : vector<16x32xf32>
    %523 = arith.truncf %522 : vector<16x32xf32> to vector<16x32xbf16>
    %524 = arith.truncf %518 : vector<64x32xf32> to vector<64x32xbf16>
    %cst_205 = arith.constant dense<0.000000e+00> : vector<16x64xf32>
    %525 = tpu.matmul %523, %524, %cst_205 {dimension_numbers = #tpu.dot_dimension_numbers<[1], [1], [0], [0], [0, 0, 1, 0], [], []>} : vector<16x32xbf16>, vector<64x32xbf16>, vector<16x64xf32> -> vector<16x64xf32>
    %526 = arith.addf %525, %74 : vector<16x64xf32>
    %cst_206 = arith.constant dense<0xFF800000> : vector<16xf32>
    %527 = vector.multi_reduction <maximumf>, %526, %cst_206 [1] : vector<16x64xf32> to vector<16xf32>
    %528 = vector.shape_cast %527 : vector<16xf32> to vector<16x1xf32>
    %529 = vector.broadcast %528 : vector<16x1xf32> to vector<16x64xf32>
    %530 = arith.subf %526, %529 : vector<16x64xf32>
    %531 = math.exp %530 : vector<16x64xf32>
    %532 = tpu.concatenate %520, %72 in 1 : vector<64x32xf32>, vector<64x32xf32> -> vector<64x64xf32>
    %533 = arith.truncf %531 : vector<16x64xf32> to vector<16x64xbf16>
    %534 = arith.truncf %532 : vector<64x64xf32> to vector<64x64xbf16>
    %cst_207 = arith.constant dense<0.000000e+00> : vector<16x64xf32>
    %535 = tpu.matmul %533, %534, %cst_207 {dimension_numbers = #tpu.dot_dimension_numbers<[1], [0], [0], [1], [0, 0, 1, 1], [], []>} : vector<16x64xbf16>, vector<64x64xbf16>, vector<16x64xf32> -> vector<16x64xf32>
    %536 = vector.extract_strided_slice %535 {offsets = [0, 0], sizes = [16, 32], strides = [1, 1]} : vector<16x64xf32> to vector<16x32xf32>
    %537 = vector.extract_strided_slice %535 {offsets = [0, 32], sizes = [16, 32], strides = [1, 1]} : vector<16x64xf32> to vector<16x32xf32>
    %cst_208 = arith.constant 1.000000e-30 : f32
    %538 = vector.broadcast %cst_208 : f32 to vector<16x32xf32>
    %539 = arith.maximumf %537, %538 : vector<16x32xf32>
    %540 = arith.divf %536, %539 : vector<16x32xf32>
    %541 = arith.truncf %540 : vector<16x32xf32> to vector<16x32xbf16>
    %cst_209 = arith.constant dense<0.000000e+00> : vector<16x32xf32>
    %542 = tpu.matmul %541, %515, %cst_209 {dimension_numbers = #tpu.dot_dimension_numbers<[1], [0], [0], [1], [0, 0, 1, 1], [], []>} : vector<16x32xbf16>, vector<32x32xbf16>, vector<16x32xf32> -> vector<16x32xf32>
    %543 = vector.broadcast %516 : vector<1x32xf32> to vector<16x32xf32>
    %544 = arith.addf %542, %543 : vector<16x32xf32>
    %545 = arith.addf %503, %544 : vector<16x32xf32>
    %c58 = arith.constant 58 : index
    %c0_210 = arith.constant 0 : index
    %546 = vector.load %arg4[%c58, %c0_210] : memref<67x32xf32, #tpu.memory_space<vmem>>, vector<1x32xf32>
    %c59 = arith.constant 59 : index
    %c0_211 = arith.constant 0 : index
    %547 = vector.load %arg4[%c59, %c0_211] : memref<67x32xf32, #tpu.memory_space<vmem>>, vector<1x32xf32>
    %cst_212 = arith.constant dense<0.000000e+00> : vector<16xf32>
    %548 = vector.multi_reduction <add>, %545, %cst_212 [1] : vector<16x32xf32> to vector<16xf32>
    %549 = vector.shape_cast %548 : vector<16xf32> to vector<16x1xf32>
    %cst_213 = arith.constant 3.200000e+01 : f32
    %550 = vector.broadcast %cst_213 : f32 to vector<16x1xf32>
    %551 = arith.divf %549, %550 : vector<16x1xf32>
    %552 = vector.broadcast %551 : vector<16x1xf32> to vector<16x32xf32>
    %553 = arith.subf %545, %552 : vector<16x32xf32>
    %554 = arith.mulf %553, %553 : vector<16x32xf32>
    %cst_214 = arith.constant dense<0.000000e+00> : vector<16xf32>
    %555 = vector.multi_reduction <add>, %554, %cst_214 [1] : vector<16x32xf32> to vector<16xf32>
    %556 = vector.shape_cast %555 : vector<16xf32> to vector<16x1xf32>
    %cst_215 = arith.constant 3.200000e+01 : f32
    %557 = vector.broadcast %cst_215 : f32 to vector<16x1xf32>
    %558 = arith.divf %556, %557 : vector<16x1xf32>
    %559 = vector.broadcast %551 : vector<16x1xf32> to vector<16x32xf32>
    %560 = arith.subf %545, %559 : vector<16x32xf32>
    %cst_216 = arith.constant 9.99999996E-13 : f32
    %561 = vector.broadcast %cst_216 : f32 to vector<16x1xf32>
    %562 = arith.addf %558, %561 : vector<16x1xf32>
    %563 = math.rsqrt %562 : vector<16x1xf32>
    %564 = vector.broadcast %563 : vector<16x1xf32> to vector<16x32xf32>
    %565 = arith.mulf %560, %564 : vector<16x32xf32>
    %566 = vector.broadcast %546 : vector<1x32xf32> to vector<16x32xf32>
    %567 = arith.mulf %565, %566 : vector<16x32xf32>
    %568 = vector.broadcast %547 : vector<1x32xf32> to vector<16x32xf32>
    %569 = arith.addf %567, %568 : vector<16x32xf32>
    %c5 = arith.constant 5 : index
    %c0_217 = arith.constant 0 : index
    %c0_218 = arith.constant 0 : index
    %570 = vector.load %arg5[%c5, %c0_217, %c0_218] : memref<6x32x96xbf16, #tpu.memory_space<vmem>>, vector<1x32x96xbf16>
    %571 = vector.shape_cast %570 : vector<1x32x96xbf16> to vector<32x96xbf16>
    %c5_219 = arith.constant 5 : index
    %c0_220 = arith.constant 0 : index
    %572 = vector.load %arg9[%c5_219, %c0_220] : memref<6x96xf32, #tpu.memory_space<vmem>>, vector<1x96xf32>
    %573 = vector.extract_strided_slice %571 {offsets = [0, 0], sizes = [32, 32], strides = [1, 1]} : vector<32x96xbf16> to vector<32x32xbf16>
    %574 = arith.truncf %569 : vector<16x32xf32> to vector<16x32xbf16>
    %cst_221 = arith.constant dense<0.000000e+00> : vector<16x32xf32>
    %575 = tpu.matmul %574, %573, %cst_221 {dimension_numbers = #tpu.dot_dimension_numbers<[1], [0], [0], [1], [0, 0, 1, 1], [], []>} : vector<16x32xbf16>, vector<32x32xbf16>, vector<16x32xf32> -> vector<16x32xf32>
    %576 = vector.extract_strided_slice %572 {offsets = [0, 0], sizes = [1, 32], strides = [1, 1]} : vector<1x96xf32> to vector<1x32xf32>
    %577 = vector.broadcast %576 : vector<1x32xf32> to vector<16x32xf32>
    %578 = arith.addf %575, %577 : vector<16x32xf32>
    %579 = vector.extract_strided_slice %571 {offsets = [0, 32], sizes = [32, 64], strides = [1, 1]} : vector<32x96xbf16> to vector<32x64xbf16>
    %580 = arith.truncf %312 : vector<16x32xf32> to vector<16x32xbf16>
    %cst_222 = arith.constant dense<0.000000e+00> : vector<16x64xf32>
    %581 = tpu.matmul %580, %579, %cst_222 {dimension_numbers = #tpu.dot_dimension_numbers<[1], [0], [0], [1], [0, 0, 1, 1], [], []>} : vector<16x32xbf16>, vector<32x64xbf16>, vector<16x64xf32> -> vector<16x64xf32>
    %582 = vector.extract_strided_slice %572 {offsets = [0, 32], sizes = [1, 64], strides = [1, 1]} : vector<1x96xf32> to vector<1x64xf32>
    %583 = vector.broadcast %582 : vector<1x64xf32> to vector<16x64xf32>
    %584 = arith.addf %581, %583 : vector<16x64xf32>
    %585 = vector.extract_strided_slice %584 {offsets = [0, 0], sizes = [16, 32], strides = [1, 1]} : vector<16x64xf32> to vector<16x32xf32>
    %586 = vector.extract_strided_slice %584 {offsets = [0, 32], sizes = [16, 32], strides = [1, 1]} : vector<16x64xf32> to vector<16x32xf32>
    %c5_223 = arith.constant 5 : index
    %c0_224 = arith.constant 0 : index
    %c0_225 = arith.constant 0 : index
    %587 = vector.load %arg6[%c5_223, %c0_224, %c0_225] : memref<7x32x32xbf16, #tpu.memory_space<vmem>>, vector<1x32x32xbf16>
    %588 = vector.shape_cast %587 : vector<1x32x32xbf16> to vector<32x32xbf16>
    %c60 = arith.constant 60 : index
    %c0_226 = arith.constant 0 : index
    %589 = vector.load %arg4[%c60, %c0_226] : memref<67x32xf32, #tpu.memory_space<vmem>>, vector<1x32xf32>
    %590 = tpu.concatenate %585, %585, %585, %585 in 0 : vector<16x32xf32>, vector<16x32xf32>, vector<16x32xf32>, vector<16x32xf32> -> vector<64x32xf32>
    %591 = arith.mulf %590, %73 : vector<64x32xf32>
    %592 = tpu.concatenate %586, %586, %586, %586 in 0 : vector<16x32xf32>, vector<16x32xf32>, vector<16x32xf32>, vector<16x32xf32> -> vector<64x32xf32>
    %593 = arith.mulf %592, %73 : vector<64x32xf32>
    %cst_227 = arith.constant 0.353553385 : f32
    %594 = vector.broadcast %cst_227 : f32 to vector<16x32xf32>
    %595 = arith.mulf %578, %594 : vector<16x32xf32>
    %596 = arith.truncf %595 : vector<16x32xf32> to vector<16x32xbf16>
    %597 = arith.truncf %591 : vector<64x32xf32> to vector<64x32xbf16>
    %cst_228 = arith.constant dense<0.000000e+00> : vector<16x64xf32>
    %598 = tpu.matmul %596, %597, %cst_228 {dimension_numbers = #tpu.dot_dimension_numbers<[1], [1], [0], [0], [0, 0, 1, 0], [], []>} : vector<16x32xbf16>, vector<64x32xbf16>, vector<16x64xf32> -> vector<16x64xf32>
    %599 = arith.addf %598, %76 : vector<16x64xf32>
    %cst_229 = arith.constant dense<0xFF800000> : vector<16xf32>
    %600 = vector.multi_reduction <maximumf>, %599, %cst_229 [1] : vector<16x64xf32> to vector<16xf32>
    %601 = vector.shape_cast %600 : vector<16xf32> to vector<16x1xf32>
    %602 = vector.broadcast %601 : vector<16x1xf32> to vector<16x64xf32>
    %603 = arith.subf %599, %602 : vector<16x64xf32>
    %604 = math.exp %603 : vector<16x64xf32>
    %605 = tpu.concatenate %593, %73 in 1 : vector<64x32xf32>, vector<64x32xf32> -> vector<64x64xf32>
    %606 = arith.truncf %604 : vector<16x64xf32> to vector<16x64xbf16>
    %607 = arith.truncf %605 : vector<64x64xf32> to vector<64x64xbf16>
    %cst_230 = arith.constant dense<0.000000e+00> : vector<16x64xf32>
    %608 = tpu.matmul %606, %607, %cst_230 {dimension_numbers = #tpu.dot_dimension_numbers<[1], [0], [0], [1], [0, 0, 1, 1], [], []>} : vector<16x64xbf16>, vector<64x64xbf16>, vector<16x64xf32> -> vector<16x64xf32>
    %609 = vector.extract_strided_slice %608 {offsets = [0, 0], sizes = [16, 32], strides = [1, 1]} : vector<16x64xf32> to vector<16x32xf32>
    %610 = vector.extract_strided_slice %608 {offsets = [0, 32], sizes = [16, 32], strides = [1, 1]} : vector<16x64xf32> to vector<16x32xf32>
    %cst_231 = arith.constant 1.000000e-30 : f32
    %611 = vector.broadcast %cst_231 : f32 to vector<16x32xf32>
    %612 = arith.maximumf %610, %611 : vector<16x32xf32>
    %613 = arith.divf %609, %612 : vector<16x32xf32>
    %614 = arith.truncf %613 : vector<16x32xf32> to vector<16x32xbf16>
    %cst_232 = arith.constant dense<0.000000e+00> : vector<16x32xf32>
    %615 = tpu.matmul %614, %588, %cst_232 {dimension_numbers = #tpu.dot_dimension_numbers<[1], [0], [0], [1], [0, 0, 1, 1], [], []>} : vector<16x32xbf16>, vector<32x32xbf16>, vector<16x32xf32> -> vector<16x32xf32>
    %616 = vector.broadcast %589 : vector<1x32xf32> to vector<16x32xf32>
    %617 = arith.addf %615, %616 : vector<16x32xf32>
    %618 = arith.addf %569, %617 : vector<16x32xf32>
    %c61 = arith.constant 61 : index
    %c0_233 = arith.constant 0 : index
    %619 = vector.load %arg4[%c61, %c0_233] : memref<67x32xf32, #tpu.memory_space<vmem>>, vector<1x32xf32>
    %c62 = arith.constant 62 : index
    %c0_234 = arith.constant 0 : index
    %620 = vector.load %arg4[%c62, %c0_234] : memref<67x32xf32, #tpu.memory_space<vmem>>, vector<1x32xf32>
    %cst_235 = arith.constant dense<0.000000e+00> : vector<16xf32>
    %621 = vector.multi_reduction <add>, %618, %cst_235 [1] : vector<16x32xf32> to vector<16xf32>
    %622 = vector.shape_cast %621 : vector<16xf32> to vector<16x1xf32>
    %cst_236 = arith.constant 3.200000e+01 : f32
    %623 = vector.broadcast %cst_236 : f32 to vector<16x1xf32>
    %624 = arith.divf %622, %623 : vector<16x1xf32>
    %625 = vector.broadcast %624 : vector<16x1xf32> to vector<16x32xf32>
    %626 = arith.subf %618, %625 : vector<16x32xf32>
    %627 = arith.mulf %626, %626 : vector<16x32xf32>
    %cst_237 = arith.constant dense<0.000000e+00> : vector<16xf32>
    %628 = vector.multi_reduction <add>, %627, %cst_237 [1] : vector<16x32xf32> to vector<16xf32>
    %629 = vector.shape_cast %628 : vector<16xf32> to vector<16x1xf32>
    %cst_238 = arith.constant 3.200000e+01 : f32
    %630 = vector.broadcast %cst_238 : f32 to vector<16x1xf32>
    %631 = arith.divf %629, %630 : vector<16x1xf32>
    %632 = vector.broadcast %624 : vector<16x1xf32> to vector<16x32xf32>
    %633 = arith.subf %618, %632 : vector<16x32xf32>
    %cst_239 = arith.constant 9.99999996E-13 : f32
    %634 = vector.broadcast %cst_239 : f32 to vector<16x1xf32>
    %635 = arith.addf %631, %634 : vector<16x1xf32>
    %636 = math.rsqrt %635 : vector<16x1xf32>
    %637 = vector.broadcast %636 : vector<16x1xf32> to vector<16x32xf32>
    %638 = arith.mulf %633, %637 : vector<16x32xf32>
    %639 = vector.broadcast %619 : vector<1x32xf32> to vector<16x32xf32>
    %640 = arith.mulf %638, %639 : vector<16x32xf32>
    %641 = vector.broadcast %620 : vector<1x32xf32> to vector<16x32xf32>
    %642 = arith.addf %640, %641 : vector<16x32xf32>
    %c3_240 = arith.constant 3 : index
    %c0_241 = arith.constant 0 : index
    %c0_242 = arith.constant 0 : index
    %643 = vector.load %arg7[%c3_240, %c0_241, %c0_242] : memref<4x32x64xbf16, #tpu.memory_space<vmem>>, vector<1x32x64xbf16>
    %644 = vector.shape_cast %643 : vector<1x32x64xbf16> to vector<32x64xbf16>
    %c3_243 = arith.constant 3 : index
    %c0_244 = arith.constant 0 : index
    %645 = vector.load %arg10[%c3_243, %c0_244] : memref<4x64xf32, #tpu.memory_space<vmem>>, vector<1x64xf32>
    %c3_245 = arith.constant 3 : index
    %c0_246 = arith.constant 0 : index
    %c0_247 = arith.constant 0 : index
    %646 = vector.load %arg8[%c3_245, %c0_246, %c0_247] : memref<4x64x32xbf16, #tpu.memory_space<vmem>>, vector<1x64x32xbf16>
    %647 = vector.shape_cast %646 : vector<1x64x32xbf16> to vector<64x32xbf16>
    %c63 = arith.constant 63 : index
    %c0_248 = arith.constant 0 : index
    %648 = vector.load %arg4[%c63, %c0_248] : memref<67x32xf32, #tpu.memory_space<vmem>>, vector<1x32xf32>
    %649 = arith.truncf %642 : vector<16x32xf32> to vector<16x32xbf16>
    %cst_249 = arith.constant dense<0.000000e+00> : vector<16x64xf32>
    %650 = tpu.matmul %649, %644, %cst_249 {dimension_numbers = #tpu.dot_dimension_numbers<[1], [0], [0], [1], [0, 0, 1, 1], [], []>} : vector<16x32xbf16>, vector<32x64xbf16>, vector<16x64xf32> -> vector<16x64xf32>
    %651 = vector.broadcast %645 : vector<1x64xf32> to vector<16x64xf32>
    %652 = arith.addf %650, %651 : vector<16x64xf32>
    %cst_250 = arith.constant 5.000000e-01 : f32
    %653 = vector.broadcast %cst_250 : f32 to vector<16x64xf32>
    %654 = arith.mulf %653, %652 : vector<16x64xf32>
    %cst_251 = arith.constant 4.471500e-02 : f32
    %655 = vector.broadcast %cst_251 : f32 to vector<16x64xf32>
    %656 = arith.mulf %655, %652 : vector<16x64xf32>
    %657 = arith.mulf %656, %652 : vector<16x64xf32>
    %658 = arith.mulf %657, %652 : vector<16x64xf32>
    %659 = arith.addf %652, %658 : vector<16x64xf32>
    %cst_252 = arith.constant 0.797884583 : f32
    %660 = vector.broadcast %cst_252 : f32 to vector<16x64xf32>
    %661 = arith.mulf %660, %659 : vector<16x64xf32>
    %662 = math.tanh %661 : vector<16x64xf32>
    %cst_253 = arith.constant 1.000000e+00 : f32
    %663 = vector.broadcast %cst_253 : f32 to vector<16x64xf32>
    %664 = arith.addf %663, %662 : vector<16x64xf32>
    %665 = arith.mulf %654, %664 : vector<16x64xf32>
    %666 = arith.truncf %665 : vector<16x64xf32> to vector<16x64xbf16>
    %cst_254 = arith.constant dense<0.000000e+00> : vector<16x32xf32>
    %667 = tpu.matmul %666, %647, %cst_254 {dimension_numbers = #tpu.dot_dimension_numbers<[1], [0], [0], [1], [0, 0, 1, 1], [], []>} : vector<16x64xbf16>, vector<64x32xbf16>, vector<16x32xf32> -> vector<16x32xf32>
    %668 = vector.broadcast %648 : vector<1x32xf32> to vector<16x32xf32>
    %669 = arith.addf %667, %668 : vector<16x32xf32>
    %670 = arith.addf %642, %669 : vector<16x32xf32>
    %c64 = arith.constant 64 : index
    %c0_255 = arith.constant 0 : index
    %671 = vector.load %arg4[%c64, %c0_255] : memref<67x32xf32, #tpu.memory_space<vmem>>, vector<1x32xf32>
    %c65 = arith.constant 65 : index
    %c0_256 = arith.constant 0 : index
    %672 = vector.load %arg4[%c65, %c0_256] : memref<67x32xf32, #tpu.memory_space<vmem>>, vector<1x32xf32>
    %cst_257 = arith.constant dense<0.000000e+00> : vector<16xf32>
    %673 = vector.multi_reduction <add>, %670, %cst_257 [1] : vector<16x32xf32> to vector<16xf32>
    %674 = vector.shape_cast %673 : vector<16xf32> to vector<16x1xf32>
    %cst_258 = arith.constant 3.200000e+01 : f32
    %675 = vector.broadcast %cst_258 : f32 to vector<16x1xf32>
    %676 = arith.divf %674, %675 : vector<16x1xf32>
    %677 = vector.broadcast %676 : vector<16x1xf32> to vector<16x32xf32>
    %678 = arith.subf %670, %677 : vector<16x32xf32>
    %679 = arith.mulf %678, %678 : vector<16x32xf32>
    %cst_259 = arith.constant dense<0.000000e+00> : vector<16xf32>
    %680 = vector.multi_reduction <add>, %679, %cst_259 [1] : vector<16x32xf32> to vector<16xf32>
    %681 = vector.shape_cast %680 : vector<16xf32> to vector<16x1xf32>
    %cst_260 = arith.constant 3.200000e+01 : f32
    %682 = vector.broadcast %cst_260 : f32 to vector<16x1xf32>
    %683 = arith.divf %681, %682 : vector<16x1xf32>
    %684 = vector.broadcast %676 : vector<16x1xf32> to vector<16x32xf32>
    %685 = arith.subf %670, %684 : vector<16x32xf32>
    %cst_261 = arith.constant 9.99999996E-13 : f32
    %686 = vector.broadcast %cst_261 : f32 to vector<16x1xf32>
    %687 = arith.addf %683, %686 : vector<16x1xf32>
    %688 = math.rsqrt %687 : vector<16x1xf32>
    %689 = vector.broadcast %688 : vector<16x1xf32> to vector<16x32xf32>
    %690 = arith.mulf %685, %689 : vector<16x32xf32>
    %691 = vector.broadcast %671 : vector<1x32xf32> to vector<16x32xf32>
    %692 = arith.mulf %690, %691 : vector<16x32xf32>
    %693 = vector.broadcast %672 : vector<1x32xf32> to vector<16x32xf32>
    %694 = arith.addf %692, %693 : vector<16x32xf32>
    %c6 = arith.constant 6 : index
    %c0_262 = arith.constant 0 : index
    %c0_263 = arith.constant 0 : index
    %695 = vector.load %arg6[%c6, %c0_262, %c0_263] : memref<7x32x32xbf16, #tpu.memory_space<vmem>>, vector<1x32x32xbf16>
    %696 = vector.shape_cast %695 : vector<1x32x32xbf16> to vector<32x32xbf16>
    %697 = arith.truncf %694 : vector<16x32xf32> to vector<16x32xbf16>
    %cst_264 = arith.constant dense<0.000000e+00> : vector<16x32xf32>
    %698 = tpu.matmul %697, %696, %cst_264 {dimension_numbers = #tpu.dot_dimension_numbers<[1], [0], [0], [1], [0, 0, 1, 1], [], []>} : vector<16x32xbf16>, vector<32x32xbf16>, vector<16x32xf32> -> vector<16x32xf32>
    %c66 = arith.constant 66 : index
    %c0_265 = arith.constant 0 : index
    %699 = vector.load %arg4[%c66, %c0_265] : memref<67x32xf32, #tpu.memory_space<vmem>>, vector<1x32xf32>
    %700 = vector.broadcast %699 : vector<1x32xf32> to vector<16x32xf32>
    %701 = arith.addf %698, %700 : vector<16x32xf32>
    %c0_266 = arith.constant 0 : index
    %c0_267 = arith.constant 0 : index
    %702 = vector.load %arg16[%c0_266, %c0_267] : memref<16x32xf32, #tpu.memory_space<vmem>>, vector<16x32xf32>
    tpu.vector_store %arg16[%c0_266, %c0_267], %701 {strides = array<i32>} : memref<16x32xf32, #tpu.memory_space<vmem>>, vector<16x32xf32>,
    return
  }
}

</mosaic_0001>

<llo_original>
// kernel: decoder_forward.1
$region0: #{decoder_forward.1}
  #allocation0 [shape = 'u32[]', space=smem, size = 0x4, offset = 0x4, fixed_abs, tag = 'smem constant byte address 0x4 - core index']
  #allocation1 [shape = 'u32[144,128]{1,0:T(1,128)}', space=vmem, size = 0x12000, scoped, tag = 'internal scratch']
  %s0 = inlined_call_operand.vmem [shape: s32[16,1], index: 0, kind: input, shape index: {}]
  %s1 = inlined_call_operand.vmem [shape: s32[16,1], index: 1, kind: input, shape index: {}]
  %s2 = inlined_call_operand.vmem [shape: bf16[50,32], index: 2, kind: input, shape index: {}]
  %s3 = inlined_call_operand.vmem [shape: bf16[50,32], index: 3, kind: input, shape index: {}]
  %s4 = inlined_call_operand.vmem [shape: f32[67,32], index: 4, kind: input, shape index: {}]
  %s5 = inlined_call_operand.vmem [shape: bf16[6,32,96], index: 5, kind: input, shape index: {}]
  %s6 = inlined_call_operand.vmem [shape: bf16[7,32,32], index: 6, kind: input, shape index: {}]
  %s7 = inlined_call_operand.vmem [shape: bf16[4,32,64], index: 7, kind: input, shape index: {}]
  %s8 = inlined_call_operand.vmem [shape: bf16[4,64,32], index: 8, kind: input, shape index: {}]
  %s9 = inlined_call_operand.vmem [shape: f32[6,96], index: 9, kind: input, shape index: {}]
  %s10 = inlined_call_operand.vmem [shape: f32[4,64], index: 10, kind: input, shape index: {}]
  %s11 = inlined_call_operand.vmem [shape: f32[64,32], index: 11, kind: input, shape index: {}, may-alias: {11,12}]
  %s12 = inlined_call_operand.vmem [shape: f32[64,32], index: 12, kind: input, shape index: {}, may-alias: {11,12}]
  %s13 = inlined_call_operand.vmem [shape: f32[16,64], index: 13, kind: input, shape index: {}]
  %s14 = inlined_call_operand.vmem [shape: f32[16,64], index: 14, kind: input, shape index: {}, may-alias: {14,15}]
  %s15 = inlined_call_operand.vmem [shape: f32[16,64], index: 15, kind: input, shape index: {}, may-alias: {14,15}]
  %s16 = inlined_call_operand.hbm [shape: f32[16,32], index: 16, kind: output, shape index: {}]
  %s17 = sld [smem:[#allocation0]]
  $region74: #{decoder_forward.1} parent=0
    _
  %s19 = ssub.s32 1, %s17
  %s20 = scalar_select 0, %s19, %s17
  $region1: #{decoder_forward.1} parent=0
    #allocation2 [shape = 'u8[8192]{0}', space=vmem, size = 0x2000, scoped, tag = 'output window, operand 0, single buffered']
    #allocation3 [shape = 's32[1]{0}', space=sflag, size = 0x4, scoped, tag = 'scoped memory for decoder_forward.1']
    %21 = vsyncpa [#allocation3], 0
    // Predicated region
    $region2: #{decoder_forward.1} parent=1 // pred_check
      _
    $region3: #{decoder_forward.1} parent=1 // pred_check_branch
      %23 = sbr.rel (0) target = $region5
    $region4: #{decoder_forward.1} parent=1 // pred_region
      _
    $region5: #{decoder_forward.1} parent=1 // pred_fallthru
      _
    // Predicated region
    $region6: #{decoder_forward.1} parent=1 // pred_check
      _
    $region7: #{decoder_forward.1} parent=1 // pred_check_branch
      %25 = sbr.rel (0) target = $region9
    $region8: #{decoder_forward.1} parent=1 // pred_region
      _
    $region9: #{decoder_forward.1} parent=1 // pred_fallthru
      _
    // Predicated region
    $region10: #{decoder_forward.1} parent=1 // pred_check
      _
    $region11: #{decoder_forward.1} parent=1 // pred_check_branch
      %27 = sbr.rel (0) target = $region13
    $region12: #{decoder_forward.1} parent=1 // pred_region
      _
    $region13: #{decoder_forward.1} parent=1 // pred_fallthru
      _
    // Predicated region
    $region14: #{decoder_forward.1} parent=1 // pred_check
      _
    $region15: #{decoder_forward.1} parent=1 // pred_check_branch
      %29 = sbr.rel (0) target = $region17
    $region16: #{decoder_forward.1} parent=1 // pred_region
      _
    $region17: #{decoder_forward.1} parent=1 // pred_fallthru
      _
    // Predicated region
    $region18: #{decoder_forward.1} parent=1 // pred_check
      _
    $region19: #{decoder_forward.1} parent=1 // pred_check_branch
      %31 = sbr.rel (0) target = $region21
    $region20: #{decoder_forward.1} parent=1 // pred_region
      _
    $region21: #{decoder_forward.1} parent=1 // pred_fallthru
      _
    // Predicated region
    $region22: #{decoder_forward.1} parent=1 // pred_check
      _
    $region23: #{decoder_forward.1} parent=1 // pred_check_branch
      %33 = sbr.rel (0) target = $region25
    $region24: #{decoder_forward.1} parent=1 // pred_region
      _
    $region25: #{decoder_forward.1} parent=1 // pred_fallthru
      _
    // Predicated region
    $region26: #{decoder_forward.1} parent=1 // pred_check
      _
    $region27: #{decoder_forward.1} parent=1 // pred_check_branch
      %35 = sbr.rel (0) target = $region29
    $region28: #{decoder_forward.1} parent=1 // pred_region
      _
    $region29: #{decoder_forward.1} parent=1 // pred_fallthru
      _
    // Predicated region
    $region30: #{decoder_forward.1} parent=1 // pred_check
      _
    $region31: #{decoder_forward.1} parent=1 // pred_check_branch
      %37 = sbr.rel (0) target = $region33
    $region32: #{decoder_forward.1} parent=1 // pred_region
      _
    $region33: #{decoder_forward.1} parent=1 // pred_fallthru
      _
    // Predicated region
    $region34: #{decoder_forward.1} parent=1 // pred_check
      _
    $region35: #{decoder_forward.1} parent=1 // pred_check_branch
      %39 = sbr.rel (0) target = $region37
    $region36: #{decoder_forward.1} parent=1 // pred_region
      _
    $region37: #{decoder_forward.1} parent=1 // pred_fallthru
      _
    // Predicated region
    $region38: #{decoder_forward.1} parent=1 // pred_check
      _
    $region39: #{decoder_forward.1} parent=1 // pred_check_branch
      %41 = sbr.rel (0) target = $region41
    $region40: #{decoder_forward.1} parent=1 // pred_region
      _
    $region41: #{decoder_forward.1} parent=1 // pred_fallthru
      _
    // Predicated region
    $region42: #{decoder_forward.1} parent=1 // pred_check
      _
    $region43: #{decoder_forward.1} parent=1 // pred_check_branch
      %43 = sbr.rel (0) target = $region45
    $region44: #{decoder_forward.1} parent=1 // pred_region
      _
    $region45: #{decoder_forward.1} parent=1 // pred_fallthru
      _
    // Predicated region
    $region46: #{decoder_forward.1} parent=1 // pred_check
      _
    $region47: #{decoder_forward.1} parent=1 // pred_check_branch
      %45 = sbr.rel (0) target = $region49
    $region48: #{decoder_forward.1} parent=1 // pred_region
      _
    $region49: #{decoder_forward.1} parent=1 // pred_fallthru
      _
    // Predicated region
    $region50: #{decoder_forward.1} parent=1 // pred_check
      _
    $region51: #{decoder_forward.1} parent=1 // pred_check_branch
      %47 = sbr.rel (0) target = $region53
    $region52: #{decoder_forward.1} parent=1 // pred_region
      _
    $region53: #{decoder_forward.1} parent=1 // pred_fallthru
      _
    // Predicated region
    $region54: #{decoder_forward.1} parent=1 // pred_check
      _
    $region55: #{decoder_forward.1} parent=1 // pred_check_branch
      %49 = sbr.rel (0) target = $region57
    $region56: #{decoder_forward.1} parent=1 // pred_region
      _
    $region57: #{decoder_forward.1} parent=1 // pred_fallthru
      _
    // Predicated region
    $region58: #{decoder_forward.1} parent=1 // pred_check
      _
    $region59: #{decoder_forward.1} parent=1 // pred_check_branch
      %51 = sbr.rel (0) target = $region61
    $region60: #{decoder_forward.1} parent=1 // pred_region
      _
    $region61: #{decoder_forward.1} parent=1 // pred_fallthru
      _
    // Predicated region
    $region62: #{decoder_forward.1} parent=1 // pred_check
      _
    $region63: #{decoder_forward.1} parent=1 // pred_check_branch
      %53 = sbr.rel (0) target = $region65
    $region64: #{decoder_forward.1} parent=1 // pred_region
      _
    $region65: #{decoder_forward.1} parent=1 // pred_fallthru
      _
    %v55 = vld [vmem:[%s0] sm:$0xff]
    %v56 = vld [vmem:[%s0 + $0x8] sm:$0xff]
    %v57 = vlaneseq
    %v58 = vand.u32 %v57, 127
    %59 = vset.pattern.permute.xlu0 0
    %60 = vperm.xlu0 %59, %v55
    %v61 = vpop.permute.xlu0 %60
    %62 = vset.pattern.permute.xlu0 0
    %63 = vperm.xlu0 %62, %v56
    %v64 = vpop.permute.xlu0 %63
    %vm65 = vcmp.eq.s32.totalorder %v58, %v61
    %vm66 = vcmp.eq.s32.totalorder %v58, %v64
    %v67 = vsel %vm65, 1.0, 0.0
    %v68 = vsel %vm66, 1.0, 0.0
    %v69 = vld [vmem:[%s2] sm:$0xf]
    %v70 = vld [vmem:[%s2 + $0x4] sm:$0xf]
    %v71 = vld [vmem:[%s2 + $0x8] sm:$0xf]
    %v72 = vld [vmem:[%s2 + $0xc] sm:$0xf]
    %v73 = vld [vmem:[%s2 + $0x10] sm:$0xf]
    %v74 = vld [vmem:[%s2 + $0x14] sm:$0xf]
    %v75 = vld [vmem:[%s2 + $0x18] sm:$0x1]
    %v76 = vpack.c.bf16 %v68, %v67
    %v77 = vld [vmem:[%s4] sm:$0xff]
    %v78 = vld [vmem:[%s4 + $0x8] sm:$0xff]
    %v86 = vunpack.c.l.b16 %v69
    %v87 = vunpack.c.l.b16 %v70
    %v88 = vunpack.c.l.b16 %v71
    %v89 = vunpack.c.l.b16 %v72
    %v90 = vunpack.c.l.b16 %v73
    %v91 = vunpack.c.l.b16 %v74
    %v92 = vunpack.c.l.b16 %v75
    %v93 = vpack.c.b16 %v87, %v86
    %v94 = vpack.c.b16 %v89, %v88
    %v95 = vpack.c.b16 %v91, %v90
    %v96 = vpack.c.b16 %v92, %v92
    %vm100 = vcmask 408576
    %v102 = vsel %vm100, %v76, 0
    %vm104 = vcmask 1040384
    %v106 = vsel %vm104, %v96, 0
    %108 = vmatprep.subr.bf16.mxu0 0
    %109 = vmatpush1.bf16.msra.mxu0 %v93
    %110 = vmatprep.subr.bf16.mxu0 0
    %111 = vmatpush1.bf16.msra.mxu0 %v94
    %112 = vmatprep.subr.bf16.mxu0 0
    %113 = vmatpush1.bf16.msra.mxu0 %v95
    %114 = vmatprep.subr.bf16.mxu0 0
    %115 = vmatpush1.bf16.msra.mxu0 %v106
    %116 = vmatprep.subr.bf16.mxu0 0
    %117 = vmatpush1.bf16.msra.mxu0 0
    %118 = vmatprep.subr.bf16.mxu0 0
    %119 = vmatpush1.bf16.msra.mxu0 0
    %120 = vmatprep.subr.bf16.mxu0 0
    %121 = vmatpush1.bf16.msra.mxu0 0
    %122 = vmatprep.subr.bf16.mxu0 0
    %123 = vmatpush1.bf16.msra.mxu0 0
    %124 = vmatprep.subr.bf16.mxu0 0
    %125 = vmatpush1.bf16.msra.mxu0 0
    %126 = vmatprep.subr.bf16.mxu0 0
    %127 = vmatpush1.bf16.msra.mxu0 0
    %128 = vmatprep.subr.bf16.mxu0 0
    %129 = vmatpush1.bf16.msra.mxu0 0
    %130 = vmatprep.subr.bf16.mxu0 0
    %131 = vmatpush1.bf16.msra.mxu0 0
    %132 = vmatprep.subr.bf16.mxu0 0
    %133 = vmatpush1.bf16.msra.mxu0 0
    %134 = vmatprep.subr.bf16.mxu0 0
    %135 = vmatpush1.bf16.msra.mxu0 0
    %136 = vmatprep.subr.bf16.mxu0 0
    %137 = vmatpush1.bf16.msra.mxu0 0
    %138 = vmatprep.subr.bf16.mxu0 0
    %139 = vmatpush1.bf16.msra.mxu0 0
    %140 = vmatprep.mubr.bf16.mxu0 0
    %141 = vmatmul.mubr.bf16.gmra.mrb[0].mxu0 %v102
    %v142 = vpop.f32.mrb[0].mxu0
    %v143 = vadd.f32 %v77, %v142
    %v144 = vpop.f32.mrb[0].mxu0
    %v145 = vpop.f32.mrb[0].mxu0
    %v146 = vadd.f32 %v78, %v145
    %v147 = vpop.f32.mrb[0].mxu0
    %148 = vdwg.mxu0
    %v149 = vld [vmem:[%s4 + $0x20] sm:$0x1]
    %v150 = vld [vmem:[%s4 + $0x21] sm:$0x1]
    %vm151 = vcmask 261120
    %v152 = vsel %vm151, %v143, 0.0
    %153 = vadd.xlane.f32.xlu0 %v152
    %v154 = vpop.xlane.xlu0 %153
    %v155 = vsel %vm151, %v146, 0.0
    %156 = vadd.xlane.f32.xlu0 %v155
    %v157 = vpop.xlane.xlu0 %156
    %v158 = vrcp.pop 32.0
    %v159 = vmul.f32 %v154, %v158
    %v160 = vmul.f32 %v157, %v158
    %v161 = vsub.f32 %v143, %v159
    %v162 = vsub.f32 %v146, %v160
    %v163 = vmul.f32 %v161, %v161
    %v164 = vmul.f32 %v162, %v162
    %v165 = vsel %vm151, %v163, 0.0
    %166 = vadd.xlane.f32.xlu0 %v165
    %v167 = vpop.xlane.xlu0 %166
    %v168 = vsel %vm151, %v164, 0.0
    %169 = vadd.xlane.f32.xlu0 %v168
    %v170 = vpop.xlane.xlu0 %169
    %v171 = vmul.f32 %v167, %v158
    %v172 = vmul.f32 %v170, %v158
    %v173 = vadd.f32 %v171, 1e-12
    %v174 = vadd.f32 %v172, 1e-12
    %v175 = vrsqrt.pop %v173
    %v176 = vrsqrt.pop %v174
    %v177 = vmul.f32 %v161, %v175
    %v178 = vmul.f32 %v162, %v176
    %v179 = vlaneseq
    %v180 = vshrl.u32 %v179, 7
    %v181 = vsub.s32 0, %v180
    %v182 = vrot.slane %v149, %v181
    %v183 = vmul.f32 %v177, %v182
    %v184 = vmul.f32 %v178, %v182
    %v185 = vlaneseq
    %v186 = vshrl.u32 %v185, 7
    %v187 = vsub.s32 0, %v186
    %v188 = vrot.slane %v150, %v187
    %v189 = vadd.f32 %v183, %v188
    %v190 = vadd.f32 %v184, %v188
    %v191 = vld [vmem:[%s1] sm:$0xff]
    %v192 = vld [vmem:[%s1 + $0x8] sm:$0xff]
    %193 = vset.pattern.permute.xlu0 0
    %194 = vperm.xlu0 %193, %v191
    %v195 = vpop.permute.xlu0 %194
    %196 = vset.pattern.permute.xlu0 0
    %197 = vperm.xlu0 %196, %v192
    %v198 = vpop.permute.xlu0 %197
    %vm199 = vcmp.eq.s32.totalorder %v58, %v195
    %vm200 = vcmp.eq.s32.totalorder %v58, %v198
    %v201 = vsel %vm199, 1.0, 0.0
    %v202 = vsel %vm200, 1.0, 0.0
    %v203 = vld [vmem:[%s3] sm:$0xf]
    %v204 = vld [vmem:[%s3 + $0x4] sm:$0xf]
    %v205 = vld [vmem:[%s3 + $0x8] sm:$0xf]
    %v206 = vld [vmem:[%s3 + $0xc] sm:$0xf]
    %v207 = vld [vmem:[%s3 + $0x10] sm:$0xf]
    %v208 = vld [vmem:[%s3 + $0x14] sm:$0xf]
    %v209 = vld [vmem:[%s3 + $0x18] sm:$0x1]
    %v210 = vpack.c.bf16 %v202, %v201
    %v211 = vld [vmem:[%s4 + $0x10] sm:$0xff]
    %v212 = vld [vmem:[%s4 + $0x18] sm:$0xff]
    %v220 = vunpack.c.l.b16 %v203
    %v221 = vunpack.c.l.b16 %v204
    %v222 = vunpack.c.l.b16 %v205
    %v223 = vunpack.c.l.b16 %v206
    %v224 = vunpack.c.l.b16 %v207
    %v225 = vunpack.c.l.b16 %v208
    %v226 = vunpack.c.l.b16 %v209
    %v227 = vpack.c.b16 %v221, %v220
    %v228 = vpack.c.b16 %v223, %v222
    %v229 = vpack.c.b16 %v225, %v224
    %v230 = vpack.c.b16 %v226, %v226
    %v235 = vsel %vm100, %v210, 0
    %v238 = vsel %vm104, %v230, 0
    %240 = vmatprep.subr.bf16.mxu0 0
    %241 = vmatpush1.bf16.msra.mxu0 %v227
    %242 = vmatprep.subr.bf16.mxu0 0
    %243 = vmatpush1.bf16.msra.mxu0 %v228
    %244 = vmatprep.subr.bf16.mxu0 0
    %245 = vmatpush1.bf16.msra.mxu0 %v229
    %246 = vmatprep.subr.bf16.mxu0 0
    %247 = vmatpush1.bf16.msra.mxu0 %v238
    %248 = vmatprep.subr.bf16.mxu0 0
    %249 = vmatpush1.bf16.msra.mxu0 0
    %250 = vmatprep.subr.bf16.mxu0 0
    %251 = vmatpush1.bf16.msra.mxu0 0
    %252 = vmatprep.subr.bf16.mxu0 0
    %253 = vmatpush1.bf16.msra.mxu0 0
    %254 = vmatprep.subr.bf16.mxu0 0
    %255 = vmatpush1.bf16.msra.mxu0 0
    %256 = vmatprep.subr.bf16.mxu0 0
    %257 = vmatpush1.bf16.msra.mxu0 0
    %258 = vmatprep.subr.bf16.mxu0 0
    %259 = vmatpush1.bf16.msra.mxu0 0
    %260 = vmatprep.subr.bf16.mxu0 0
    %261 = vmatpush1.bf16.msra.mxu0 0
    %262 = vmatprep.subr.bf16.mxu0 0
    %263 = vmatpush1.bf16.msra.mxu0 0
    %264 = vmatprep.subr.bf16.mxu0 0
    %265 = vmatpush1.bf16.msra.mxu0 0
    %266 = vmatprep.subr.bf16.mxu0 0
    %267 = vmatpush1.bf16.msra.mxu0 0
    %268 = vmatprep.subr.bf16.mxu0 0
    %269 = vmatpush1.bf16.msra.mxu0 0
    %270 = vmatprep.subr.bf16.mxu0 0
    %271 = vmatpush1.bf16.msra.mxu0 0
    %272 = vmatprep.mubr.bf16.mxu0 0
    %273 = vmatmul.mubr.bf16.gmra.mrb[0].mxu0 %v235
    %v274 = vpop.f32.mrb[0].mxu0
    %v275 = vadd.f32 %v211, %v274
    %v276 = vpop.f32.mrb[0].mxu0
    %v277 = vpop.f32.mrb[0].mxu0
    %v278 = vadd.f32 %v212, %v277
    %v279 = vpop.f32.mrb[0].mxu0
    %280 = vdwg.mxu0
    %v281 = vld [vmem:[%s4 + $0x22] sm:$0x1]
    %v282 = vld [vmem:[%s4 + $0x23] sm:$0x1]
    %v283 = vsel %vm151, %v275, 0.0
    %284 = vadd.xlane.f32.xlu0 %v283
    %v285 = vpop.xlane.xlu0 %284
    %v286 = vsel %vm151, %v278, 0.0
    %287 = vadd.xlane.f32.xlu0 %v286
    %v288 = vpop.xlane.xlu0 %287
    %v289 = vmul.f32 %v285, %v158
    %v290 = vmul.f32 %v288, %v158
    %v291 = vsub.f32 %v275, %v289
    %v292 = vsub.f32 %v278, %v290
    %v293 = vmul.f32 %v291, %v291
    %v294 = vmul.f32 %v292, %v292
    %v295 = vsel %vm151, %v293, 0.0
    %296 = vadd.xlane.f32.xlu0 %v295
    %v297 = vpop.xlane.xlu0 %296
    %v298 = vsel %vm151, %v294, 0.0
    %299 = vadd.xlane.f32.xlu0 %v298
    %v300 = vpop.xlane.xlu0 %299
    %v301 = vmul.f32 %v297, %v158
    %v302 = vmul.f32 %v300, %v158
    %v303 = vadd.f32 %v301, 1e-12
    %v304 = vadd.f32 %v302, 1e-12
    %v305 = vrsqrt.pop %v303
    %v306 = vrsqrt.pop %v304
    %v307 = vmul.f32 %v291, %v305
    %v308 = vmul.f32 %v292, %v306
    %v309 = vlaneseq
    %v310 = vshrl.u32 %v309, 7
    %v311 = vsub.s32 0, %v310
    %v312 = vrot.slane %v281, %v311
    %v313 = vmul.f32 %v307, %v312
    %v314 = vmul.f32 %v308, %v312
    %v315 = vlaneseq
    %v316 = vshrl.u32 %v315, 7
    %v317 = vsub.s32 0, %v316
    %v318 = vrot.slane %v282, %v317
    %v319 = vadd.f32 %v313, %v318
    %v320 = vadd.f32 %v314, %v318
    %v321 = vld [vmem:[%s11] sm:$0xff]
    %v322 = vld [vmem:[%s11 + $0x8] sm:$0xff]
    %v323 = vld [vmem:[%s11 + $0x10] sm:$0xff]
    %v324 = vld [vmem:[%s11 + $0x18] sm:$0xff]
    %v325 = vld [vmem:[%s11 + $0x20] sm:$0xff]
    %v326 = vld [vmem:[%s11 + $0x28] sm:$0xff]
    %v327 = vld [vmem:[%s11 + $0x30] sm:$0xff]
    %v328 = vld [vmem:[%s11 + $0x38] sm:$0xff]
    %v329 = vld [vmem:[%s12] sm:$0xff]
    %v330 = vld [vmem:[%s12 + $0x8] sm:$0xff]
    %v331 = vld [vmem:[%s12 + $0x10] sm:$0xff]
    %v332 = vld [vmem:[%s12 + $0x18] sm:$0xff]
    %v333 = vld [vmem:[%s12 + $0x20] sm:$0xff]
    %v334 = vld [vmem:[%s12 + $0x28] sm:$0xff]
    %v335 = vld [vmem:[%s12 + $0x30] sm:$0xff]
    %v336 = vld [vmem:[%s12 + $0x38] sm:$0xff]
    %v337 = vld [vmem:[%s13] sm:$0xff]
    %v338 = vld [vmem:[%s13 + $0x8] sm:$0xff]
    %v339 = vld [vmem:[%s14] sm:$0xff]
    %v340 = vld [vmem:[%s14 + $0x8] sm:$0xff]
    %v341 = vld [vmem:[%s15] sm:$0xff]
    %v342 = vld [vmem:[%s15 + $0x8] sm:$0xff]
    %v343 = vld [vmem:[%s5] sm:$0xf]
    %v344 = vld [vmem:[%s5 + $0x4] sm:$0xf]
    %v345 = vld [vmem:[%s5 + $0x8] sm:$0xf]
    %v346 = vld [vmem:[%s5 + $0xc] sm:$0xf]
    %v347 = vpack.c.bf16 %v320, %v319
    %v348 = vld [vmem:[%s9] sm:$0x1]
    %v349 = vlaneseq
    %v350 = vshrl.u32 %v349, 7
    %v351 = vsub.s32 0, %v350
    %v352 = vrot.slane %v348, %v351
    %v357 = vunpack.c.l.b16 %v343
    %v358 = vunpack.c.l.b16 %v344
    %v359 = vunpack.c.l.b16 %v345
    %v360 = vunpack.c.l.b16 %v346
    %v361 = vpack.c.b16 %v358, %v357
    %v362 = vpack.c.b16 %v360, %v359
    %v366 = vsel %vm151, %v347, 0
    %368 = vmatprep.subr.bf16.mxu0 0
    %369 = vmatpush1.bf16.msra.mxu0 %v361
    %370 = vmatprep.subr.bf16.mxu0 0
    %371 = vmatpush1.bf16.msra.mxu0 %v362
    %372 = vmatprep.subr.bf16.mxu0 0
    %373 = vmatpush1.bf16.msra.mxu0 0
    %374 = vmatprep.subr.bf16.mxu0 0
    %375 = vmatpush1.bf16.msra.mxu0 0
    %376 = vmatprep.subr.bf16.mxu0 0
    %377 = vmatpush1.bf16.msra.mxu0 0
    %378 = vmatprep.subr.bf16.mxu0 0
    %379 = vmatpush1.bf16.msra.mxu0 0
    %380 = vmatprep.subr.bf16.mxu0 0
    %381 = vmatpush1.bf16.msra.mxu0 0
    %382 = vmatprep.subr.bf16.mxu0 0
    %383 = vmatpush1.bf16.msra.mxu0 0
    %384 = vmatprep.subr.bf16.mxu0 0
    %385 = vmatpush1.bf16.msra.mxu0 0
    %386 = vmatprep.subr.bf16.mxu0 0
    %387 = vmatpush1.bf16.msra.mxu0 0
    %388 = vmatprep.subr.bf16.mxu0 0
    %389 = vmatpush1.bf16.msra.mxu0 0
    %390 = vmatprep.subr.bf16.mxu0 0
    %391 = vmatpush1.bf16.msra.mxu0 0
    %392 = vmatprep.subr.bf16.mxu0 0
    %393 = vmatpush1.bf16.msra.mxu0 0
    %394 = vmatprep.subr.bf16.mxu0 0
    %395 = vmatpush1.bf16.msra.mxu0 0
    %396 = vmatprep.subr.bf16.mxu0 0
    %397 = vmatpush1.bf16.msra.mxu0 0
    %398 = vmatprep.subr.bf16.mxu0 0
    %399 = vmatpush1.bf16.msra.mxu0 0
    %400 = vmatprep.mubr.bf16.mxu0 0
    %401 = vmatmul.mubr.bf16.gmra.mrb[0].mxu0 %v366
    %v402 = vpop.f32.mrb[0].mxu0
    %v403 = vadd.f32 %v352, %v402
    %v404 = vpop.f32.mrb[0].mxu0
    %v405 = vpop.f32.mrb[0].mxu0
    %v406 = vadd.f32 %v352, %v405
    %v407 = vpop.f32.mrb[0].mxu0
    %408 = vdwg.mxu0
    %v409 = vld [vmem:[%s6] sm:$0xf]
    %v410 = vld [vmem:[%s6 + $0x4] sm:$0xf]
    %v411 = vld [vmem:[%s6 + $0x8] sm:$0xf]
    %v412 = vld [vmem:[%s6 + $0xc] sm:$0xf]
    %v413 = vld [vmem:[%s4 + $0x24] sm:$0x1]
    %422 = vrot.lane.b32.xlu0 %v329, 32
    %v423 = vpop.permute.xlu0 %422
    %424 = vrot.lane.b32.xlu0 %v330, 32
    %v425 = vpop.permute.xlu0 %424
    %426 = vrot.lane.b32.xlu0 %v331, 32
    %v427 = vpop.permute.xlu0 %426
    %428 = vrot.lane.b32.xlu0 %v332, 32
    %v429 = vpop.permute.xlu0 %428
    %430 = vrot.lane.b32.xlu0 %v333, 32
    %v431 = vpop.permute.xlu0 %430
    %432 = vrot.lane.b32.xlu0 %v334, 32
    %v433 = vpop.permute.xlu0 %432
    %434 = vrot.lane.b32.xlu0 %v335, 32
    %v435 = vpop.permute.xlu0 %434
    %436 = vrot.lane.b32.xlu0 %v336, 32
    %v437 = vpop.permute.xlu0 %436
    %v446 = vmul.f32 %v403, %v423
    %v447 = vmul.f32 %v406, %v425
    %v448 = vmul.f32 %v403, %v427
    %v449 = vmul.f32 %v406, %v429
    %v450 = vmul.f32 %v403, %v431
    %v451 = vmul.f32 %v406, %v433
    %v452 = vmul.f32 %v403, %v435
    %v453 = vmul.f32 %v406, %v437
    %454 = vrot.lane.b32.xlu0 %v329, 64
    %v455 = vpop.permute.xlu0 %454
    %456 = vrot.lane.b32.xlu0 %v330, 64
    %v457 = vpop.permute.xlu0 %456
    %458 = vrot.lane.b32.xlu0 %v331, 64
    %v459 = vpop.permute.xlu0 %458
    %460 = vrot.lane.b32.xlu0 %v332, 64
    %v461 = vpop.permute.xlu0 %460
    %462 = vrot.lane.b32.xlu0 %v333, 64
    %v463 = vpop.permute.xlu0 %462
    %464 = vrot.lane.b32.xlu0 %v334, 64
    %v465 = vpop.permute.xlu0 %464
    %466 = vrot.lane.b32.xlu0 %v335, 64
    %v467 = vpop.permute.xlu0 %466
    %468 = vrot.lane.b32.xlu0 %v336, 64
    %v469 = vpop.permute.xlu0 %468
    %v478 = vmul.f32 %v403, %v455
    %v479 = vmul.f32 %v406, %v457
    %v480 = vmul.f32 %v403, %v459
    %v481 = vmul.f32 %v406, %v461
    %v482 = vmul.f32 %v403, %v463
    %v483 = vmul.f32 %v406, %v465
    %v484 = vmul.f32 %v403, %v467
    %v485 = vmul.f32 %v406, %v469
    %v486 = vmul.f32 %v403, 0.35355338
    %v487 = vmul.f32 %v406, 0.35355338
    %v488 = vpack.c.bf16 %v487, %v486
    %v489 = vpack.c.bf16 %v447, %v446
    %v490 = vpack.c.bf16 %v449, %v448
    %v491 = vpack.c.bf16 %v451, %v450
    %v492 = vpack.c.bf16 %v453, %v452
    %497 = vrot.lane.b32.xlu0 %v489, 96
    %v498 = vpop.permute.xlu0 %497
    %499 = vrot.lane.b32.xlu0 %v490, 96
    %v500 = vpop.permute.xlu0 %499
    %501 = vrot.lane.b32.xlu0 %v491, 96
    %v502 = vpop.permute.xlu0 %501
    %503 = vrot.lane.b32.xlu0 %v492, 96
    %v504 = vpop.permute.xlu0 %503
    %v506 = vsel %vm151, %v488, 0
    %v509 = vsel %vm151, %v498, 0
    %v512 = vsel %vm151, %v500, 0
    %v515 = vsel %vm151, %v502, 0
    %v518 = vsel %vm151, %v504, 0
    %520 = vmatprep.subr.bf16.mxu0 0
    %521 = vmatpush1.bf16.xpose.msra.mxu0 %v509
    %522 = vmatprep.subr.bf16.mxu0 0
    %523 = vmatpush1.bf16.xpose.msra.mxu0 %v512
    %524 = vmatprep.subr.bf16.mxu0 0
    %525 = vmatpush1.bf16.xpose.msra.mxu0 %v515
    %526 = vmatprep.subr.bf16.mxu0 0
    %527 = vmatpush1.bf16.xpose.msra.mxu0 %v518
    %528 = vmatprep.subr.bf16.mxu0 0
    %529 = vmatpush1.bf16.xpose.msra.mxu0 0
    %530 = vmatprep.subr.bf16.mxu0 0
    %531 = vmatpush1.bf16.xpose.msra.mxu0 0
    %532 = vmatprep.subr.bf16.mxu0 0
    %533 = vmatpush1.bf16.xpose.msra.mxu0 0
    %534 = vmatprep.subr.bf16.mxu0 0
    %535 = vmatpush1.bf16.xpose.msra.mxu0 0
    %536 = vmatprep.subr.bf16.mxu0 0
    %537 = vmatpush1.bf16.xpose.msra.mxu0 0
    %538 = vmatprep.subr.bf16.mxu0 0
    %539 = vmatpush1.bf16.xpose.msra.mxu0 0
    %540 = vmatprep.subr.bf16.mxu0 0
    %541 = vmatpush1.bf16.xpose.msra.mxu0 0
    %542 = vmatprep.subr.bf16.mxu0 0
    %543 = vmatpush1.bf16.xpose.msra.mxu0 0
    %544 = vmatprep.subr.bf16.mxu0 0
    %545 = vmatpush1.bf16.xpose.msra.mxu0 0
    %546 = vmatprep.subr.bf16.mxu0 0
    %547 = vmatpush1.bf16.xpose.msra.mxu0 0
    %548 = vmatprep.subr.bf16.mxu0 0
    %549 = vmatpush1.bf16.xpose.msra.mxu0 0
    %550 = vmatprep.subr.bf16.mxu0 0
    %551 = vmatpush1.bf16.xpose.msra.mxu0 0
    %552 = vmatprep.mubr.bf16.mxu0 0
    %553 = vmatmul.mubr.bf16.gmra.mrb[0].mxu0 %v506
    %v554 = vpop.f32.mrb[0].mxu0
    %v555 = vadd.f32 %v339, %v554
    %v556 = vpop.f32.mrb[0].mxu0
    %v557 = vpop.f32.mrb[0].mxu0
    %v558 = vadd.f32 %v340, %v557
    %v559 = vpop.f32.mrb[0].mxu0
    %560 = vdwg.mxu0
    %vm561 = vcmask 523264
    %v562 = vsel %vm561, %v555, -inf
    %563 = vmax.xlane.f32.xlu0 %v562
    %v564 = vpop.xlane.xlu0 %563
    %v565 = vsel %vm561, %v558, -inf
    %566 = vmax.xlane.f32.xlu0 %v565
    %v567 = vpop.xlane.xlu0 %566
    %v568 = vsub.f32 %v555, %v564
    %v569 = vsub.f32 %v558, %v567
    %v570 = vmul.f32 %v568, 1.442695
    %v571 = vpow.pop %v570
    %v572 = vmul.f32 %v569, 1.442695
    %v573 = vpow.pop %v572
    %582 = vrot.lane.b32.xlu0 %v478, 64
    %v583 = vpop.permute.xlu0 %582
    %584 = vrot.lane.b32.xlu0 %v479, 64
    %v585 = vpop.permute.xlu0 %584
    %586 = vrot.lane.b32.xlu0 %v480, 64
    %v587 = vpop.permute.xlu0 %586
    %588 = vrot.lane.b32.xlu0 %v481, 64
    %v589 = vpop.permute.xlu0 %588
    %590 = vrot.lane.b32.xlu0 %v482, 64
    %v591 = vpop.permute.xlu0 %590
    %592 = vrot.lane.b32.xlu0 %v483, 64
    %v593 = vpop.permute.xlu0 %592
    %594 = vrot.lane.b32.xlu0 %v484, 64
    %v595 = vpop.permute.xlu0 %594
    %596 = vrot.lane.b32.xlu0 %v485, 64
    %v597 = vpop.permute.xlu0 %596
    %v606 = vsel %vm151, %v583, %v423
    %v607 = vsel %vm151, %v585, %v425
    %v608 = vsel %vm151, %v587, %v427
    %v609 = vsel %vm151, %v589, %v429
    %v610 = vsel %vm151, %v591, %v431
    %v611 = vsel %vm151, %v593, %v433
    %v612 = vsel %vm151, %v595, %v435
    %v613 = vsel %vm151, %v597, %v437
    %v614 = vpack.c.bf16 %v573, %v571
    %v615 = vpack.c.bf16 %v607, %v606
    %v616 = vpack.c.bf16 %v609, %v608
    %v617 = vpack.c.bf16 %v611, %v610
    %v618 = vpack.c.bf16 %v613, %v612
    %v620 = vsel %vm561, %v614, 0
    %622 = vmatprep.subr.bf16.mxu0 0
    %623 = vmatpush1.bf16.msra.mxu0 %v615
    %624 = vmatprep.subr.bf16.mxu0 0
    %625 = vmatpush1.bf16.msra.mxu0 %v616
    %626 = vmatprep.subr.bf16.mxu0 0
    %627 = vmatpush1.bf16.msra.mxu0 %v617
    %628 = vmatprep.subr.bf16.mxu0 0
    %629 = vmatpush1.bf16.msra.mxu0 %v618
    %630 = vmatprep.subr.bf16.mxu0 0
    %631 = vmatpush1.bf16.msra.mxu0 0
    %632 = vmatprep.subr.bf16.mxu0 0
    %633 = vmatpush1.bf16.msra.mxu0 0
    %634 = vmatprep.subr.bf16.mxu0 0
    %635 = vmatpush1.bf16.msra.mxu0 0
    %636 = vmatprep.subr.bf16.mxu0 0
    %637 = vmatpush1.bf16.msra.mxu0 0
    %638 = vmatprep.subr.bf16.mxu0 0
    %639 = vmatpush1.bf16.msra.mxu0 0
    %640 = vmatprep.subr.bf16.mxu0 0
    %641 = vmatpush1.bf16.msra.mxu0 0
    %642 = vmatprep.subr.bf16.mxu0 0
    %643 = vmatpush1.bf16.msra.mxu0 0
    %644 = vmatprep.subr.bf16.mxu0 0
    %645 = vmatpush1.bf16.msra.mxu0 0
    %646 = vmatprep.subr.bf16.mxu0 0
    %647 = vmatpush1.bf16.msra.mxu0 0
    %648 = vmatprep.subr.bf16.mxu0 0
    %649 = vmatpush1.bf16.msra.mxu0 0
    %650 = vmatprep.subr.bf16.mxu0 0
    %651 = vmatpush1.bf16.msra.mxu0 0
    %652 = vmatprep.subr.bf16.mxu0 0
    %653 = vmatpush1.bf16.msra.mxu0 0
    %654 = vmatprep.mubr.bf16.mxu0 0
    %655 = vmatmul.mubr.bf16.gmra.mrb[0].mxu0 %v620
    %v656 = vpop.f32.mrb[0].mxu0
    %v657 = vadd.f32 0.0, %v656
    %v658 = vpop.f32.mrb[0].mxu0
    %v659 = vpop.f32.mrb[0].mxu0
    %v660 = vadd.f32 0.0, %v659
    %v661 = vpop.f32.mrb[0].mxu0
    %662 = vdwg.mxu0
    %v663 = vmax.f32 %v657, 1e-30
    %v664 = vmax.f32 %v660, 1e-30
    %667 = vrot.lane.b32.xlu0 %v663, 96
    %v668 = vpop.permute.xlu0 %667
    %669 = vrot.lane.b32.xlu0 %v664, 96
    %v670 = vpop.permute.xlu0 %669
    %v673 = vrcp.pop %v668
    %v674 = vmul.f32 %v657, %v673
    %v675 = vrcp.pop %v670
    %v676 = vmul.f32 %v660, %v675
    %v677 = vpack.c.bf16 %v676, %v674
    %v678 = vlaneseq
    %v679 = vshrl.u32 %v678, 7
    %v680 = vsub.s32 0, %v679
    %v681 = vrot.slane %v413, %v680
    %v686 = vunpack.c.l.b16 %v409
    %v687 = vunpack.c.l.b16 %v410
    %v688 = vunpack.c.l.b16 %v411
    %v689 = vunpack.c.l.b16 %v412
    %v690 = vpack.c.b16 %v687, %v686
    %v691 = vpack.c.b16 %v689, %v688
    %v695 = vsel %vm151, %v677, 0
    %697 = vmatprep.subr.bf16.mxu0 0
    %698 = vmatpush1.bf16.msra.mxu0 %v690
    %699 = vmatprep.subr.bf16.mxu0 0
    %700 = vmatpush1.bf16.msra.mxu0 %v691
    %701 = vmatprep.subr.bf16.mxu0 0
    %702 = vmatpush1.bf16.msra.mxu0 0
    %703 = vmatprep.subr.bf16.mxu0 0
    %704 = vmatpush1.bf16.msra.mxu0 0
    %705 = vmatprep.subr.bf16.mxu0 0
    %706 = vmatpush1.bf16.msra.mxu0 0
    %707 = vmatprep.subr.bf16.mxu0 0
    %708 = vmatpush1.bf16.msra.mxu0 0
    %709 = vmatprep.subr.bf16.mxu0 0
    %710 = vmatpush1.bf16.msra.mxu0 0
    %711 = vmatprep.subr.bf16.mxu0 0
    %712 = vmatpush1.bf16.msra.mxu0 0
    %713 = vmatprep.subr.bf16.mxu0 0
    %714 = vmatpush1.bf16.msra.mxu0 0
    %715 = vmatprep.subr.bf16.mxu0 0
    %716 = vmatpush1.bf16.msra.mxu0 0
    %717 = vmatprep.subr.bf16.mxu0 0
    %718 = vmatpush1.bf16.msra.mxu0 0
    %719 = vmatprep.subr.bf16.mxu0 0
    %720 = vmatpush1.bf16.msra.mxu0 0
    %721 = vmatprep.subr.bf16.mxu0 0
    %722 = vmatpush1.bf16.msra.mxu0 0
    %723 = vmatprep.subr.bf16.mxu0 0
    %724 = vmatpush1.bf16.msra.mxu0 0
    %725 = vmatprep.subr.bf16.mxu0 0
    %726 = vmatpush1.bf16.msra.mxu0 0
    %727 = vmatprep.subr.bf16.mxu0 0
    %728 = vmatpush1.bf16.msra.mxu0 0
    %729 = vmatprep.mubr.bf16.mxu0 0
    %730 = vmatmul.mubr.bf16.gmra.mrb[0].mxu0 %v695
    %v731 = vpop.f32.mrb[0].mxu0
    %v732 = vadd.f32 %v681, %v731
    %v733 = vpop.f32.mrb[0].mxu0
    %v734 = vpop.f32.mrb[0].mxu0
    %v735 = vadd.f32 %v681, %v734
    %v736 = vpop.f32.mrb[0].mxu0
    %737 = vdwg.mxu0
    %v738 = vadd.f32 %v319, %v732
    %v739 = vadd.f32 %v320, %v735
    %v740 = vld [vmem:[%s4 + $0x25] sm:$0x1]
    %v741 = vld [vmem:[%s4 + $0x26] sm:$0x1]
    %v742 = vsel %vm151, %v738, 0.0
    %743 = vadd.xlane.f32.xlu0 %v742
    %v744 = vpop.xlane.xlu0 %743
    %v745 = vsel %vm151, %v739, 0.0
    %746 = vadd.xlane.f32.xlu0 %v745
    %v747 = vpop.xlane.xlu0 %746
    %v748 = vmul.f32 %v744, %v158
    %v749 = vmul.f32 %v747, %v158
    %v750 = vsub.f32 %v738, %v748
    %v751 = vsub.f32 %v739, %v749
    %v752 = vmul.f32 %v750, %v750
    %v753 = vmul.f32 %v751, %v751
    %v754 = vsel %vm151, %v752, 0.0
    %755 = vadd.xlane.f32.xlu0 %v754
    %v756 = vpop.xlane.xlu0 %755
    %v757 = vsel %vm151, %v753, 0.0
    %758 = vadd.xlane.f32.xlu0 %v757
    %v759 = vpop.xlane.xlu0 %758
    %v760 = vmul.f32 %v756, %v158
    %v761 = vmul.f32 %v759, %v158
    %v762 = vadd.f32 %v760, 1e-12
    %v763 = vadd.f32 %v761, 1e-12
    %v764 = vrsqrt.pop %v762
    %v765 = vrsqrt.pop %v763
    %v766 = vmul.f32 %v750, %v764
    %v767 = vmul.f32 %v751, %v765
    %v768 = vlaneseq
    %v769 = vshrl.u32 %v768, 7
    %v770 = vsub.s32 0, %v769
    %v771 = vrot.slane %v740, %v770
    %v772 = vmul.f32 %v766, %v771
    %v773 = vmul.f32 %v767, %v771
    %v774 = vlaneseq
    %v775 = vshrl.u32 %v774, 7
    %v776 = vsub.s32 0, %v775
    %v777 = vrot.slane %v741, %v776
    %v778 = vadd.f32 %v772, %v777
    %v779 = vadd.f32 %v773, %v777
    %v780 = vld [vmem:[%s7] sm:$0xf]
    %v781 = vld [vmem:[%s7 + $0x4] sm:$0xf]
    %v782 = vld [vmem:[%s7 + $0x8] sm:$0xf]
    %v783 = vld [vmem:[%s7 + $0xc] sm:$0xf]
    %v784 = vld [vmem:[%s10] sm:$0x1]
    %v785 = vld [vmem:[%s8] sm:$0xf]
    %v786 = vld [vmem:[%s8 + $0x4] sm:$0xf]
    %v787 = vld [vmem:[%s8 + $0x8] sm:$0xf]
    %v788 = vld [vmem:[%s8 + $0xc] sm:$0xf]
    %v789 = vld [vmem:[%s8 + $0x10] sm:$0xf]
    %v790 = vld [vmem:[%s8 + $0x14] sm:$0xf]
    %v791 = vld [vmem:[%s8 + $0x18] sm:$0xf]
    %v792 = vld [vmem:[%s8 + $0x1c] sm:$0xf]
    %v793 = vld [vmem:[%s4 + $0x27] sm:$0x1]
    %v794 = vpack.c.bf16 %v779, %v778
    %v795 = vlaneseq
    %v796 = vshrl.u32 %v795, 7
    %v797 = vsub.s32 0, %v796
    %v798 = vrot.slane %v784, %v797
    %v803 = vunpack.c.l.b16 %v780
    %v804 = vunpack.c.l.b16 %v781
    %v805 = vunpack.c.l.b16 %v782
    %v806 = vunpack.c.l.b16 %v783
    %v807 = vpack.c.b16 %v804, %v803
    %v808 = vpack.c.b16 %v806, %v805
    %v812 = vsel %vm151, %v794, 0
    %814 = vmatprep.subr.bf16.mxu0 0
    %815 = vmatpush1.bf16.msra.mxu0 %v807
    %816 = vmatprep.subr.bf16.mxu0 0
    %817 = vmatpush1.bf16.msra.mxu0 %v808
    %818 = vmatprep.subr.bf16.mxu0 0
    %819 = vmatpush1.bf16.msra.mxu0 0
    %820 = vmatprep.subr.bf16.mxu0 0
    %821 = vmatpush1.bf16.msra.mxu0 0
    %822 = vmatprep.subr.bf16.mxu0 0
    %823 = vmatpush1.bf16.msra.mxu0 0
    %824 = vmatprep.subr.bf16.mxu0 0
    %825 = vmatpush1.bf16.msra.mxu0 0
    %826 = vmatprep.subr.bf16.mxu0 0
    %827 = vmatpush1.bf16.msra.mxu0 0
    %828 = vmatprep.subr.bf16.mxu0 0
    %829 = vmatpush1.bf16.msra.mxu0 0
    %830 = vmatprep.subr.bf16.mxu0 0
    %831 = vmatpush1.bf16.msra.mxu0 0
    %832 = vmatprep.subr.bf16.mxu0 0
    %833 = vmatpush1.bf16.msra.mxu0 0
    %834 = vmatprep.subr.bf16.mxu0 0
    %835 = vmatpush1.bf16.msra.mxu0 0
    %836 = vmatprep.subr.bf16.mxu0 0
    %837 = vmatpush1.bf16.msra.mxu0 0
    %838 = vmatprep.subr.bf16.mxu0 0
    %839 = vmatpush1.bf16.msra.mxu0 0
    %840 = vmatprep.subr.bf16.mxu0 0
    %841 = vmatpush1.bf16.msra.mxu0 0
    %842 = vmatprep.subr.bf16.mxu0 0
    %843 = vmatpush1.bf16.msra.mxu0 0
    %844 = vmatprep.subr.bf16.mxu0 0
    %845 = vmatpush1.bf16.msra.mxu0 0
    %846 = vmatprep.mubr.bf16.mxu0 0
    %847 = vmatmul.mubr.bf16.gmra.mrb[0].mxu0 %v812
    %v848 = vpop.f32.mrb[0].mxu0
    %v849 = vadd.f32 %v798, %v848
    %v850 = vpop.f32.mrb[0].mxu0
    %v851 = vpop.f32.mrb[0].mxu0
    %v852 = vadd.f32 %v798, %v851
    %v853 = vpop.f32.mrb[0].mxu0
    %854 = vdwg.mxu0
    %v855 = vmul.f32 %v849, 0.5
    %v856 = vmul.f32 %v852, 0.5
    %v857 = vmul.f32 %v849, 0.044715
    %v858 = vmul.f32 %v852, 0.044715
    %v859 = vmul.f32 %v857, %v849
    %v860 = vmul.f32 %v858, %v852
    %v861 = vmul.f32 %v859, %v849
    %v862 = vmul.f32 %v860, %v852
    %v863 = vadd.f32 %v849, %v861
    %v864 = vadd.f32 %v852, %v862
    %v865 = vmul.f32 %v863, 0.7978846
    %v866 = vmul.f32 %v864, 0.7978846
    %v867 = vtanh.pop %v865
    %v868 = vtanh.pop %v866
    %v869 = vadd.f32 %v867, 1.0
    %v870 = vadd.f32 %v868, 1.0
    %v871 = vmul.f32 %v855, %v869
    %v872 = vmul.f32 %v856, %v870
    %v873 = vpack.c.bf16 %v872, %v871
    %v874 = vlaneseq
    %v875 = vshrl.u32 %v874, 7
    %v876 = vsub.s32 0, %v875
    %v877 = vrot.slane %v793, %v876
    %v886 = vunpack.c.l.b16 %v785
    %v887 = vunpack.c.l.b16 %v786
    %v888 = vunpack.c.l.b16 %v787
    %v889 = vunpack.c.l.b16 %v788
    %v890 = vunpack.c.l.b16 %v789
    %v891 = vunpack.c.l.b16 %v790
    %v892 = vunpack.c.l.b16 %v791
    %v893 = vunpack.c.l.b16 %v792
    %v894 = vpack.c.b16 %v887, %v886
    %v895 = vpack.c.b16 %v889, %v888
    %v896 = vpack.c.b16 %v891, %v890
    %v897 = vpack.c.b16 %v893, %v892
    %v903 = vsel %vm561, %v873, 0
    %905 = vmatprep.subr.bf16.mxu0 0
    %906 = vmatpush1.bf16.msra.mxu0 %v894
    %907 = vmatprep.subr.bf16.mxu0 0
    %908 = vmatpush1.bf16.msra.mxu0 %v895
    %909 = vmatprep.subr.bf16.mxu0 0
    %910 = vmatpush1.bf16.msra.mxu0 %v896
    %911 = vmatprep.subr.bf16.mxu0 0
    %912 = vmatpush1.bf16.msra.mxu0 %v897
    %913 = vmatprep.subr.bf16.mxu0 0
    %914 = vmatpush1.bf16.msra.mxu0 0
    %915 = vmatprep.subr.bf16.mxu0 0
    %916 = vmatpush1.bf16.msra.mxu0 0
    %917 = vmatprep.subr.bf16.mxu0 0
    %918 = vmatpush1.bf16.msra.mxu0 0
    %919 = vmatprep.subr.bf16.mxu0 0
    %920 = vmatpush1.bf16.msra.mxu0 0
    %921 = vmatprep.subr.bf16.mxu0 0
    %922 = vmatpush1.bf16.msra.mxu0 0
    %923 = vmatprep.subr.bf16.mxu0 0
    %924 = vmatpush1.bf16.msra.mxu0 0
    %925 = vmatprep.subr.bf16.mxu0 0
    %926 = vmatpush1.bf16.msra.mxu0 0
    %927 = vmatprep.subr.bf16.mxu0 0
    %928 = vmatpush1.bf16.msra.mxu0 0
    %929 = vmatprep.subr.bf16.mxu0 0
    %930 = vmatpush1.bf16.msra.mxu0 0
    %931 = vmatprep.subr.bf16.mxu0 0
    %932 = vmatpush1.bf16.msra.mxu0 0
    %933 = vmatprep.subr.bf16.mxu0 0
    %934 = vmatpush1.bf16.msra.mxu0 0
    %935 = vmatprep.subr.bf16.mxu0 0
    %936 = vmatpush1.bf16.msra.mxu0 0
    %937 = vmatprep.mubr.bf16.mxu0 0
    %938 = vmatmul.mubr.bf16.gmra.mrb[0].mxu0 %v903
    %v939 = vpop.f32.mrb[0].mxu0
    %v940 = vadd.f32 %v877, %v939
    %v941 = vpop.f32.mrb[0].mxu0
    %v942 = vpop.f32.mrb[0].mxu0
    %v943 = vadd.f32 %v877, %v942
    %v944 = vpop.f32.mrb[0].mxu0
    %945 = vdwg.mxu0
    %v946 = vadd.f32 %v778, %v940
    %v947 = vadd.f32 %v779, %v943
    %v948 = vld [vmem:[%s4 + $0x28] sm:$0x1]
    %v949 = vld [vmem:[%s4 + $0x29] sm:$0x1]
    %v950 = vsel %vm151, %v946, 0.0
    %951 = vadd.xlane.f32.xlu0 %v950
    %v952 = vpop.xlane.xlu0 %951
    %v953 = vsel %vm151, %v947, 0.0
    %954 = vadd.xlane.f32.xlu0 %v953
    %v955 = vpop.xlane.xlu0 %954
    %v956 = vmul.f32 %v952, %v158
    %v957 = vmul.f32 %v955, %v158
    %v958 = vsub.f32 %v946, %v956
    %v959 = vsub.f32 %v947, %v957
    %v960 = vmul.f32 %v958, %v958
    %v961 = vmul.f32 %v959, %v959
    %v962 = vsel %vm151, %v960, 0.0
    %963 = vadd.xlane.f32.xlu0 %v962
    %v964 = vpop.xlane.xlu0 %963
    %v965 = vsel %vm151, %v961, 0.0
    %966 = vadd.xlane.f32.xlu0 %v965
    %v967 = vpop.xlane.xlu0 %966
    %v968 = vmul.f32 %v964, %v158
    %v969 = vmul.f32 %v967, %v158
    %v970 = vadd.f32 %v968, 1e-12
    %v971 = vadd.f32 %v969, 1e-12
    %v972 = vrsqrt.pop %v970
    %v973 = vrsqrt.pop %v971
    %v974 = vmul.f32 %v958, %v972
    %v975 = vmul.f32 %v959, %v973
    %v976 = vlaneseq
    %v977 = vshrl.u32 %v976, 7
    %v978 = vsub.s32 0, %v977
    %v979 = vrot.slane %v948, %v978
    %v980 = vmul.f32 %v974, %v979
    %v981 = vmul.f32 %v975, %v979
    %v982 = vlaneseq
    %v983 = vshrl.u32 %v982, 7
    %v984 = vsub.s32 0, %v983
    %v985 = vrot.slane %v949, %v984
    %v986 = vadd.f32 %v980, %v985
    %v987 = vadd.f32 %v981, %v985
    %s988 = scalar_lea.vmem %s5, 16
    %v989 = vld [vmem:[%s988] sm:$0xf]
    %v990 = vld [vmem:[%s988 + $0x4] sm:$0xf]
    %v991 = vld [vmem:[%s988 + $0x8] sm:$0xf]
    %v992 = vld [vmem:[%s988 + $0xc] sm:$0xf]
    %v993 = vpack.c.bf16 %v987, %v986
    %v994 = vld [vmem:[%s9 + $0x1] sm:$0x1]
    %v995 = vlaneseq
    %v996 = vshrl.u32 %v995, 7
    %v997 = vsub.s32 0, %v996
    %v998 = vrot.slane %v994, %v997
    %v1003 = vunpack.c.l.b16 %v989
    %v1004 = vunpack.c.l.b16 %v990
    %v1005 = vunpack.c.l.b16 %v991
    %v1006 = vunpack.c.l.b16 %v992
    %v1007 = vpack.c.b16 %v1004, %v1003
    %v1008 = vpack.c.b16 %v1006, %v1005
    %v1012 = vsel %vm151, %v993, 0
    %1014 = vmatprep.subr.bf16.mxu0 0
    %1015 = vmatpush1.bf16.msra.mxu0 %v1007
    %1016 = vmatprep.subr.bf16.mxu0 0
    %1017 = vmatpush1.bf16.msra.mxu0 %v1008
    %1018 = vmatprep.subr.bf16.mxu0 0
    %1019 = vmatpush1.bf16.msra.mxu0 0
    %1020 = vmatprep.subr.bf16.mxu0 0
    %1021 = vmatpush1.bf16.msra.mxu0 0
    %1022 = vmatprep.subr.bf16.mxu0 0
    %1023 = vmatpush1.bf16.msra.mxu0 0
    %1024 = vmatprep.subr.bf16.mxu0 0
    %1025 = vmatpush1.bf16.msra.mxu0 0
    %1026 = vmatprep.subr.bf16.mxu0 0
    %1027 = vmatpush1.bf16.msra.mxu0 0
    %1028 = vmatprep.subr.bf16.mxu0 0
    %1029 = vmatpush1.bf16.msra.mxu0 0
    %1030 = vmatprep.subr.bf16.mxu0 0
    %1031 = vmatpush1.bf16.msra.mxu0 0
    %1032 = vmatprep.subr.bf16.mxu0 0
    %1033 = vmatpush1.bf16.msra.mxu0 0
    %1034 = vmatprep.subr.bf16.mxu0 0
    %1035 = vmatpush1.bf16.msra.mxu0 0
    %1036 = vmatprep.subr.bf16.mxu0 0
    %1037 = vmatpush1.bf16.msra.mxu0 0
    %1038 = vmatprep.subr.bf16.mxu0 0
    %1039 = vmatpush1.bf16.msra.mxu0 0
    %1040 = vmatprep.subr.bf16.mxu0 0
    %1041 = vmatpush1.bf16.msra.mxu0 0
    %1042 = vmatprep.subr.bf16.mxu0 0
    %1043 = vmatpush1.bf16.msra.mxu0 0
    %1044 = vmatprep.subr.bf16.mxu0 0
    %1045 = vmatpush1.bf16.msra.mxu0 0
    %1046 = vmatprep.mubr.bf16.mxu0 0
    %1047 = vmatmul.mubr.bf16.gmra.mrb[0].mxu0 %v1012
    %v1048 = vpop.f32.mrb[0].mxu0
    %v1049 = vadd.f32 %v998, %v1048
    %v1050 = vpop.f32.mrb[0].mxu0
    %v1051 = vpop.f32.mrb[0].mxu0
    %v1052 = vadd.f32 %v998, %v1051
    %v1053 = vpop.f32.mrb[0].mxu0
    %1054 = vdwg.mxu0
    %s1055 = scalar_lea.vmem %s6, 16
    %v1056 = vld [vmem:[%s1055] sm:$0xf]
    %v1057 = vld [vmem:[%s1055 + $0x4] sm:$0xf]
    %v1058 = vld [vmem:[%s1055 + $0x8] sm:$0xf]
    %v1059 = vld [vmem:[%s1055 + $0xc] sm:$0xf]
    %v1060 = vld [vmem:[%s4 + $0x2a] sm:$0x1]
    %v1061 = vmul.f32 %v1049, %v423
    %v1062 = vmul.f32 %v1052, %v425
    %v1063 = vmul.f32 %v1049, %v427
    %v1064 = vmul.f32 %v1052, %v429
    %v1065 = vmul.f32 %v1049, %v431
    %v1066 = vmul.f32 %v1052, %v433
    %v1067 = vmul.f32 %v1049, %v435
    %v1068 = vmul.f32 %v1052, %v437
    %v1069 = vmul.f32 %v1049, %v455
    %v1070 = vmul.f32 %v1052, %v457
    %v1071 = vmul.f32 %v1049, %v459
    %v1072 = vmul.f32 %v1052, %v461
    %v1073 = vmul.f32 %v1049, %v463
    %v1074 = vmul.f32 %v1052, %v465
    %v1075 = vmul.f32 %v1049, %v467
    %v1076 = vmul.f32 %v1052, %v469
    %v1077 = vmul.f32 %v1049, 0.35355338
    %v1078 = vmul.f32 %v1052, 0.35355338
    %v1079 = vpack.c.bf16 %v1078, %v1077
    %v1080 = vpack.c.bf16 %v1062, %v1061
    %v1081 = vpack.c.bf16 %v1064, %v1063
    %v1082 = vpack.c.bf16 %v1066, %v1065
    %v1083 = vpack.c.bf16 %v1068, %v1067
    %1088 = vrot.lane.b32.xlu0 %v1080, 96
    %v1089 = vpop.permute.xlu0 %1088
    %1090 = vrot.lane.b32.xlu0 %v1081, 96
    %v1091 = vpop.permute.xlu0 %1090
    %1092 = vrot.lane.b32.xlu0 %v1082, 96
    %v1093 = vpop.permute.xlu0 %1092
    %1094 = vrot.lane.b32.xlu0 %v1083, 96
    %v1095 = vpop.permute.xlu0 %1094
    %v1097 = vsel %vm151, %v1079, 0
    %v1100 = vsel %vm151, %v1089, 0
    %v1103 = vsel %vm151, %v1091, 0
    %v1106 = vsel %vm151, %v1093, 0
    %v1109 = vsel %vm151, %v1095, 0
    %1111 = vmatprep.subr.bf16.mxu0 0
    %1112 = vmatpush1.bf16.xpose.msra.mxu0 %v1100
    %1113 = vmatprep.subr.bf16.mxu0 0
    %1114 = vmatpush1.bf16.xpose.msra.mxu0 %v1103
    %1115 = vmatprep.subr.bf16.mxu0 0
    %1116 = vmatpush1.bf16.xpose.msra.mxu0 %v1106
    %1117 = vmatprep.subr.bf16.mxu0 0
    %1118 = vmatpush1.bf16.xpose.msra.mxu0 %v1109
    %1119 = vmatprep.subr.bf16.mxu0 0
    %1120 = vmatpush1.bf16.xpose.msra.mxu0 0
    %1121 = vmatprep.subr.bf16.mxu0 0
    %1122 = vmatpush1.bf16.xpose.msra.mxu0 0
    %1123 = vmatprep.subr.bf16.mxu0 0
    %1124 = vmatpush1.bf16.xpose.msra.mxu0 0
    %1125 = vmatprep.subr.bf16.mxu0 0
    %1126 = vmatpush1.bf16.xpose.msra.mxu0 0
    %1127 = vmatprep.subr.bf16.mxu0 0
    %1128 = vmatpush1.bf16.xpose.msra.mxu0 0
    %1129 = vmatprep.subr.bf16.mxu0 0
    %1130 = vmatpush1.bf16.xpose.msra.mxu0 0
    %1131 = vmatprep.subr.bf16.mxu0 0
    %1132 = vmatpush1.bf16.xpose.msra.mxu0 0
    %1133 = vmatprep.subr.bf16.mxu0 0
    %1134 = vmatpush1.bf16.xpose.msra.mxu0 0
    %1135 = vmatprep.subr.bf16.mxu0 0
    %1136 = vmatpush1.bf16.xpose.msra.mxu0 0
    %1137 = vmatprep.subr.bf16.mxu0 0
    %1138 = vmatpush1.bf16.xpose.msra.mxu0 0
    %1139 = vmatprep.subr.bf16.mxu0 0
    %1140 = vmatpush1.bf16.xpose.msra.mxu0 0
    %1141 = vmatprep.subr.bf16.mxu0 0
    %1142 = vmatpush1.bf16.xpose.msra.mxu0 0
    %1143 = vmatprep.mubr.bf16.mxu0 0
    %1144 = vmatmul.mubr.bf16.gmra.mrb[0].mxu0 %v1097
    %v1145 = vpop.f32.mrb[0].mxu0
    %v1146 = vadd.f32 %v339, %v1145
    %v1147 = vpop.f32.mrb[0].mxu0
    %v1148 = vpop.f32.mrb[0].mxu0
    %v1149 = vadd.f32 %v340, %v1148
    %v1150 = vpop.f32.mrb[0].mxu0
    %1151 = vdwg.mxu0
    %v1152 = vsel %vm561, %v1146, -inf
    %1153 = vmax.xlane.f32.xlu0 %v1152
    %v1154 = vpop.xlane.xlu0 %1153
    %v1155 = vsel %vm561, %v1149, -inf
    %1156 = vmax.xlane.f32.xlu0 %v1155
    %v1157 = vpop.xlane.xlu0 %1156
    %v1158 = vsub.f32 %v1146, %v1154
    %v1159 = vsub.f32 %v1149, %v1157
    %v1160 = vmul.f32 %v1158, 1.442695
    %v1161 = vpow.pop %v1160
    %v1162 = vmul.f32 %v1159, 1.442695
    %v1163 = vpow.pop %v1162
    %1172 = vrot.lane.b32.xlu0 %v1069, 64
    %v1173 = vpop.permute.xlu0 %1172
    %1174 = vrot.lane.b32.xlu0 %v1070, 64
    %v1175 = vpop.permute.xlu0 %1174
    %1176 = vrot.lane.b32.xlu0 %v1071, 64
    %v1177 = vpop.permute.xlu0 %1176
    %1178 = vrot.lane.b32.xlu0 %v1072, 64
    %v1179 = vpop.permute.xlu0 %1178
    %1180 = vrot.lane.b32.xlu0 %v1073, 64
    %v1181 = vpop.permute.xlu0 %1180
    %1182 = vrot.lane.b32.xlu0 %v1074, 64
    %v1183 = vpop.permute.xlu0 %1182
    %1184 = vrot.lane.b32.xlu0 %v1075, 64
    %v1185 = vpop.permute.xlu0 %1184
    %1186 = vrot.lane.b32.xlu0 %v1076, 64
    %v1187 = vpop.permute.xlu0 %1186
    %v1196 = vsel %vm151, %v1173, %v423
    %v1197 = vsel %vm151, %v1175, %v425
    %v1198 = vsel %vm151, %v1177, %v427
    %v1199 = vsel %vm151, %v1179, %v429
    %v1200 = vsel %vm151, %v1181, %v431
    %v1201 = vsel %vm151, %v1183, %v433
    %v1202 = vsel %vm151, %v1185, %v435
    %v1203 = vsel %vm151, %v1187, %v437
    %v1204 = vpack.c.bf16 %v1163, %v1161
    %v1205 = vpack.c.bf16 %v1197, %v1196
    %v1206 = vpack.c.bf16 %v1199, %v1198
    %v1207 = vpack.c.bf16 %v1201, %v1200
    %v1208 = vpack.c.bf16 %v1203, %v1202
    %v1210 = vsel %vm561, %v1204, 0
    %1212 = vmatprep.subr.bf16.mxu0 0
    %1213 = vmatpush1.bf16.msra.mxu0 %v1205
    %1214 = vmatprep.subr.bf16.mxu0 0
    %1215 = vmatpush1.bf16.msra.mxu0 %v1206
    %1216 = vmatprep.subr.bf16.mxu0 0
    %1217 = vmatpush1.bf16.msra.mxu0 %v1207
    %1218 = vmatprep.subr.bf16.mxu0 0
    %1219 = vmatpush1.bf16.msra.mxu0 %v1208
    %1220 = vmatprep.subr.bf16.mxu0 0
    %1221 = vmatpush1.bf16.msra.mxu0 0
    %1222 = vmatprep.subr.bf16.mxu0 0
    %1223 = vmatpush1.bf16.msra.mxu0 0
    %1224 = vmatprep.subr.bf16.mxu0 0
    %1225 = vmatpush1.bf16.msra.mxu0 0
    %1226 = vmatprep.subr.bf16.mxu0 0
    %1227 = vmatpush1.bf16.msra.mxu0 0
    %1228 = vmatprep.subr.bf16.mxu0 0
    %1229 = vmatpush1.bf16.msra.mxu0 0
    %1230 = vmatprep.subr.bf16.mxu0 0
    %1231 = vmatpush1.bf16.msra.mxu0 0
    %1232 = vmatprep.subr.bf16.mxu0 0
    %1233 = vmatpush1.bf16.msra.mxu0 0
    %1234 = vmatprep.subr.bf16.mxu0 0
    %1235 = vmatpush1.bf16.msra.mxu0 0
    %1236 = vmatprep.subr.bf16.mxu0 0
    %1237 = vmatpush1.bf16.msra.mxu0 0
    %1238 = vmatprep.subr.bf16.mxu0 0
    %1239 = vmatpush1.bf16.msra.mxu0 0
    %1240 = vmatprep.subr.bf16.mxu0 0
    %1241 = vmatpush1.bf16.msra.mxu0 0
    %1242 = vmatprep.subr.bf16.mxu0 0
    %1243 = vmatpush1.bf16.msra.mxu0 0
    %1244 = vmatprep.mubr.bf16.mxu0 0
    %1245 = vmatmul.mubr.bf16.gmra.mrb[0].mxu0 %v1210
    %v1246 = vpop.f32.mrb[0].mxu0
    %v1247 = vadd.f32 0.0, %v1246
    %v1248 = vpop.f32.mrb[0].mxu0
    %v1249 = vpop.f32.mrb[0].mxu0
    %v1250 = vadd.f32 0.0, %v1249
    %v1251 = vpop.f32.mrb[0].mxu0
    %1252 = vdwg.mxu0
    %v1253 = vmax.f32 %v1247, 1e-30
    %v1254 = vmax.f32 %v1250, 1e-30
    %1257 = vrot.lane.b32.xlu0 %v1253, 96
    %v1258 = vpop.permute.xlu0 %1257
    %1259 = vrot.lane.b32.xlu0 %v1254, 96
    %v1260 = vpop.permute.xlu0 %1259
    %v1263 = vrcp.pop %v1258
    %v1264 = vmul.f32 %v1247, %v1263
    %v1265 = vrcp.pop %v1260
    %v1266 = vmul.f32 %v1250, %v1265
    %v1267 = vpack.c.bf16 %v1266, %v1264
    %v1268 = vlaneseq
    %v1269 = vshrl.u32 %v1268, 7
    %v1270 = vsub.s32 0, %v1269
    %v1271 = vrot.slane %v1060, %v1270
    %v1276 = vunpack.c.l.b16 %v1056
    %v1277 = vunpack.c.l.b16 %v1057
    %v1278 = vunpack.c.l.b16 %v1058
    %v1279 = vunpack.c.l.b16 %v1059
    %v1280 = vpack.c.b16 %v1277, %v1276
    %v1281 = vpack.c.b16 %v1279, %v1278
    %v1285 = vsel %vm151, %v1267, 0
    %1287 = vmatprep.subr.bf16.mxu0 0
    %1288 = vmatpush1.bf16.msra.mxu0 %v1280
    %1289 = vmatprep.subr.bf16.mxu0 0
    %1290 = vmatpush1.bf16.msra.mxu0 %v1281
    %1291 = vmatprep.subr.bf16.mxu0 0
    %1292 = vmatpush1.bf16.msra.mxu0 0
    %1293 = vmatprep.subr.bf16.mxu0 0
    %1294 = vmatpush1.bf16.msra.mxu0 0
    %1295 = vmatprep.subr.bf16.mxu0 0
    %1296 = vmatpush1.bf16.msra.mxu0 0
    %1297 = vmatprep.subr.bf16.mxu0 0
    %1298 = vmatpush1.bf16.msra.mxu0 0
    %1299 = vmatprep.subr.bf16.mxu0 0
    %1300 = vmatpush1.bf16.msra.mxu0 0
    %1301 = vmatprep.subr.bf16.mxu0 0
    %1302 = vmatpush1.bf16.msra.mxu0 0
    %1303 = vmatprep.subr.bf16.mxu0 0
    %1304 = vmatpush1.bf16.msra.mxu0 0
    %1305 = vmatprep.subr.bf16.mxu0 0
    %1306 = vmatpush1.bf16.msra.mxu0 0
    %1307 = vmatprep.subr.bf16.mxu0 0
    %1308 = vmatpush1.bf16.msra.mxu0 0
    %1309 = vmatprep.subr.bf16.mxu0 0
    %1310 = vmatpush1.bf16.msra.mxu0 0
    %1311 = vmatprep.subr.bf16.mxu0 0
    %1312 = vmatpush1.bf16.msra.mxu0 0
    %1313 = vmatprep.subr.bf16.mxu0 0
    %1314 = vmatpush1.bf16.msra.mxu0 0
    %1315 = vmatprep.subr.bf16.mxu0 0
    %1316 = vmatpush1.bf16.msra.mxu0 0
    %1317 = vmatprep.subr.bf16.mxu0 0
    %1318 = vmatpush1.bf16.msra.mxu0 0
    %1319 = vmatprep.mubr.bf16.mxu0 0
    %1320 = vmatmul.mubr.bf16.gmra.mrb[0].mxu0 %v1285
    %v1321 = vpop.f32.mrb[0].mxu0
    %v1322 = vadd.f32 %v1271, %v1321
    %v1323 = vpop.f32.mrb[0].mxu0
    %v1324 = vpop.f32.mrb[0].mxu0
    %v1325 = vadd.f32 %v1271, %v1324
    %v1326 = vpop.f32.mrb[0].mxu0
    %1327 = vdwg.mxu0
    %v1328 = vadd.f32 %v986, %v1322
    %v1329 = vadd.f32 %v987, %v1325
    %v1330 = vld [vmem:[%s4 + $0x2b] sm:$0x1]
    %v1331 = vld [vmem:[%s4 + $0x2c] sm:$0x1]
    %v1332 = vsel %vm151, %v1328, 0.0
    %1333 = vadd.xlane.f32.xlu0 %v1332
    %v1334 = vpop.xlane.xlu0 %1333
    %v1335 = vsel %vm151, %v1329, 0.0
    %1336 = vadd.xlane.f32.xlu0 %v1335
    %v1337 = vpop.xlane.xlu0 %1336
    %v1338 = vmul.f32 %v1334, %v158
    %v1339 = vmul.f32 %v1337, %v158
    %v1340 = vsub.f32 %v1328, %v1338
    %v1341 = vsub.f32 %v1329, %v1339
    %v1342 = vmul.f32 %v1340, %v1340
    %v1343 = vmul.f32 %v1341, %v1341
    %v1344 = vsel %vm151, %v1342, 0.0
    %1345 = vadd.xlane.f32.xlu0 %v1344
    %v1346 = vpop.xlane.xlu0 %1345
    %v1347 = vsel %vm151, %v1343, 0.0
    %1348 = vadd.xlane.f32.xlu0 %v1347
    %v1349 = vpop.xlane.xlu0 %1348
    %v1350 = vmul.f32 %v1346, %v158
    %v1351 = vmul.f32 %v1349, %v158
    %v1352 = vadd.f32 %v1350, 1e-12
    %v1353 = vadd.f32 %v1351, 1e-12
    %v1354 = vrsqrt.pop %v1352
    %v1355 = vrsqrt.pop %v1353
    %v1356 = vmul.f32 %v1340, %v1354
    %v1357 = vmul.f32 %v1341, %v1355
    %v1358 = vlaneseq
    %v1359 = vshrl.u32 %v1358, 7
    %v1360 = vsub.s32 0, %v1359
    %v1361 = vrot.slane %v1330, %v1360
    %v1362 = vmul.f32 %v1356, %v1361
    %v1363 = vmul.f32 %v1357, %v1361
    %v1364 = vlaneseq
    %v1365 = vshrl.u32 %v1364, 7
    %v1366 = vsub.s32 0, %v1365
    %v1367 = vrot.slane %v1331, %v1366
    %v1368 = vadd.f32 %v1362, %v1367
    %v1369 = vadd.f32 %v1363, %v1367
    %s1370 = scalar_lea.vmem %s7, 16
    %v1371 = vld [vmem:[%s1370] sm:$0xf]
    %v1372 = vld [vmem:[%s1370 + $0x4] sm:$0xf]
    %v1373 = vld [vmem:[%s1370 + $0x8] sm:$0xf]
    %v1374 = vld [vmem:[%s1370 + $0xc] sm:$0xf]
    %v1375 = vld [vmem:[%s10 + $0x1] sm:$0x1]
    %s1376 = scalar_lea.vmem %s8, 32
    %v1377 = vld [vmem:[%s1376] sm:$0xf]
    %v1378 = vld [vmem:[%s1376 + $0x4] sm:$0xf]
    %v1379 = vld [vmem:[%s1376 + $0x8] sm:$0xf]
    %v1380 = vld [vmem:[%s1376 + $0xc] sm:$0xf]
    %v1381 = vld [vmem:[%s1376 + $0x10] sm:$0xf]
    %v1382 = vld [vmem:[%s1376 + $0x14] sm:$0xf]
    %v1383 = vld [vmem:[%s1376 + $0x18] sm:$0xf]
    %v1384 = vld [vmem:[%s1376 + $0x1c] sm:$0xf]
    %v1385 = vld [vmem:[%s4 + $0x2d] sm:$0x1]
    %v1386 = vpack.c.bf16 %v1369, %v1368
    %v1387 = vlaneseq
    %v1388 = vshrl.u32 %v1387, 7
    %v1389 = vsub.s32 0, %v1388
    %v1390 = vrot.slane %v1375, %v1389
    %v1395 = vunpack.c.l.b16 %v1371
    %v1396 = vunpack.c.l.b16 %v1372
    %v1397 = vunpack.c.l.b16 %v1373
    %v1398 = vunpack.c.l.b16 %v1374
    %v1399 = vpack.c.b16 %v1396, %v1395
    %v1400 = vpack.c.b16 %v1398, %v1397
    %v1404 = vsel %vm151, %v1386, 0
    %1406 = vmatprep.subr.bf16.mxu0 0
    %1407 = vmatpush1.bf16.msra.mxu0 %v1399
    %1408 = vmatprep.subr.bf16.mxu0 0
    %1409 = vmatpush1.bf16.msra.mxu0 %v1400
    %1410 = vmatprep.subr.bf16.mxu0 0
    %1411 = vmatpush1.bf16.msra.mxu0 0
    %1412 = vmatprep.subr.bf16.mxu0 0
    %1413 = vmatpush1.bf16.msra.mxu0 0
    %1414 = vmatprep.subr.bf16.mxu0 0
    %1415 = vmatpush1.bf16.msra.mxu0 0
    %1416 = vmatprep.subr.bf16.mxu0 0
    %1417 = vmatpush1.bf16.msra.mxu0 0
    %1418 = vmatprep.subr.bf16.mxu0 0
    %1419 = vmatpush1.bf16.msra.mxu0 0
    %1420 = vmatprep.subr.bf16.mxu0 0
    %1421 = vmatpush1.bf16.msra.mxu0 0
    %1422 = vmatprep.subr.bf16.mxu0 0
    %1423 = vmatpush1.bf16.msra.mxu0 0
    %1424 = vmatprep.subr.bf16.mxu0 0
    %1425 = vmatpush1.bf16.msra.mxu0 0
    %1426 = vmatprep.subr.bf16.mxu0 0
    %1427 = vmatpush1.bf16.msra.mxu0 0
    %1428 = vmatprep.subr.bf16.mxu0 0
    %1429 = vmatpush1.bf16.msra.mxu0 0
    %1430 = vmatprep.subr.bf16.mxu0 0
    %1431 = vmatpush1.bf16.msra.mxu0 0
    %1432 = vmatprep.subr.bf16.mxu0 0
    %1433 = vmatpush1.bf16.msra.mxu0 0
    %1434 = vmatprep.subr.bf16.mxu0 0
    %1435 = vmatpush1.bf16.msra.mxu0 0
    %1436 = vmatprep.subr.bf16.mxu0 0
    %1437 = vmatpush1.bf16.msra.mxu0 0
    %1438 = vmatprep.mubr.bf16.mxu0 0
    %1439 = vmatmul.mubr.bf16.gmra.mrb[0].mxu0 %v1404
    %v1440 = vpop.f32.mrb[0].mxu0
    %v1441 = vadd.f32 %v1390, %v1440
    %v1442 = vpop.f32.mrb[0].mxu0
    %v1443 = vpop.f32.mrb[0].mxu0
    %v1444 = vadd.f32 %v1390, %v1443
    %v1445 = vpop.f32.mrb[0].mxu0
    %1446 = vdwg.mxu0
    %v1447 = vmul.f32 %v1441, 0.5
    %v1448 = vmul.f32 %v1444, 0.5
    %v1449 = vmul.f32 %v1441, 0.044715
    %v1450 = vmul.f32 %v1444, 0.044715
    %v1451 = vmul.f32 %v1449, %v1441
    %v1452 = vmul.f32 %v1450, %v1444
    %v1453 = vmul.f32 %v1451, %v1441
    %v1454 = vmul.f32 %v1452, %v1444
    %v1455 = vadd.f32 %v1441, %v1453
    %v1456 = vadd.f32 %v1444, %v1454
    %v1457 = vmul.f32 %v1455, 0.7978846
    %v1458 = vmul.f32 %v1456, 0.7978846
    %v1459 = vtanh.pop %v1457
    %v1460 = vtanh.pop %v1458
    %v1461 = vadd.f32 %v1459, 1.0
    %v1462 = vadd.f32 %v1460, 1.0
    %v1463 = vmul.f32 %v1447, %v1461
    %v1464 = vmul.f32 %v1448, %v1462
    %v1465 = vpack.c.bf16 %v1464, %v1463
    %v1466 = vlaneseq
    %v1467 = vshrl.u32 %v1466, 7
    %v1468 = vsub.s32 0, %v1467
    %v1469 = vrot.slane %v1385, %v1468
    %v1478 = vunpack.c.l.b16 %v1377
    %v1479 = vunpack.c.l.b16 %v1378
    %v1480 = vunpack.c.l.b16 %v1379
    %v1481 = vunpack.c.l.b16 %v1380
    %v1482 = vunpack.c.l.b16 %v1381
    %v1483 = vunpack.c.l.b16 %v1382
    %v1484 = vunpack.c.l.b16 %v1383
    %v1485 = vunpack.c.l.b16 %v1384
    %v1486 = vpack.c.b16 %v1479, %v1478
    %v1487 = vpack.c.b16 %v1481, %v1480
    %v1488 = vpack.c.b16 %v1483, %v1482
    %v1489 = vpack.c.b16 %v1485, %v1484
    %v1495 = vsel %vm561, %v1465, 0
    %1497 = vmatprep.subr.bf16.mxu0 0
    %1498 = vmatpush1.bf16.msra.mxu0 %v1486
    %1499 = vmatprep.subr.bf16.mxu0 0
    %1500 = vmatpush1.bf16.msra.mxu0 %v1487
    %1501 = vmatprep.subr.bf16.mxu0 0
    %1502 = vmatpush1.bf16.msra.mxu0 %v1488
    %1503 = vmatprep.subr.bf16.mxu0 0
    %1504 = vmatpush1.bf16.msra.mxu0 %v1489
    %1505 = vmatprep.subr.bf16.mxu0 0
    %1506 = vmatpush1.bf16.msra.mxu0 0
    %1507 = vmatprep.subr.bf16.mxu0 0
    %1508 = vmatpush1.bf16.msra.mxu0 0
    %1509 = vmatprep.subr.bf16.mxu0 0
    %1510 = vmatpush1.bf16.msra.mxu0 0
    %1511 = vmatprep.subr.bf16.mxu0 0
    %1512 = vmatpush1.bf16.msra.mxu0 0
    %1513 = vmatprep.subr.bf16.mxu0 0
    %1514 = vmatpush1.bf16.msra.mxu0 0
    %1515 = vmatprep.subr.bf16.mxu0 0
    %1516 = vmatpush1.bf16.msra.mxu0 0
    %1517 = vmatprep.subr.bf16.mxu0 0
    %1518 = vmatpush1.bf16.msra.mxu0 0
    %1519 = vmatprep.subr.bf16.mxu0 0
    %1520 = vmatpush1.bf16.msra.mxu0 0
    %1521 = vmatprep.subr.bf16.mxu0 0
    %1522 = vmatpush1.bf16.msra.mxu0 0
    %1523 = vmatprep.subr.bf16.mxu0 0
    %1524 = vmatpush1.bf16.msra.mxu0 0
    %1525 = vmatprep.subr.bf16.mxu0 0
    %1526 = vmatpush1.bf16.msra.mxu0 0
    %1527 = vmatprep.subr.bf16.mxu0 0
    %1528 = vmatpush1.bf16.msra.mxu0 0
    %1529 = vmatprep.mubr.bf16.mxu0 0
    %1530 = vmatmul.mubr.bf16.gmra.mrb[0].mxu0 %v1495
    %v1531 = vpop.f32.mrb[0].mxu0
    %v1532 = vadd.f32 %v1469, %v1531
    %v1533 = vpop.f32.mrb[0].mxu0
    %v1534 = vpop.f32.mrb[0].mxu0
    %v1535 = vadd.f32 %v1469, %v1534
    %v1536 = vpop.f32.mrb[0].mxu0
    %1537 = vdwg.mxu0
    %v1538 = vadd.f32 %v1368, %v1532
    %v1539 = vadd.f32 %v1369, %v1535
    %v1540 = vld [vmem:[%s4 + $0x2e] sm:$0x1]
    %v1541 = vld [vmem:[%s4 + $0x2f] sm:$0x1]
    %v1542 = vsel %vm151, %v1538, 0.0
    %1543 = vadd.xlane.f32.xlu0 %v1542
    %v1544 = vpop.xlane.xlu0 %1543
    %v1545 = vsel %vm151, %v1539, 0.0
    %1546 = vadd.xlane.f32.xlu0 %v1545
    %v1547 = vpop.xlane.xlu0 %1546
    %v1548 = vmul.f32 %v1544, %v158
    %v1549 = vmul.f32 %v1547, %v158
    %v1550 = vsub.f32 %v1538, %v1548
    %v1551 = vsub.f32 %v1539, %v1549
    %v1552 = vmul.f32 %v1550, %v1550
    %v1553 = vmul.f32 %v1551, %v1551
    %v1554 = vsel %vm151, %v1552, 0.0
    %1555 = vadd.xlane.f32.xlu0 %v1554
    %v1556 = vpop.xlane.xlu0 %1555
    %v1557 = vsel %vm151, %v1553, 0.0
    %1558 = vadd.xlane.f32.xlu0 %v1557
    %v1559 = vpop.xlane.xlu0 %1558
    %v1560 = vmul.f32 %v1556, %v158
    %v1561 = vmul.f32 %v1559, %v158
    %v1562 = vadd.f32 %v1560, 1e-12
    %v1563 = vadd.f32 %v1561, 1e-12
    %v1564 = vrsqrt.pop %v1562
    %v1565 = vrsqrt.pop %v1563
    %v1566 = vmul.f32 %v1550, %v1564
    %v1567 = vmul.f32 %v1551, %v1565
    %v1568 = vlaneseq
    %v1569 = vshrl.u32 %v1568, 7
    %v1570 = vsub.s32 0, %v1569
    %v1571 = vrot.slane %v1540, %v1570
    %v1572 = vmul.f32 %v1566, %v1571
    %v1573 = vmul.f32 %v1567, %v1571
    %v1574 = vlaneseq
    %v1575 = vshrl.u32 %v1574, 7
    %v1576 = vsub.s32 0, %v1575
    %v1577 = vrot.slane %v1541, %v1576
    %v1578 = vadd.f32 %v1572, %v1577
    %v1579 = vadd.f32 %v1573, %v1577
    %s1580 = scalar_lea.vmem %s5, 32
    %v1581 = vld [vmem:[%s1580] sm:$0xf]
    %v1582 = vld [vmem:[%s1580 + $0x4] sm:$0xf]
    %v1583 = vld [vmem:[%s1580 + $0x8] sm:$0xf]
    %v1584 = vld [vmem:[%s1580 + $0xc] sm:$0xf]
    %v1585 = vpack.c.bf16 %v190, %v189
    %v1586 = vld [vmem:[%s9 + $0x2] sm:$0x1]
    %v1587 = vlaneseq
    %v1588 = vshrl.u32 %v1587, 7
    %v1589 = vsub.s32 0, %v1588
    %v1590 = vrot.slane %v1586, %v1589
    %v1595 = vunpack.c.l.b16 %v1581
    %v1596 = vunpack.c.l.b16 %v1582
    %v1597 = vunpack.c.l.b16 %v1583
    %v1598 = vunpack.c.l.b16 %v1584
    %v1599 = vpack.c.b16 %v1596, %v1595
    %v1600 = vpack.c.b16 %v1598, %v1597
    %v1604 = vsel %vm151, %v1585, 0
    %1606 = vmatprep.subr.bf16.mxu0 0
    %1607 = vmatpush1.bf16.msra.mxu0 %v1599
    %1608 = vmatprep.subr.bf16.mxu0 0
    %1609 = vmatpush1.bf16.msra.mxu0 %v1600
    %1610 = vmatprep.subr.bf16.mxu0 0
    %1611 = vmatpush1.bf16.msra.mxu0 0
    %1612 = vmatprep.subr.bf16.mxu0 0
    %1613 = vmatpush1.bf16.msra.mxu0 0
    %1614 = vmatprep.subr.bf16.mxu0 0
    %1615 = vmatpush1.bf16.msra.mxu0 0
    %1616 = vmatprep.subr.bf16.mxu0 0
    %1617 = vmatpush1.bf16.msra.mxu0 0
    %1618 = vmatprep.subr.bf16.mxu0 0
    %1619 = vmatpush1.bf16.msra.mxu0 0
    %1620 = vmatprep.subr.bf16.mxu0 0
    %1621 = vmatpush1.bf16.msra.mxu0 0
    %1622 = vmatprep.subr.bf16.mxu0 0
    %1623 = vmatpush1.bf16.msra.mxu0 0
    %1624 = vmatprep.subr.bf16.mxu0 0
    %1625 = vmatpush1.bf16.msra.mxu0 0
    %1626 = vmatprep.subr.bf16.mxu0 0
    %1627 = vmatpush1.bf16.msra.mxu0 0
    %1628 = vmatprep.subr.bf16.mxu0 0
    %1629 = vmatpush1.bf16.msra.mxu0 0
    %1630 = vmatprep.subr.bf16.mxu0 0
    %1631 = vmatpush1.bf16.msra.mxu0 0
    %1632 = vmatprep.subr.bf16.mxu0 0
    %1633 = vmatpush1.bf16.msra.mxu0 0
    %1634 = vmatprep.subr.bf16.mxu0 0
    %1635 = vmatpush1.bf16.msra.mxu0 0
    %1636 = vmatprep.subr.bf16.mxu0 0
    %1637 = vmatpush1.bf16.msra.mxu0 0
    %1638 = vmatprep.mubr.bf16.mxu0 0
    %1639 = vmatmul.mubr.bf16.gmra.mrb[0].mxu0 %v1604
    %v1640 = vpop.f32.mrb[0].mxu0
    %v1641 = vadd.f32 %v1590, %v1640
    %v1642 = vpop.f32.mrb[0].mxu0
    %v1643 = vpop.f32.mrb[0].mxu0
    %v1644 = vadd.f32 %v1590, %v1643
    %v1645 = vpop.f32.mrb[0].mxu0
    %1646 = vdwg.mxu0
    %s1647 = scalar_lea.vmem %s6, 32
    %v1648 = vld [vmem:[%s1647] sm:$0xf]
    %v1649 = vld [vmem:[%s1647 + $0x4] sm:$0xf]
    %v1650 = vld [vmem:[%s1647 + $0x8] sm:$0xf]
    %v1651 = vld [vmem:[%s1647 + $0xc] sm:$0xf]
    %v1652 = vld [vmem:[%s4 + $0x30] sm:$0x1]
    %1661 = vrot.lane.b32.xlu0 %v321, 32
    %v1662 = vpop.permute.xlu0 %1661
    %1663 = vrot.lane.b32.xlu0 %v322, 32
    %v1664 = vpop.permute.xlu0 %1663
    %1665 = vrot.lane.b32.xlu0 %v323, 32
    %v1666 = vpop.permute.xlu0 %1665
    %1667 = vrot.lane.b32.xlu0 %v324, 32
    %v1668 = vpop.permute.xlu0 %1667
    %1669 = vrot.lane.b32.xlu0 %v325, 32
    %v1670 = vpop.permute.xlu0 %1669
    %1671 = vrot.lane.b32.xlu0 %v326, 32
    %v1672 = vpop.permute.xlu0 %1671
    %1673 = vrot.lane.b32.xlu0 %v327, 32
    %v1674 = vpop.permute.xlu0 %1673
    %1675 = vrot.lane.b32.xlu0 %v328, 32
    %v1676 = vpop.permute.xlu0 %1675
    %v1685 = vmul.f32 %v1641, %v1662
    %v1686 = vmul.f32 %v1644, %v1664
    %v1687 = vmul.f32 %v1641, %v1666
    %v1688 = vmul.f32 %v1644, %v1668
    %v1689 = vmul.f32 %v1641, %v1670
    %v1690 = vmul.f32 %v1644, %v1672
    %v1691 = vmul.f32 %v1641, %v1674
    %v1692 = vmul.f32 %v1644, %v1676
    %1693 = vrot.lane.b32.xlu0 %v321, 64
    %v1694 = vpop.permute.xlu0 %1693
    %1695 = vrot.lane.b32.xlu0 %v322, 64
    %v1696 = vpop.permute.xlu0 %1695
    %1697 = vrot.lane.b32.xlu0 %v323, 64
    %v1698 = vpop.permute.xlu0 %1697
    %1699 = vrot.lane.b32.xlu0 %v324, 64
    %v1700 = vpop.permute.xlu0 %1699
    %1701 = vrot.lane.b32.xlu0 %v325, 64
    %v1702 = vpop.permute.xlu0 %1701
    %1703 = vrot.lane.b32.xlu0 %v326, 64
    %v1704 = vpop.permute.xlu0 %1703
    %1705 = vrot.lane.b32.xlu0 %v327, 64
    %v1706 = vpop.permute.xlu0 %1705
    %1707 = vrot.lane.b32.xlu0 %v328, 64
    %v1708 = vpop.permute.xlu0 %1707
    %v1717 = vmul.f32 %v1641, %v1694
    %v1718 = vmul.f32 %v1644, %v1696
    %v1719 = vmul.f32 %v1641, %v1698
    %v1720 = vmul.f32 %v1644, %v1700
    %v1721 = vmul.f32 %v1641, %v1702
    %v1722 = vmul.f32 %v1644, %v1704
    %v1723 = vmul.f32 %v1641, %v1706
    %v1724 = vmul.f32 %v1644, %v1708
    %v1725 = vmul.f32 %v1641, 0.35355338
    %v1726 = vmul.f32 %v1644, 0.35355338
    %v1727 = vpack.c.bf16 %v1726, %v1725
    %v1728 = vpack.c.bf16 %v1686, %v1685
    %v1729 = vpack.c.bf16 %v1688, %v1687
    %v1730 = vpack.c.bf16 %v1690, %v1689
    %v1731 = vpack.c.bf16 %v1692, %v1691
    %1736 = vrot.lane.b32.xlu0 %v1728, 96
    %v1737 = vpop.permute.xlu0 %1736
    %1738 = vrot.lane.b32.xlu0 %v1729, 96
    %v1739 = vpop.permute.xlu0 %1738
    %1740 = vrot.lane.b32.xlu0 %v1730, 96
    %v1741 = vpop.permute.xlu0 %1740
    %1742 = vrot.lane.b32.xlu0 %v1731, 96
    %v1743 = vpop.permute.xlu0 %1742
    %v1745 = vsel %vm151, %v1727, 0
    %v1748 = vsel %vm151, %v1737, 0
    %v1751 = vsel %vm151, %v1739, 0
    %v1754 = vsel %vm151, %v1741, 0
    %v1757 = vsel %vm151, %v1743, 0
    %1759 = vmatprep.subr.bf16.mxu0 0
    %1760 = vmatpush1.bf16.xpose.msra.mxu0 %v1748
    %1761 = vmatprep.subr.bf16.mxu0 0
    %1762 = vmatpush1.bf16.xpose.msra.mxu0 %v1751
    %1763 = vmatprep.subr.bf16.mxu0 0
    %1764 = vmatpush1.bf16.xpose.msra.mxu0 %v1754
    %1765 = vmatprep.subr.bf16.mxu0 0
    %1766 = vmatpush1.bf16.xpose.msra.mxu0 %v1757
    %1767 = vmatprep.subr.bf16.mxu0 0
    %1768 = vmatpush1.bf16.xpose.msra.mxu0 0
    %1769 = vmatprep.subr.bf16.mxu0 0
    %1770 = vmatpush1.bf16.xpose.msra.mxu0 0
    %1771 = vmatprep.subr.bf16.mxu0 0
    %1772 = vmatpush1.bf16.xpose.msra.mxu0 0
    %1773 = vmatprep.subr.bf16.mxu0 0
    %1774 = vmatpush1.bf16.xpose.msra.mxu0 0
    %1775 = vmatprep.subr.bf16.mxu0 0
    %1776 = vmatpush1.bf16.xpose.msra.mxu0 0
    %1777 = vmatprep.subr.bf16.mxu0 0
    %1778 = vmatpush1.bf16.xpose.msra.mxu0 0
    %1779 = vmatprep.subr.bf16.mxu0 0
    %1780 = vmatpush1.bf16.xpose.msra.mxu0 0
    %1781 = vmatprep.subr.bf16.mxu0 0
    %1782 = vmatpush1.bf16.xpose.msra.mxu0 0
    %1783 = vmatprep.subr.bf16.mxu0 0
    %1784 = vmatpush1.bf16.xpose.msra.mxu0 0
    %1785 = vmatprep.subr.bf16.mxu0 0
    %1786 = vmatpush1.bf16.xpose.msra.mxu0 0
    %1787 = vmatprep.subr.bf16.mxu0 0
    %1788 = vmatpush1.bf16.xpose.msra.mxu0 0
    %1789 = vmatprep.subr.bf16.mxu0 0
    %1790 = vmatpush1.bf16.xpose.msra.mxu0 0
    %1791 = vmatprep.mubr.bf16.mxu0 0
    %1792 = vmatmul.mubr.bf16.gmra.mrb[0].mxu0 %v1745
    %v1793 = vpop.f32.mrb[0].mxu0
    %v1794 = vadd.f32 %v337, %v1793
    %v1795 = vpop.f32.mrb[0].mxu0
    %v1796 = vpop.f32.mrb[0].mxu0
    %v1797 = vadd.f32 %v338, %v1796
    %v1798 = vpop.f32.mrb[0].mxu0
    %1799 = vdwg.mxu0
    %v1800 = vsel %vm561, %v1794, -inf
    %1801 = vmax.xlane.f32.xlu0 %v1800
    %v1802 = vpop.xlane.xlu0 %1801
    %v1803 = vsel %vm561, %v1797, -inf
    %1804 = vmax.xlane.f32.xlu0 %v1803
    %v1805 = vpop.xlane.xlu0 %1804
    %v1806 = vsub.f32 %v1794, %v1802
    %v1807 = vsub.f32 %v1797, %v1805
    %v1808 = vmul.f32 %v1806, 1.442695
    %v1809 = vpow.pop %v1808
    %v1810 = vmul.f32 %v1807, 1.442695
    %v1811 = vpow.pop %v1810
    %1820 = vrot.lane.b32.xlu0 %v1717, 64
    %v1821 = vpop.permute.xlu0 %1820
    %1822 = vrot.lane.b32.xlu0 %v1718, 64
    %v1823 = vpop.permute.xlu0 %1822
    %1824 = vrot.lane.b32.xlu0 %v1719, 64
    %v1825 = vpop.permute.xlu0 %1824
    %1826 = vrot.lane.b32.xlu0 %v1720, 64
    %v1827 = vpop.permute.xlu0 %1826
    %1828 = vrot.lane.b32.xlu0 %v1721, 64
    %v1829 = vpop.permute.xlu0 %1828
    %1830 = vrot.lane.b32.xlu0 %v1722, 64
    %v1831 = vpop.permute.xlu0 %1830
    %1832 = vrot.lane.b32.xlu0 %v1723, 64
    %v1833 = vpop.permute.xlu0 %1832
    %1834 = vrot.lane.b32.xlu0 %v1724, 64
    %v1835 = vpop.permute.xlu0 %1834
    %v1844 = vsel %vm151, %v1821, %v1662
    %v1845 = vsel %vm151, %v1823, %v1664
    %v1846 = vsel %vm151, %v1825, %v1666
    %v1847 = vsel %vm151, %v1827, %v1668
    %v1848 = vsel %vm151, %v1829, %v1670
    %v1849 = vsel %vm151, %v1831, %v1672
    %v1850 = vsel %vm151, %v1833, %v1674
    %v1851 = vsel %vm151, %v1835, %v1676
    %v1852 = vpack.c.bf16 %v1811, %v1809
    %v1853 = vpack.c.bf16 %v1845, %v1844
    %v1854 = vpack.c.bf16 %v1847, %v1846
    %v1855 = vpack.c.bf16 %v1849, %v1848
    %v1856 = vpack.c.bf16 %v1851, %v1850
    %v1858 = vsel %vm561, %v1852, 0
    %1860 = vmatprep.subr.bf16.mxu0 0
    %1861 = vmatpush1.bf16.msra.mxu0 %v1853
    %1862 = vmatprep.subr.bf16.mxu0 0
    %1863 = vmatpush1.bf16.msra.mxu0 %v1854
    %1864 = vmatprep.subr.bf16.mxu0 0
    %1865 = vmatpush1.bf16.msra.mxu0 %v1855
    %1866 = vmatprep.subr.bf16.mxu0 0
    %1867 = vmatpush1.bf16.msra.mxu0 %v1856
    %1868 = vmatprep.subr.bf16.mxu0 0
    %1869 = vmatpush1.bf16.msra.mxu0 0
    %1870 = vmatprep.subr.bf16.mxu0 0
    %1871 = vmatpush1.bf16.msra.mxu0 0
    %1872 = vmatprep.subr.bf16.mxu0 0
    %1873 = vmatpush1.bf16.msra.mxu0 0
    %1874 = vmatprep.subr.bf16.mxu0 0
    %1875 = vmatpush1.bf16.msra.mxu0 0
    %1876 = vmatprep.subr.bf16.mxu0 0
    %1877 = vmatpush1.bf16.msra.mxu0 0
    %1878 = vmatprep.subr.bf16.mxu0 0
    %1879 = vmatpush1.bf16.msra.mxu0 0
    %1880 = vmatprep.subr.bf16.mxu0 0
    %1881 = vmatpush1.bf16.msra.mxu0 0
    %1882 = vmatprep.subr.bf16.mxu0 0
    %1883 = vmatpush1.bf16.msra.mxu0 0
    %1884 = vmatprep.subr.bf16.mxu0 0
    %1885 = vmatpush1.bf16.msra.mxu0 0
    %1886 = vmatprep.subr.bf16.mxu0 0
    %1887 = vmatpush1.bf16.msra.mxu0 0
    %1888 = vmatprep.subr.bf16.mxu0 0
    %1889 = vmatpush1.bf16.msra.mxu0 0
    %1890 = vmatprep.subr.bf16.mxu0 0
    %1891 = vmatpush1.bf16.msra.mxu0 0
    %1892 = vmatprep.mubr.bf16.mxu0 0
    %1893 = vmatmul.mubr.bf16.gmra.mrb[0].mxu0 %v1858
    %v1894 = vpop.f32.mrb[0].mxu0
    %v1895 = vadd.f32 0.0, %v1894
    %v1896 = vpop.f32.mrb[0].mxu0
    %v1897 = vpop.f32.mrb[0].mxu0
    %v1898 = vadd.f32 0.0, %v1897
    %v1899 = vpop.f32.mrb[0].mxu0
    %1900 = vdwg.mxu0
    %v1901 = vmax.f32 %v1895, 1e-30
    %v1902 = vmax.f32 %v1898, 1e-30
    %1905 = vrot.lane.b32.xlu0 %v1901, 96
    %v1906 = vpop.permute.xlu0 %1905
    %1907 = vrot.lane.b32.xlu0 %v1902, 96
    %v1908 = vpop.permute.xlu0 %1907
    %v1911 = vrcp.pop %v1906
    %v1912 = vmul.f32 %v1895, %v1911
    %v1913 = vrcp.pop %v1908
    %v1914 = vmul.f32 %v1898, %v1913
    %v1915 = vpack.c.bf16 %v1914, %v1912
    %v1916 = vlaneseq
    %v1917 = vshrl.u32 %v1916, 7
    %v1918 = vsub.s32 0, %v1917
    %v1919 = vrot.slane %v1652, %v1918
    %v1924 = vunpack.c.l.b16 %v1648
    %v1925 = vunpack.c.l.b16 %v1649
    %v1926 = vunpack.c.l.b16 %v1650
    %v1927 = vunpack.c.l.b16 %v1651
    %v1928 = vpack.c.b16 %v1925, %v1924
    %v1929 = vpack.c.b16 %v1927, %v1926
    %v1933 = vsel %vm151, %v1915, 0
    %1935 = vmatprep.subr.bf16.mxu0 0
    %1936 = vmatpush1.bf16.msra.mxu0 %v1928
    %1937 = vmatprep.subr.bf16.mxu0 0
    %1938 = vmatpush1.bf16.msra.mxu0 %v1929
    %1939 = vmatprep.subr.bf16.mxu0 0
    %1940 = vmatpush1.bf16.msra.mxu0 0
    %1941 = vmatprep.subr.bf16.mxu0 0
    %1942 = vmatpush1.bf16.msra.mxu0 0
    %1943 = vmatprep.subr.bf16.mxu0 0
    %1944 = vmatpush1.bf16.msra.mxu0 0
    %1945 = vmatprep.subr.bf16.mxu0 0
    %1946 = vmatpush1.bf16.msra.mxu0 0
    %1947 = vmatprep.subr.bf16.mxu0 0
    %1948 = vmatpush1.bf16.msra.mxu0 0
    %1949 = vmatprep.subr.bf16.mxu0 0
    %1950 = vmatpush1.bf16.msra.mxu0 0
    %1951 = vmatprep.subr.bf16.mxu0 0
    %1952 = vmatpush1.bf16.msra.mxu0 0
    %1953 = vmatprep.subr.bf16.mxu0 0
    %1954 = vmatpush1.bf16.msra.mxu0 0
    %1955 = vmatprep.subr.bf16.mxu0 0
    %1956 = vmatpush1.bf16.msra.mxu0 0
    %1957 = vmatprep.subr.bf16.mxu0 0
    %1958 = vmatpush1.bf16.msra.mxu0 0
    %1959 = vmatprep.subr.bf16.mxu0 0
    %1960 = vmatpush1.bf16.msra.mxu0 0
    %1961 = vmatprep.subr.bf16.mxu0 0
    %1962 = vmatpush1.bf16.msra.mxu0 0
    %1963 = vmatprep.subr.bf16.mxu0 0
    %1964 = vmatpush1.bf16.msra.mxu0 0
    %1965 = vmatprep.subr.bf16.mxu0 0
    %1966 = vmatpush1.bf16.msra.mxu0 0
    %1967 = vmatprep.mubr.bf16.mxu0 0
    %1968 = vmatmul.mubr.bf16.gmra.mrb[0].mxu0 %v1933
    %v1969 = vpop.f32.mrb[0].mxu0
    %v1970 = vadd.f32 %v1919, %v1969
    %v1971 = vpop.f32.mrb[0].mxu0
    %v1972 = vpop.f32.mrb[0].mxu0
    %v1973 = vadd.f32 %v1919, %v1972
    %v1974 = vpop.f32.mrb[0].mxu0
    %1975 = vdwg.mxu0
    %v1976 = vadd.f32 %v189, %v1970
    %v1977 = vadd.f32 %v190, %v1973
    %v1978 = vld [vmem:[%s4 + $0x31] sm:$0x1]
    %v1979 = vld [vmem:[%s4 + $0x32] sm:$0x1]
    %v1980 = vsel %vm151, %v1976, 0.0
    %1981 = vadd.xlane.f32.xlu0 %v1980
    %v1982 = vpop.xlane.xlu0 %1981
    %v1983 = vsel %vm151, %v1977, 0.0
    %1984 = vadd.xlane.f32.xlu0 %v1983
    %v1985 = vpop.xlane.xlu0 %1984
    %v1986 = vmul.f32 %v1982, %v158
    %v1987 = vmul.f32 %v1985, %v158
    %v1988 = vsub.f32 %v1976, %v1986
    %v1989 = vsub.f32 %v1977, %v1987
    %v1990 = vmul.f32 %v1988, %v1988
    %v1991 = vmul.f32 %v1989, %v1989
    %v1992 = vsel %vm151, %v1990, 0.0
    %1993 = vadd.xlane.f32.xlu0 %v1992
    %v1994 = vpop.xlane.xlu0 %1993
    %v1995 = vsel %vm151, %v1991, 0.0
    %1996 = vadd.xlane.f32.xlu0 %v1995
    %v1997 = vpop.xlane.xlu0 %1996
    %v1998 = vmul.f32 %v1994, %v158
    %v1999 = vmul.f32 %v1997, %v158
    %v2000 = vadd.f32 %v1998, 1e-12
    %v2001 = vadd.f32 %v1999, 1e-12
    %v2002 = vrsqrt.pop %v2000
    %v2003 = vrsqrt.pop %v2001
    %v2004 = vmul.f32 %v1988, %v2002
    %v2005 = vmul.f32 %v1989, %v2003
    %v2006 = vlaneseq
    %v2007 = vshrl.u32 %v2006, 7
    %v2008 = vsub.s32 0, %v2007
    %v2009 = vrot.slane %v1978, %v2008
    %v2010 = vmul.f32 %v2004, %v2009
    %v2011 = vmul.f32 %v2005, %v2009
    %v2012 = vlaneseq
    %v2013 = vshrl.u32 %v2012, 7
    %v2014 = vsub.s32 0, %v2013
    %v2015 = vrot.slane %v1979, %v2014
    %v2016 = vadd.f32 %v2010, %v2015
    %v2017 = vadd.f32 %v2011, %v2015
    %s2018 = scalar_lea.vmem %s5, 64
    %v2019 = vld [vmem:[%s2018] sm:$0xf]
    %v2020 = vld [vmem:[%s2018 + $0x4] sm:$0xf]
    %v2021 = vld [vmem:[%s2018 + $0x8] sm:$0xf]
    %v2022 = vld [vmem:[%s2018 + $0xc] sm:$0xf]
    %v2023 = vld [vmem:[%s9 + $0x4] sm:$0x1]
    %v2024 = vpack.c.bf16 %v2017, %v2016
    %v2025 = vlaneseq
    %v2026 = vshrl.u32 %v2025, 7
    %v2027 = vsub.s32 0, %v2026
    %v2028 = vrot.slane %v2023, %v2027
    %v2033 = vunpack.c.l.b16 %v2019
    %v2034 = vunpack.c.l.b16 %v2020
    %v2035 = vunpack.c.l.b16 %v2021
    %v2036 = vunpack.c.l.b16 %v2022
    %v2037 = vpack.c.b16 %v2034, %v2033
    %v2038 = vpack.c.b16 %v2036, %v2035
    %v2042 = vsel %vm151, %v2024, 0
    %2044 = vmatprep.subr.bf16.mxu0 0
    %2045 = vmatpush1.bf16.msra.mxu0 %v2037
    %2046 = vmatprep.subr.bf16.mxu0 0
    %2047 = vmatpush1.bf16.msra.mxu0 %v2038
    %2048 = vmatprep.subr.bf16.mxu0 0
    %2049 = vmatpush1.bf16.msra.mxu0 0
    %2050 = vmatprep.subr.bf16.mxu0 0
    %2051 = vmatpush1.bf16.msra.mxu0 0
    %2052 = vmatprep.subr.bf16.mxu0 0
    %2053 = vmatpush1.bf16.msra.mxu0 0
    %2054 = vmatprep.subr.bf16.mxu0 0
    %2055 = vmatpush1.bf16.msra.mxu0 0
    %2056 = vmatprep.subr.bf16.mxu0 0
    %2057 = vmatpush1.bf16.msra.mxu0 0
    %2058 = vmatprep.subr.bf16.mxu0 0
    %2059 = vmatpush1.bf16.msra.mxu0 0
    %2060 = vmatprep.subr.bf16.mxu0 0
    %2061 = vmatpush1.bf16.msra.mxu0 0
    %2062 = vmatprep.subr.bf16.mxu0 0
    %2063 = vmatpush1.bf16.msra.mxu0 0
    %2064 = vmatprep.subr.bf16.mxu0 0
    %2065 = vmatpush1.bf16.msra.mxu0 0
    %2066 = vmatprep.subr.bf16.mxu0 0
    %2067 = vmatpush1.bf16.msra.mxu0 0
    %2068 = vmatprep.subr.bf16.mxu0 0
    %2069 = vmatpush1.bf16.msra.mxu0 0
    %2070 = vmatprep.subr.bf16.mxu0 0
    %2071 = vmatpush1.bf16.msra.mxu0 0
    %2072 = vmatprep.subr.bf16.mxu0 0
    %2073 = vmatpush1.bf16.msra.mxu0 0
    %2074 = vmatprep.subr.bf16.mxu0 0
    %2075 = vmatpush1.bf16.msra.mxu0 0
    %2076 = vmatprep.mubr.bf16.mxu0 0
    %2077 = vmatmul.mubr.bf16.gmra.mrb[0].mxu0 %v2042
    %v2078 = vpop.f32.mrb[0].mxu0
    %v2079 = vadd.f32 %v2028, %v2078
    %v2080 = vpop.f32.mrb[0].mxu0
    %v2081 = vpop.f32.mrb[0].mxu0
    %v2082 = vadd.f32 %v2028, %v2081
    %v2083 = vpop.f32.mrb[0].mxu0
    %2084 = vdwg.mxu0
    %v2085 = vpack.c.bf16 %v1579, %v1578
    %2086 = vrot.lane.b32.xlu0 %v2037, 96
    %v2087 = vpop.permute.xlu0 %2086
    %2088 = vrot.lane.b32.xlu0 %v2038, 96
    %v2089 = vpop.permute.xlu0 %2088
    %2093 = vrot.lane.b32.xlu0 %v2028, 96
    %v2094 = vpop.permute.xlu0 %2093
    %v2097 = vsel %vm151, %v2085, 0
    %2099 = vmatprep.subr.bf16.mxu0 0
    %2100 = vmatpush1.bf16.msra.mxu0 %v2087
    %2101 = vmatprep.subr.bf16.mxu0 0
    %2102 = vmatpush1.bf16.msra.mxu0 %v2089
    %2103 = vmatprep.subr.bf16.mxu0 0
    %2104 = vmatpush1.bf16.msra.mxu0 0
    %2105 = vmatprep.subr.bf16.mxu0 0
    %2106 = vmatpush1.bf16.msra.mxu0 0
    %2107 = vmatprep.subr.bf16.mxu0 0
    %2108 = vmatpush1.bf16.msra.mxu0 0
    %2109 = vmatprep.subr.bf16.mxu0 0
    %2110 = vmatpush1.bf16.msra.mxu0 0
    %2111 = vmatprep.subr.bf16.mxu0 0
    %2112 = vmatpush1.bf16.msra.mxu0 0
    %2113 = vmatprep.subr.bf16.mxu0 0
    %2114 = vmatpush1.bf16.msra.mxu0 0
    %2115 = vmatprep.subr.bf16.mxu0 0
    %2116 = vmatpush1.bf16.msra.mxu0 0
    %2117 = vmatprep.subr.bf16.mxu0 0
    %2118 = vmatpush1.bf16.msra.mxu0 0
    %2119 = vmatprep.subr.bf16.mxu0 0
    %2120 = vmatpush1.bf16.msra.mxu0 0
    %2121 = vmatprep.subr.bf16.mxu0 0
    %2122 = vmatpush1.bf16.msra.mxu0 0
    %2123 = vmatprep.subr.bf16.mxu0 0
    %2124 = vmatpush1.bf16.msra.mxu0 0
    %2125 = vmatprep.subr.bf16.mxu0 0
    %2126 = vmatpush1.bf16.msra.mxu0 0
    %2127 = vmatprep.subr.bf16.mxu0 0
    %2128 = vmatpush1.bf16.msra.mxu0 0
    %2129 = vmatprep.subr.bf16.mxu0 0
    %2130 = vmatpush1.bf16.msra.mxu0 0
    %2131 = vmatprep.mubr.bf16.mxu0 0
    %2132 = vmatmul.mubr.bf16.gmra.mrb[0].mxu0 %v2097
    %v2133 = vpop.f32.mrb[0].mxu0
    %v2134 = vadd.f32 %v2094, %v2133
    %v2135 = vpop.f32.mrb[0].mxu0
    %v2136 = vpop.f32.mrb[0].mxu0
    %v2137 = vadd.f32 %v2094, %v2136
    %v2138 = vpop.f32.mrb[0].mxu0
    %2139 = vdwg.mxu0
    %s2140 = scalar_lea.vmem %s6, 64
    %v2141 = vld [vmem:[%s2140] sm:$0xf]
    %v2142 = vld [vmem:[%s2140 + $0x4] sm:$0xf]
    %v2143 = vld [vmem:[%s2140 + $0x8] sm:$0xf]
    %v2144 = vld [vmem:[%s2140 + $0xc] sm:$0xf]
    %v2145 = vld [vmem:[%s4 + $0x33] sm:$0x1]
    %v2146 = vmul.f32 %v2134, %v329
    %v2147 = vmul.f32 %v2137, %v330
    %v2148 = vmul.f32 %v2134, %v331
    %v2149 = vmul.f32 %v2137, %v332
    %v2150 = vmul.f32 %v2134, %v333
    %v2151 = vmul.f32 %v2137, %v334
    %v2152 = vmul.f32 %v2134, %v335
    %v2153 = vmul.f32 %v2137, %v336
    %v2154 = vmul.f32 %v2134, %v423
    %v2155 = vmul.f32 %v2137, %v425
    %v2156 = vmul.f32 %v2134, %v427
    %v2157 = vmul.f32 %v2137, %v429
    %v2158 = vmul.f32 %v2134, %v431
    %v2159 = vmul.f32 %v2137, %v433
    %v2160 = vmul.f32 %v2134, %v435
    %v2161 = vmul.f32 %v2137, %v437
    %v2162 = vmul.f32 %v2079, 0.35355338
    %v2163 = vmul.f32 %v2082, 0.35355338
    %v2164 = vpack.c.bf16 %v2163, %v2162
    %v2165 = vpack.c.bf16 %v2147, %v2146
    %v2166 = vpack.c.bf16 %v2149, %v2148
    %v2167 = vpack.c.bf16 %v2151, %v2150
    %v2168 = vpack.c.bf16 %v2153, %v2152
    %v2170 = vsel %vm151, %v2164, 0
    %v2173 = vsel %vm151, %v2165, 0
    %v2176 = vsel %vm151, %v2166, 0
    %v2179 = vsel %vm151, %v2167, 0
    %v2182 = vsel %vm151, %v2168, 0
    %2184 = vmatprep.subr.bf16.mxu0 0
    %2185 = vmatpush1.bf16.xpose.msra.mxu0 %v2173
    %2186 = vmatprep.subr.bf16.mxu0 0
    %2187 = vmatpush1.bf16.xpose.msra.mxu0 %v2176
    %2188 = vmatprep.subr.bf16.mxu0 0
    %2189 = vmatpush1.bf16.xpose.msra.mxu0 %v2179
    %2190 = vmatprep.subr.bf16.mxu0 0
    %2191 = vmatpush1.bf16.xpose.msra.mxu0 %v2182
    %2192 = vmatprep.subr.bf16.mxu0 0
    %2193 = vmatpush1.bf16.xpose.msra.mxu0 0
    %2194 = vmatprep.subr.bf16.mxu0 0
    %2195 = vmatpush1.bf16.xpose.msra.mxu0 0
    %2196 = vmatprep.subr.bf16.mxu0 0
    %2197 = vmatpush1.bf16.xpose.msra.mxu0 0
    %2198 = vmatprep.subr.bf16.mxu0 0
    %2199 = vmatpush1.bf16.xpose.msra.mxu0 0
    %2200 = vmatprep.subr.bf16.mxu0 0
    %2201 = vmatpush1.bf16.xpose.msra.mxu0 0
    %2202 = vmatprep.subr.bf16.mxu0 0
    %2203 = vmatpush1.bf16.xpose.msra.mxu0 0
    %2204 = vmatprep.subr.bf16.mxu0 0
    %2205 = vmatpush1.bf16.xpose.msra.mxu0 0
    %2206 = vmatprep.subr.bf16.mxu0 0
    %2207 = vmatpush1.bf16.xpose.msra.mxu0 0
    %2208 = vmatprep.subr.bf16.mxu0 0
    %2209 = vmatpush1.bf16.xpose.msra.mxu0 0
    %2210 = vmatprep.subr.bf16.mxu0 0
    %2211 = vmatpush1.bf16.xpose.msra.mxu0 0
    %2212 = vmatprep.subr.bf16.mxu0 0
    %2213 = vmatpush1.bf16.xpose.msra.mxu0 0
    %2214 = vmatprep.subr.bf16.mxu0 0
    %2215 = vmatpush1.bf16.xpose.msra.mxu0 0
    %2216 = vmatprep.mubr.bf16.mxu0 0
    %2217 = vmatmul.mubr.bf16.gmra.mrb[0].mxu0 %v2170
    %v2218 = vpop.f32.mrb[0].mxu0
    %v2219 = vadd.f32 %v341, %v2218
    %v2220 = vpop.f32.mrb[0].mxu0
    %v2221 = vpop.f32.mrb[0].mxu0
    %v2222 = vadd.f32 %v342, %v2221
    %v2223 = vpop.f32.mrb[0].mxu0
    %2224 = vdwg.mxu0
    %v2225 = vsel %vm561, %v2219, -inf
    %2226 = vmax.xlane.f32.xlu0 %v2225
    %v2227 = vpop.xlane.xlu0 %2226
    %v2228 = vsel %vm561, %v2222, -inf
    %2229 = vmax.xlane.f32.xlu0 %v2228
    %v2230 = vpop.xlane.xlu0 %2229
    %v2231 = vsub.f32 %v2219, %v2227
    %v2232 = vsub.f32 %v2222, %v2230
    %v2233 = vmul.f32 %v2231, 1.442695
    %v2234 = vpow.pop %v2233
    %v2235 = vmul.f32 %v2232, 1.442695
    %v2236 = vpow.pop %v2235
    %2245 = vrot.lane.b32.xlu0 %v2154, 96
    %v2246 = vpop.permute.xlu0 %2245
    %2247 = vrot.lane.b32.xlu0 %v2155, 96
    %v2248 = vpop.permute.xlu0 %2247
    %2249 = vrot.lane.b32.xlu0 %v2156, 96
    %v2250 = vpop.permute.xlu0 %2249
    %2251 = vrot.lane.b32.xlu0 %v2157, 96
    %v2252 = vpop.permute.xlu0 %2251
    %2253 = vrot.lane.b32.xlu0 %v2158, 96
    %v2254 = vpop.permute.xlu0 %2253
    %2255 = vrot.lane.b32.xlu0 %v2159, 96
    %v2256 = vpop.permute.xlu0 %2255
    %2257 = vrot.lane.b32.xlu0 %v2160, 96
    %v2258 = vpop.permute.xlu0 %2257
    %2259 = vrot.lane.b32.xlu0 %v2161, 96
    %v2260 = vpop.permute.xlu0 %2259
    %v2269 = vsel %vm151, %v2246, %v423
    %v2270 = vsel %vm151, %v2248, %v425
    %v2271 = vsel %vm151, %v2250, %v427
    %v2272 = vsel %vm151, %v2252, %v429
    %v2273 = vsel %vm151, %v2254, %v431
    %v2274 = vsel %vm151, %v2256, %v433
    %v2275 = vsel %vm151, %v2258, %v435
    %v2276 = vsel %vm151, %v2260, %v437
    %v2277 = vpack.c.bf16 %v2236, %v2234
    %v2278 = vpack.c.bf16 %v2270, %v2269
    %v2279 = vpack.c.bf16 %v2272, %v2271
    %v2280 = vpack.c.bf16 %v2274, %v2273
    %v2281 = vpack.c.bf16 %v2276, %v2275
    %v2283 = vsel %vm561, %v2277, 0
    %2285 = vmatprep.subr.bf16.mxu0 0
    %2286 = vmatpush1.bf16.msra.mxu0 %v2278
    %2287 = vmatprep.subr.bf16.mxu0 0
    %2288 = vmatpush1.bf16.msra.mxu0 %v2279
    %2289 = vmatprep.subr.bf16.mxu0 0
    %2290 = vmatpush1.bf16.msra.mxu0 %v2280
    %2291 = vmatprep.subr.bf16.mxu0 0
    %2292 = vmatpush1.bf16.msra.mxu0 %v2281
    %2293 = vmatprep.subr.bf16.mxu0 0
    %2294 = vmatpush1.bf16.msra.mxu0 0
    %2295 = vmatprep.subr.bf16.mxu0 0
    %2296 = vmatpush1.bf16.msra.mxu0 0
    %2297 = vmatprep.subr.bf16.mxu0 0
    %2298 = vmatpush1.bf16.msra.mxu0 0
    %2299 = vmatprep.subr.bf16.mxu0 0
    %2300 = vmatpush1.bf16.msra.mxu0 0
    %2301 = vmatprep.subr.bf16.mxu0 0
    %2302 = vmatpush1.bf16.msra.mxu0 0
    %2303 = vmatprep.subr.bf16.mxu0 0
    %2304 = vmatpush1.bf16.msra.mxu0 0
    %2305 = vmatprep.subr.bf16.mxu0 0
    %2306 = vmatpush1.bf16.msra.mxu0 0
    %2307 = vmatprep.subr.bf16.mxu0 0
    %2308 = vmatpush1.bf16.msra.mxu0 0
    %2309 = vmatprep.subr.bf16.mxu0 0
    %2310 = vmatpush1.bf16.msra.mxu0 0
    %2311 = vmatprep.subr.bf16.mxu0 0
    %2312 = vmatpush1.bf16.msra.mxu0 0
    %2313 = vmatprep.subr.bf16.mxu0 0
    %2314 = vmatpush1.bf16.msra.mxu0 0
    %2315 = vmatprep.subr.bf16.mxu0 0
    %2316 = vmatpush1.bf16.msra.mxu0 0
    %2317 = vmatprep.mubr.bf16.mxu0 0
    %2318 = vmatmul.mubr.bf16.gmra.mrb[0].mxu0 %v2283
    %v2319 = vpop.f32.mrb[0].mxu0
    %v2320 = vadd.f32 0.0, %v2319
    %v2321 = vpop.f32.mrb[0].mxu0
    %v2322 = vpop.f32.mrb[0].mxu0
    %v2323 = vadd.f32 0.0, %v2322
    %v2324 = vpop.f32.mrb[0].mxu0
    %2325 = vdwg.mxu0
    %v2326 = vmax.f32 %v2320, 1e-30
    %v2327 = vmax.f32 %v2323, 1e-30
    %2330 = vrot.lane.b32.xlu0 %v2326, 96
    %v2331 = vpop.permute.xlu0 %2330
    %2332 = vrot.lane.b32.xlu0 %v2327, 96
    %v2333 = vpop.permute.xlu0 %2332
    %v2336 = vrcp.pop %v2331
    %v2337 = vmul.f32 %v2320, %v2336
    %v2338 = vrcp.pop %v2333
    %v2339 = vmul.f32 %v2323, %v2338
    %v2340 = vpack.c.bf16 %v2339, %v2337
    %v2341 = vlaneseq
    %v2342 = vshrl.u32 %v2341, 7
    %v2343 = vsub.s32 0, %v2342
    %v2344 = vrot.slane %v2145, %v2343
    %v2349 = vunpack.c.l.b16 %v2141
    %v2350 = vunpack.c.l.b16 %v2142
    %v2351 = vunpack.c.l.b16 %v2143
    %v2352 = vunpack.c.l.b16 %v2144
    %v2353 = vpack.c.b16 %v2350, %v2349
    %v2354 = vpack.c.b16 %v2352, %v2351
    %v2358 = vsel %vm151, %v2340, 0
    %2360 = vmatprep.subr.bf16.mxu0 0
    %2361 = vmatpush1.bf16.msra.mxu0 %v2353
    %2362 = vmatprep.subr.bf16.mxu0 0
    %2363 = vmatpush1.bf16.msra.mxu0 %v2354
    %2364 = vmatprep.subr.bf16.mxu0 0
    %2365 = vmatpush1.bf16.msra.mxu0 0
    %2366 = vmatprep.subr.bf16.mxu0 0
    %2367 = vmatpush1.bf16.msra.mxu0 0
    %2368 = vmatprep.subr.bf16.mxu0 0
    %2369 = vmatpush1.bf16.msra.mxu0 0
    %2370 = vmatprep.subr.bf16.mxu0 0
    %2371 = vmatpush1.bf16.msra.mxu0 0
    %2372 = vmatprep.subr.bf16.mxu0 0
    %2373 = vmatpush1.bf16.msra.mxu0 0
    %2374 = vmatprep.subr.bf16.mxu0 0
    %2375 = vmatpush1.bf16.msra.mxu0 0
    %2376 = vmatprep.subr.bf16.mxu0 0
    %2377 = vmatpush1.bf16.msra.mxu0 0
    %2378 = vmatprep.subr.bf16.mxu0 0
    %2379 = vmatpush1.bf16.msra.mxu0 0
    %2380 = vmatprep.subr.bf16.mxu0 0
    %2381 = vmatpush1.bf16.msra.mxu0 0
    %2382 = vmatprep.subr.bf16.mxu0 0
    %2383 = vmatpush1.bf16.msra.mxu0 0
    %2384 = vmatprep.subr.bf16.mxu0 0
    %2385 = vmatpush1.bf16.msra.mxu0 0
    %2386 = vmatprep.subr.bf16.mxu0 0
    %2387 = vmatpush1.bf16.msra.mxu0 0
    %2388 = vmatprep.subr.bf16.mxu0 0
    %2389 = vmatpush1.bf16.msra.mxu0 0
    %2390 = vmatprep.subr.bf16.mxu0 0
    %2391 = vmatpush1.bf16.msra.mxu0 0
    %2392 = vmatprep.mubr.bf16.mxu0 0
    %2393 = vmatmul.mubr.bf16.gmra.mrb[0].mxu0 %v2358
    %v2394 = vpop.f32.mrb[0].mxu0
    %v2395 = vadd.f32 %v2344, %v2394
    %v2396 = vpop.f32.mrb[0].mxu0
    %v2397 = vpop.f32.mrb[0].mxu0
    %v2398 = vadd.f32 %v2344, %v2397
    %v2399 = vpop.f32.mrb[0].mxu0
    %2400 = vdwg.mxu0
    %v2401 = vadd.f32 %v2016, %v2395
    %v2402 = vadd.f32 %v2017, %v2398
    %v2403 = vld [vmem:[%s4 + $0x34] sm:$0x1]
    %v2404 = vld [vmem:[%s4 + $0x35] sm:$0x1]
    %v2405 = vsel %vm151, %v2401, 0.0
    %2406 = vadd.xlane.f32.xlu0 %v2405
    %v2407 = vpop.xlane.xlu0 %2406
    %v2408 = vsel %vm151, %v2402, 0.0
    %2409 = vadd.xlane.f32.xlu0 %v2408
    %v2410 = vpop.xlane.xlu0 %2409
    %v2411 = vmul.f32 %v2407, %v158
    %v2412 = vmul.f32 %v2410, %v158
    %v2413 = vsub.f32 %v2401, %v2411
    %v2414 = vsub.f32 %v2402, %v2412
    %v2415 = vmul.f32 %v2413, %v2413
    %v2416 = vmul.f32 %v2414, %v2414
    %v2417 = vsel %vm151, %v2415, 0.0
    %2418 = vadd.xlane.f32.xlu0 %v2417
    %v2419 = vpop.xlane.xlu0 %2418
    %v2420 = vsel %vm151, %v2416, 0.0
    %2421 = vadd.xlane.f32.xlu0 %v2420
    %v2422 = vpop.xlane.xlu0 %2421
    %v2423 = vmul.f32 %v2419, %v158
    %v2424 = vmul.f32 %v2422, %v158
    %v2425 = vadd.f32 %v2423, 1e-12
    %v2426 = vadd.f32 %v2424, 1e-12
    %v2427 = vrsqrt.pop %v2425
    %v2428 = vrsqrt.pop %v2426
    %v2429 = vmul.f32 %v2413, %v2427
    %v2430 = vmul.f32 %v2414, %v2428
    %v2431 = vlaneseq
    %v2432 = vshrl.u32 %v2431, 7
    %v2433 = vsub.s32 0, %v2432
    %v2434 = vrot.slane %v2403, %v2433
    %v2435 = vmul.f32 %v2429, %v2434
    %v2436 = vmul.f32 %v2430, %v2434
    %v2437 = vlaneseq
    %v2438 = vshrl.u32 %v2437, 7
    %v2439 = vsub.s32 0, %v2438
    %v2440 = vrot.slane %v2404, %v2439
    %v2441 = vadd.f32 %v2435, %v2440
    %v2442 = vadd.f32 %v2436, %v2440
    %s2443 = scalar_lea.vmem %s7, 32
    %v2444 = vld [vmem:[%s2443] sm:$0xf]
    %v2445 = vld [vmem:[%s2443 + $0x4] sm:$0xf]
    %v2446 = vld [vmem:[%s2443 + $0x8] sm:$0xf]
    %v2447 = vld [vmem:[%s2443 + $0xc] sm:$0xf]
    %v2448 = vld [vmem:[%s10 + $0x2] sm:$0x1]
    %s2449 = scalar_lea.vmem %s8, 64
    %v2450 = vld [vmem:[%s2449] sm:$0xf]
    %v2451 = vld [vmem:[%s2449 + $0x4] sm:$0xf]
    %v2452 = vld [vmem:[%s2449 + $0x8] sm:$0xf]
    %v2453 = vld [vmem:[%s2449 + $0xc] sm:$0xf]
    %v2454 = vld [vmem:[%s2449 + $0x10] sm:$0xf]
    %v2455 = vld [vmem:[%s2449 + $0x14] sm:$0xf]
    %v2456 = vld [vmem:[%s2449 + $0x18] sm:$0xf]
    %v2457 = vld [vmem:[%s2449 + $0x1c] sm:$0xf]
    %v2458 = vld [vmem:[%s4 + $0x36] sm:$0x1]
    %v2459 = vpack.c.bf16 %v2442, %v2441
    %v2460 = vlaneseq
    %v2461 = vshrl.u32 %v2460, 7
    %v2462 = vsub.s32 0, %v2461
    %v2463 = vrot.slane %v2448, %v2462
    %v2468 = vunpack.c.l.b16 %v2444
    %v2469 = vunpack.c.l.b16 %v2445
    %v2470 = vunpack.c.l.b16 %v2446
    %v2471 = vunpack.c.l.b16 %v2447
    %v2472 = vpack.c.b16 %v2469, %v2468
    %v2473 = vpack.c.b16 %v2471, %v2470
    %v2477 = vsel %vm151, %v2459, 0
    %2479 = vmatprep.subr.bf16.mxu0 0
    %2480 = vmatpush1.bf16.msra.mxu0 %v2472
    %2481 = vmatprep.subr.bf16.mxu0 0
    %2482 = vmatpush1.bf16.msra.mxu0 %v2473
    %2483 = vmatprep.subr.bf16.mxu0 0
    %2484 = vmatpush1.bf16.msra.mxu0 0
    %2485 = vmatprep.subr.bf16.mxu0 0
    %2486 = vmatpush1.bf16.msra.mxu0 0
    %2487 = vmatprep.subr.bf16.mxu0 0
    %2488 = vmatpush1.bf16.msra.mxu0 0
    %2489 = vmatprep.subr.bf16.mxu0 0
    %2490 = vmatpush1.bf16.msra.mxu0 0
    %2491 = vmatprep.subr.bf16.mxu0 0
    %2492 = vmatpush1.bf16.msra.mxu0 0
    %2493 = vmatprep.subr.bf16.mxu0 0
    %2494 = vmatpush1.bf16.msra.mxu0 0
    %2495 = vmatprep.subr.bf16.mxu0 0
    %2496 = vmatpush1.bf16.msra.mxu0 0
    %2497 = vmatprep.subr.bf16.mxu0 0
    %2498 = vmatpush1.bf16.msra.mxu0 0
    %2499 = vmatprep.subr.bf16.mxu0 0
    %2500 = vmatpush1.bf16.msra.mxu0 0
    %2501 = vmatprep.subr.bf16.mxu0 0
    %2502 = vmatpush1.bf16.msra.mxu0 0
    %2503 = vmatprep.subr.bf16.mxu0 0
    %2504 = vmatpush1.bf16.msra.mxu0 0
    %2505 = vmatprep.subr.bf16.mxu0 0
    %2506 = vmatpush1.bf16.msra.mxu0 0
    %2507 = vmatprep.subr.bf16.mxu0 0
    %2508 = vmatpush1.bf16.msra.mxu0 0
    %2509 = vmatprep.subr.bf16.mxu0 0
    %2510 = vmatpush1.bf16.msra.mxu0 0
    %2511 = vmatprep.mubr.bf16.mxu0 0
    %2512 = vmatmul.mubr.bf16.gmra.mrb[0].mxu0 %v2477
    %v2513 = vpop.f32.mrb[0].mxu0
    %v2514 = vadd.f32 %v2463, %v2513
    %v2515 = vpop.f32.mrb[0].mxu0
    %v2516 = vpop.f32.mrb[0].mxu0
    %v2517 = vadd.f32 %v2463, %v2516
    %v2518 = vpop.f32.mrb[0].mxu0
    %2519 = vdwg.mxu0
    %v2520 = vmul.f32 %v2514, 0.5
    %v2521 = vmul.f32 %v2517, 0.5
    %v2522 = vmul.f32 %v2514, 0.044715
    %v2523 = vmul.f32 %v2517, 0.044715
    %v2524 = vmul.f32 %v2522, %v2514
    %v2525 = vmul.f32 %v2523, %v2517
    %v2526 = vmul.f32 %v2524, %v2514
    %v2527 = vmul.f32 %v2525, %v2517
    %v2528 = vadd.f32 %v2514, %v2526
    %v2529 = vadd.f32 %v2517, %v2527
    %v2530 = vmul.f32 %v2528, 0.7978846
    %v2531 = vmul.f32 %v2529, 0.7978846
    %v2532 = vtanh.pop %v2530
    %v2533 = vtanh.pop %v2531
    %v2534 = vadd.f32 %v2532, 1.0
    %v2535 = vadd.f32 %v2533, 1.0
    %v2536 = vmul.f32 %v2520, %v2534
    %v2537 = vmul.f32 %v2521, %v2535
    %v2538 = vpack.c.bf16 %v2537, %v2536
    %v2539 = vlaneseq
    %v2540 = vshrl.u32 %v2539, 7
    %v2541 = vsub.s32 0, %v2540
    %v2542 = vrot.slane %v2458, %v2541
    %v2551 = vunpack.c.l.b16 %v2450
    %v2552 = vunpack.c.l.b16 %v2451
    %v2553 = vunpack.c.l.b16 %v2452
    %v2554 = vunpack.c.l.b16 %v2453
    %v2555 = vunpack.c.l.b16 %v2454
    %v2556 = vunpack.c.l.b16 %v2455
    %v2557 = vunpack.c.l.b16 %v2456
    %v2558 = vunpack.c.l.b16 %v2457
    %v2559 = vpack.c.b16 %v2552, %v2551
    %v2560 = vpack.c.b16 %v2554, %v2553
    %v2561 = vpack.c.b16 %v2556, %v2555
    %v2562 = vpack.c.b16 %v2558, %v2557
    %v2568 = vsel %vm561, %v2538, 0
    %2570 = vmatprep.subr.bf16.mxu0 0
    %2571 = vmatpush1.bf16.msra.mxu0 %v2559
    %2572 = vmatprep.subr.bf16.mxu0 0
    %2573 = vmatpush1.bf16.msra.mxu0 %v2560
    %2574 = vmatprep.subr.bf16.mxu0 0
    %2575 = vmatpush1.bf16.msra.mxu0 %v2561
    %2576 = vmatprep.subr.bf16.mxu0 0
    %2577 = vmatpush1.bf16.msra.mxu0 %v2562
    %2578 = vmatprep.subr.bf16.mxu0 0
    %2579 = vmatpush1.bf16.msra.mxu0 0
    %2580 = vmatprep.subr.bf16.mxu0 0
    %2581 = vmatpush1.bf16.msra.mxu0 0
    %2582 = vmatprep.subr.bf16.mxu0 0
    %2583 = vmatpush1.bf16.msra.mxu0 0
    %2584 = vmatprep.subr.bf16.mxu0 0
    %2585 = vmatpush1.bf16.msra.mxu0 0
    %2586 = vmatprep.subr.bf16.mxu0 0
    %2587 = vmatpush1.bf16.msra.mxu0 0
    %2588 = vmatprep.subr.bf16.mxu0 0
    %2589 = vmatpush1.bf16.msra.mxu0 0
    %2590 = vmatprep.subr.bf16.mxu0 0
    %2591 = vmatpush1.bf16.msra.mxu0 0
    %2592 = vmatprep.subr.bf16.mxu0 0
    %2593 = vmatpush1.bf16.msra.mxu0 0
    %2594 = vmatprep.subr.bf16.mxu0 0
    %2595 = vmatpush1.bf16.msra.mxu0 0
    %2596 = vmatprep.subr.bf16.mxu0 0
    %2597 = vmatpush1.bf16.msra.mxu0 0
    %2598 = vmatprep.subr.bf16.mxu0 0
    %2599 = vmatpush1.bf16.msra.mxu0 0
    %2600 = vmatprep.subr.bf16.mxu0 0
    %2601 = vmatpush1.bf16.msra.mxu0 0
    %2602 = vmatprep.mubr.bf16.mxu0 0
    %2603 = vmatmul.mubr.bf16.gmra.mrb[0].mxu0 %v2568
    %v2604 = vpop.f32.mrb[0].mxu0
    %v2605 = vadd.f32 %v2542, %v2604
    %v2606 = vpop.f32.mrb[0].mxu0
    %v2607 = vpop.f32.mrb[0].mxu0
    %v2608 = vadd.f32 %v2542, %v2607
    %v2609 = vpop.f32.mrb[0].mxu0
    %2610 = vdwg.mxu0
    %v2611 = vadd.f32 %v2441, %v2605
    %v2612 = vadd.f32 %v2442, %v2608
    %v2613 = vld [vmem:[%s4 + $0x37] sm:$0x1]
    %v2614 = vld [vmem:[%s4 + $0x38] sm:$0x1]
    %v2615 = vsel %vm151, %v2611, 0.0
    %2616 = vadd.xlane.f32.xlu0 %v2615
    %v2617 = vpop.xlane.xlu0 %2616
    %v2618 = vsel %vm151, %v2612, 0.0
    %2619 = vadd.xlane.f32.xlu0 %v2618
    %v2620 = vpop.xlane.xlu0 %2619
    %v2621 = vmul.f32 %v2617, %v158
    %v2622 = vmul.f32 %v2620, %v158
    %v2623 = vsub.f32 %v2611, %v2621
    %v2624 = vsub.f32 %v2612, %v2622
    %v2625 = vmul.f32 %v2623, %v2623
    %v2626 = vmul.f32 %v2624, %v2624
    %v2627 = vsel %vm151, %v2625, 0.0
    %2628 = vadd.xlane.f32.xlu0 %v2627
    %v2629 = vpop.xlane.xlu0 %2628
    %v2630 = vsel %vm151, %v2626, 0.0
    %2631 = vadd.xlane.f32.xlu0 %v2630
    %v2632 = vpop.xlane.xlu0 %2631
    %v2633 = vmul.f32 %v2629, %v158
    %v2634 = vmul.f32 %v2632, %v158
    %v2635 = vadd.f32 %v2633, 1e-12
    %v2636 = vadd.f32 %v2634, 1e-12
    %v2637 = vrsqrt.pop %v2635
    %v2638 = vrsqrt.pop %v2636
    %v2639 = vmul.f32 %v2623, %v2637
    %v2640 = vmul.f32 %v2624, %v2638
    %v2641 = vlaneseq
    %v2642 = vshrl.u32 %v2641, 7
    %v2643 = vsub.s32 0, %v2642
    %v2644 = vrot.slane %v2613, %v2643
    %v2645 = vmul.f32 %v2639, %v2644
    %v2646 = vmul.f32 %v2640, %v2644
    %v2647 = vlaneseq
    %v2648 = vshrl.u32 %v2647, 7
    %v2649 = vsub.s32 0, %v2648
    %v2650 = vrot.slane %v2614, %v2649
    %v2651 = vadd.f32 %v2645, %v2650
    %v2652 = vadd.f32 %v2646, %v2650
    %s2653 = scalar_lea.vmem %s5, 48
    %v2654 = vld [vmem:[%s2653] sm:$0xf]
    %v2655 = vld [vmem:[%s2653 + $0x4] sm:$0xf]
    %v2656 = vld [vmem:[%s2653 + $0x8] sm:$0xf]
    %v2657 = vld [vmem:[%s2653 + $0xc] sm:$0xf]
    %v2658 = vpack.c.bf16 %v2652, %v2651
    %v2659 = vld [vmem:[%s9 + $0x3] sm:$0x1]
    %v2660 = vlaneseq
    %v2661 = vshrl.u32 %v2660, 7
    %v2662 = vsub.s32 0, %v2661
    %v2663 = vrot.slane %v2659, %v2662
    %v2668 = vunpack.c.l.b16 %v2654
    %v2669 = vunpack.c.l.b16 %v2655
    %v2670 = vunpack.c.l.b16 %v2656
    %v2671 = vunpack.c.l.b16 %v2657
    %v2672 = vpack.c.b16 %v2669, %v2668
    %v2673 = vpack.c.b16 %v2671, %v2670
    %v2677 = vsel %vm151, %v2658, 0
    %2679 = vmatprep.subr.bf16.mxu0 0
    %2680 = vmatpush1.bf16.msra.mxu0 %v2672
    %2681 = vmatprep.subr.bf16.mxu0 0
    %2682 = vmatpush1.bf16.msra.mxu0 %v2673
    %2683 = vmatprep.subr.bf16.mxu0 0
    %2684 = vmatpush1.bf16.msra.mxu0 0
    %2685 = vmatprep.subr.bf16.mxu0 0
    %2686 = vmatpush1.bf16.msra.mxu0 0
    %2687 = vmatprep.subr.bf16.mxu0 0
    %2688 = vmatpush1.bf16.msra.mxu0 0
    %2689 = vmatprep.subr.bf16.mxu0 0
    %2690 = vmatpush1.bf16.msra.mxu0 0
    %2691 = vmatprep.subr.bf16.mxu0 0
    %2692 = vmatpush1.bf16.msra.mxu0 0
    %2693 = vmatprep.subr.bf16.mxu0 0
    %2694 = vmatpush1.bf16.msra.mxu0 0
    %2695 = vmatprep.subr.bf16.mxu0 0
    %2696 = vmatpush1.bf16.msra.mxu0 0
    %2697 = vmatprep.subr.bf16.mxu0 0
    %2698 = vmatpush1.bf16.msra.mxu0 0
    %2699 = vmatprep.subr.bf16.mxu0 0
    %2700 = vmatpush1.bf16.msra.mxu0 0
    %2701 = vmatprep.subr.bf16.mxu0 0
    %2702 = vmatpush1.bf16.msra.mxu0 0
    %2703 = vmatprep.subr.bf16.mxu0 0
    %2704 = vmatpush1.bf16.msra.mxu0 0
    %2705 = vmatprep.subr.bf16.mxu0 0
    %2706 = vmatpush1.bf16.msra.mxu0 0
    %2707 = vmatprep.subr.bf16.mxu0 0
    %2708 = vmatpush1.bf16.msra.mxu0 0
    %2709 = vmatprep.subr.bf16.mxu0 0
    %2710 = vmatpush1.bf16.msra.mxu0 0
    %2711 = vmatprep.mubr.bf16.mxu0 0
    %2712 = vmatmul.mubr.bf16.gmra.mrb[0].mxu0 %v2677
    %v2713 = vpop.f32.mrb[0].mxu0
    %v2714 = vadd.f32 %v2663, %v2713
    %v2715 = vpop.f32.mrb[0].mxu0
    %v2716 = vpop.f32.mrb[0].mxu0
    %v2717 = vadd.f32 %v2663, %v2716
    %v2718 = vpop.f32.mrb[0].mxu0
    %2719 = vdwg.mxu0
    %s2720 = scalar_lea.vmem %s6, 48
    %v2721 = vld [vmem:[%s2720] sm:$0xf]
    %v2722 = vld [vmem:[%s2720 + $0x4] sm:$0xf]
    %v2723 = vld [vmem:[%s2720 + $0x8] sm:$0xf]
    %v2724 = vld [vmem:[%s2720 + $0xc] sm:$0xf]
    %v2725 = vld [vmem:[%s4 + $0x39] sm:$0x1]
    %v2726 = vmul.f32 %v2714, %v1662
    %v2727 = vmul.f32 %v2717, %v1664
    %v2728 = vmul.f32 %v2714, %v1666
    %v2729 = vmul.f32 %v2717, %v1668
    %v2730 = vmul.f32 %v2714, %v1670
    %v2731 = vmul.f32 %v2717, %v1672
    %v2732 = vmul.f32 %v2714, %v1674
    %v2733 = vmul.f32 %v2717, %v1676
    %v2734 = vmul.f32 %v2714, %v1694
    %v2735 = vmul.f32 %v2717, %v1696
    %v2736 = vmul.f32 %v2714, %v1698
    %v2737 = vmul.f32 %v2717, %v1700
    %v2738 = vmul.f32 %v2714, %v1702
    %v2739 = vmul.f32 %v2717, %v1704
    %v2740 = vmul.f32 %v2714, %v1706
    %v2741 = vmul.f32 %v2717, %v1708
    %v2742 = vmul.f32 %v2714, 0.35355338
    %v2743 = vmul.f32 %v2717, 0.35355338
    %v2744 = vpack.c.bf16 %v2743, %v2742
    %v2745 = vpack.c.bf16 %v2727, %v2726
    %v2746 = vpack.c.bf16 %v2729, %v2728
    %v2747 = vpack.c.bf16 %v2731, %v2730
    %v2748 = vpack.c.bf16 %v2733, %v2732
    %2753 = vrot.lane.b32.xlu0 %v2745, 96
    %v2754 = vpop.permute.xlu0 %2753
    %2755 = vrot.lane.b32.xlu0 %v2746, 96
    %v2756 = vpop.permute.xlu0 %2755
    %2757 = vrot.lane.b32.xlu0 %v2747, 96
    %v2758 = vpop.permute.xlu0 %2757
    %2759 = vrot.lane.b32.xlu0 %v2748, 96
    %v2760 = vpop.permute.xlu0 %2759
    %v2762 = vsel %vm151, %v2744, 0
    %v2765 = vsel %vm151, %v2754, 0
    %v2768 = vsel %vm151, %v2756, 0
    %v2771 = vsel %vm151, %v2758, 0
    %v2774 = vsel %vm151, %v2760, 0
    %2776 = vmatprep.subr.bf16.mxu0 0
    %2777 = vmatpush1.bf16.xpose.msra.mxu0 %v2765
    %2778 = vmatprep.subr.bf16.mxu0 0
    %2779 = vmatpush1.bf16.xpose.msra.mxu0 %v2768
    %2780 = vmatprep.subr.bf16.mxu0 0
    %2781 = vmatpush1.bf16.xpose.msra.mxu0 %v2771
    %2782 = vmatprep.subr.bf16.mxu0 0
    %2783 = vmatpush1.bf16.xpose.msra.mxu0 %v2774
    %2784 = vmatprep.subr.bf16.mxu0 0
    %2785 = vmatpush1.bf16.xpose.msra.mxu0 0
    %2786 = vmatprep.subr.bf16.mxu0 0
    %2787 = vmatpush1.bf16.xpose.msra.mxu0 0
    %2788 = vmatprep.subr.bf16.mxu0 0
    %2789 = vmatpush1.bf16.xpose.msra.mxu0 0
    %2790 = vmatprep.subr.bf16.mxu0 0
    %2791 = vmatpush1.bf16.xpose.msra.mxu0 0
    %2792 = vmatprep.subr.bf16.mxu0 0
    %2793 = vmatpush1.bf16.xpose.msra.mxu0 0
    %2794 = vmatprep.subr.bf16.mxu0 0
    %2795 = vmatpush1.bf16.xpose.msra.mxu0 0
    %2796 = vmatprep.subr.bf16.mxu0 0
    %2797 = vmatpush1.bf16.xpose.msra.mxu0 0
    %2798 = vmatprep.subr.bf16.mxu0 0
    %2799 = vmatpush1.bf16.xpose.msra.mxu0 0
    %2800 = vmatprep.subr.bf16.mxu0 0
    %2801 = vmatpush1.bf16.xpose.msra.mxu0 0
    %2802 = vmatprep.subr.bf16.mxu0 0
    %2803 = vmatpush1.bf16.xpose.msra.mxu0 0
    %2804 = vmatprep.subr.bf16.mxu0 0
    %2805 = vmatpush1.bf16.xpose.msra.mxu0 0
    %2806 = vmatprep.subr.bf16.mxu0 0
    %2807 = vmatpush1.bf16.xpose.msra.mxu0 0
    %2808 = vmatprep.mubr.bf16.mxu0 0
    %2809 = vmatmul.mubr.bf16.gmra.mrb[0].mxu0 %v2762
    %v2810 = vpop.f32.mrb[0].mxu0
    %v2811 = vadd.f32 %v337, %v2810
    %v2812 = vpop.f32.mrb[0].mxu0
    %v2813 = vpop.f32.mrb[0].mxu0
    %v2814 = vadd.f32 %v338, %v2813
    %v2815 = vpop.f32.mrb[0].mxu0
    %2816 = vdwg.mxu0
    %v2817 = vsel %vm561, %v2811, -inf
    %2818 = vmax.xlane.f32.xlu0 %v2817
    %v2819 = vpop.xlane.xlu0 %2818
    %v2820 = vsel %vm561, %v2814, -inf
    %2821 = vmax.xlane.f32.xlu0 %v2820
    %v2822 = vpop.xlane.xlu0 %2821
    %v2823 = vsub.f32 %v2811, %v2819
    %v2824 = vsub.f32 %v2814, %v2822
    %v2825 = vmul.f32 %v2823, 1.442695
    %v2826 = vpow.pop %v2825
    %v2827 = vmul.f32 %v2824, 1.442695
    %v2828 = vpow.pop %v2827
    %2837 = vrot.lane.b32.xlu0 %v2734, 64
    %v2838 = vpop.permute.xlu0 %2837
    %2839 = vrot.lane.b32.xlu0 %v2735, 64
    %v2840 = vpop.permute.xlu0 %2839
    %2841 = vrot.lane.b32.xlu0 %v2736, 64
    %v2842 = vpop.permute.xlu0 %2841
    %2843 = vrot.lane.b32.xlu0 %v2737, 64
    %v2844 = vpop.permute.xlu0 %2843
    %2845 = vrot.lane.b32.xlu0 %v2738, 64
    %v2846 = vpop.permute.xlu0 %2845
    %2847 = vrot.lane.b32.xlu0 %v2739, 64
    %v2848 = vpop.permute.xlu0 %2847
    %2849 = vrot.lane.b32.xlu0 %v2740, 64
    %v2850 = vpop.permute.xlu0 %2849
    %2851 = vrot.lane.b32.xlu0 %v2741, 64
    %v2852 = vpop.permute.xlu0 %2851
    %v2861 = vsel %vm151, %v2838, %v1662
    %v2862 = vsel %vm151, %v2840, %v1664
    %v2863 = vsel %vm151, %v2842, %v1666
    %v2864 = vsel %vm151, %v2844, %v1668
    %v2865 = vsel %vm151, %v2846, %v1670
    %v2866 = vsel %vm151, %v2848, %v1672
    %v2867 = vsel %vm151, %v2850, %v1674
    %v2868 = vsel %vm151, %v2852, %v1676
    %v2869 = vpack.c.bf16 %v2828, %v2826
    %v2870 = vpack.c.bf16 %v2862, %v2861
    %v2871 = vpack.c.bf16 %v2864, %v2863
    %v2872 = vpack.c.bf16 %v2866, %v2865
    %v2873 = vpack.c.bf16 %v2868, %v2867
    %v2875 = vsel %vm561, %v2869, 0
    %2877 = vmatprep.subr.bf16.mxu0 0
    %2878 = vmatpush1.bf16.msra.mxu0 %v2870
    %2879 = vmatprep.subr.bf16.mxu0 0
    %2880 = vmatpush1.bf16.msra.mxu0 %v2871
    %2881 = vmatprep.subr.bf16.mxu0 0
    %2882 = vmatpush1.bf16.msra.mxu0 %v2872
    %2883 = vmatprep.subr.bf16.mxu0 0
    %2884 = vmatpush1.bf16.msra.mxu0 %v2873
    %2885 = vmatprep.subr.bf16.mxu0 0
    %2886 = vmatpush1.bf16.msra.mxu0 0
    %2887 = vmatprep.subr.bf16.mxu0 0
    %2888 = vmatpush1.bf16.msra.mxu0 0
    %2889 = vmatprep.subr.bf16.mxu0 0
    %2890 = vmatpush1.bf16.msra.mxu0 0
    %2891 = vmatprep.subr.bf16.mxu0 0
    %2892 = vmatpush1.bf16.msra.mxu0 0
    %2893 = vmatprep.subr.bf16.mxu0 0
    %2894 = vmatpush1.bf16.msra.mxu0 0
    %2895 = vmatprep.subr.bf16.mxu0 0
    %2896 = vmatpush1.bf16.msra.mxu0 0
    %2897 = vmatprep.subr.bf16.mxu0 0
    %2898 = vmatpush1.bf16.msra.mxu0 0
    %2899 = vmatprep.subr.bf16.mxu0 0
    %2900 = vmatpush1.bf16.msra.mxu0 0
    %2901 = vmatprep.subr.bf16.mxu0 0
    %2902 = vmatpush1.bf16.msra.mxu0 0
    %2903 = vmatprep.subr.bf16.mxu0 0
    %2904 = vmatpush1.bf16.msra.mxu0 0
    %2905 = vmatprep.subr.bf16.mxu0 0
    %2906 = vmatpush1.bf16.msra.mxu0 0
    %2907 = vmatprep.subr.bf16.mxu0 0
    %2908 = vmatpush1.bf16.msra.mxu0 0
    %2909 = vmatprep.mubr.bf16.mxu0 0
    %2910 = vmatmul.mubr.bf16.gmra.mrb[0].mxu0 %v2875
    %v2911 = vpop.f32.mrb[0].mxu0
    %v2912 = vadd.f32 0.0, %v2911
    %v2913 = vpop.f32.mrb[0].mxu0
    %v2914 = vpop.f32.mrb[0].mxu0
    %v2915 = vadd.f32 0.0, %v2914
    %v2916 = vpop.f32.mrb[0].mxu0
    %2917 = vdwg.mxu0
    %v2918 = vmax.f32 %v2912, 1e-30
    %v2919 = vmax.f32 %v2915, 1e-30
    %2922 = vrot.lane.b32.xlu0 %v2918, 96
    %v2923 = vpop.permute.xlu0 %2922
    %2924 = vrot.lane.b32.xlu0 %v2919, 96
    %v2925 = vpop.permute.xlu0 %2924
    %v2928 = vrcp.pop %v2923
    %v2929 = vmul.f32 %v2912, %v2928
    %v2930 = vrcp.pop %v2925
    %v2931 = vmul.f32 %v2915, %v2930
    %v2932 = vpack.c.bf16 %v2931, %v2929
    %v2933 = vlaneseq
    %v2934 = vshrl.u32 %v2933, 7
    %v2935 = vsub.s32 0, %v2934
    %v2936 = vrot.slane %v2725, %v2935
    %v2941 = vunpack.c.l.b16 %v2721
    %v2942 = vunpack.c.l.b16 %v2722
    %v2943 = vunpack.c.l.b16 %v2723
    %v2944 = vunpack.c.l.b16 %v2724
    %v2945 = vpack.c.b16 %v2942, %v2941
    %v2946 = vpack.c.b16 %v2944, %v2943
    %v2950 = vsel %vm151, %v2932, 0
    %2952 = vmatprep.subr.bf16.mxu0 0
    %2953 = vmatpush1.bf16.msra.mxu0 %v2945
    %2954 = vmatprep.subr.bf16.mxu0 0
    %2955 = vmatpush1.bf16.msra.mxu0 %v2946
    %2956 = vmatprep.subr.bf16.mxu0 0
    %2957 = vmatpush1.bf16.msra.mxu0 0
    %2958 = vmatprep.subr.bf16.mxu0 0
    %2959 = vmatpush1.bf16.msra.mxu0 0
    %2960 = vmatprep.subr.bf16.mxu0 0
    %2961 = vmatpush1.bf16.msra.mxu0 0
    %2962 = vmatprep.subr.bf16.mxu0 0
    %2963 = vmatpush1.bf16.msra.mxu0 0
    %2964 = vmatprep.subr.bf16.mxu0 0
    %2965 = vmatpush1.bf16.msra.mxu0 0
    %2966 = vmatprep.subr.bf16.mxu0 0
    %2967 = vmatpush1.bf16.msra.mxu0 0
    %2968 = vmatprep.subr.bf16.mxu0 0
    %2969 = vmatpush1.bf16.msra.mxu0 0
    %2970 = vmatprep.subr.bf16.mxu0 0
    %2971 = vmatpush1.bf16.msra.mxu0 0
    %2972 = vmatprep.subr.bf16.mxu0 0
    %2973 = vmatpush1.bf16.msra.mxu0 0
    %2974 = vmatprep.subr.bf16.mxu0 0
    %2975 = vmatpush1.bf16.msra.mxu0 0
    %2976 = vmatprep.subr.bf16.mxu0 0
    %2977 = vmatpush1.bf16.msra.mxu0 0
    %2978 = vmatprep.subr.bf16.mxu0 0
    %2979 = vmatpush1.bf16.msra.mxu0 0
    %2980 = vmatprep.subr.bf16.mxu0 0
    %2981 = vmatpush1.bf16.msra.mxu0 0
    %2982 = vmatprep.subr.bf16.mxu0 0
    %2983 = vmatpush1.bf16.msra.mxu0 0
    %2984 = vmatprep.mubr.bf16.mxu0 0
    %2985 = vmatmul.mubr.bf16.gmra.mrb[0].mxu0 %v2950
    %v2986 = vpop.f32.mrb[0].mxu0
    %v2987 = vadd.f32 %v2936, %v2986
    %v2988 = vpop.f32.mrb[0].mxu0
    %v2989 = vpop.f32.mrb[0].mxu0
    %v2990 = vadd.f32 %v2936, %v2989
    %v2991 = vpop.f32.mrb[0].mxu0
    %2992 = vdwg.mxu0
    %v2993 = vadd.f32 %v2651, %v2987
    %v2994 = vadd.f32 %v2652, %v2990
    %v2995 = vld [vmem:[%s4 + $0x3a] sm:$0x1]
    %v2996 = vld [vmem:[%s4 + $0x3b] sm:$0x1]
    %v2997 = vsel %vm151, %v2993, 0.0
    %2998 = vadd.xlane.f32.xlu0 %v2997
    %v2999 = vpop.xlane.xlu0 %2998
    %v3000 = vsel %vm151, %v2994, 0.0
    %3001 = vadd.xlane.f32.xlu0 %v3000
    %v3002 = vpop.xlane.xlu0 %3001
    %v3003 = vmul.f32 %v2999, %v158
    %v3004 = vmul.f32 %v3002, %v158
    %v3005 = vsub.f32 %v2993, %v3003
    %v3006 = vsub.f32 %v2994, %v3004
    %v3007 = vmul.f32 %v3005, %v3005
    %v3008 = vmul.f32 %v3006, %v3006
    %v3009 = vsel %vm151, %v3007, 0.0
    %3010 = vadd.xlane.f32.xlu0 %v3009
    %v3011 = vpop.xlane.xlu0 %3010
    %v3012 = vsel %vm151, %v3008, 0.0
    %3013 = vadd.xlane.f32.xlu0 %v3012
    %v3014 = vpop.xlane.xlu0 %3013
    %v3015 = vmul.f32 %v3011, %v158
    %v3016 = vmul.f32 %v3014, %v158
    %v3017 = vadd.f32 %v3015, 1e-12
    %v3018 = vadd.f32 %v3016, 1e-12
    %v3019 = vrsqrt.pop %v3017
    %v3020 = vrsqrt.pop %v3018
    %v3021 = vmul.f32 %v3005, %v3019
    %v3022 = vmul.f32 %v3006, %v3020
    %v3023 = vlaneseq
    %v3024 = vshrl.u32 %v3023, 7
    %v3025 = vsub.s32 0, %v3024
    %v3026 = vrot.slane %v2995, %v3025
    %v3027 = vmul.f32 %v3021, %v3026
    %v3028 = vmul.f32 %v3022, %v3026
    %v3029 = vlaneseq
    %v3030 = vshrl.u32 %v3029, 7
    %v3031 = vsub.s32 0, %v3030
    %v3032 = vrot.slane %v2996, %v3031
    %v3033 = vadd.f32 %v3027, %v3032
    %v3034 = vadd.f32 %v3028, %v3032
    %s3035 = scalar_lea.vmem %s5, 80
    %v3036 = vld [vmem:[%s3035] sm:$0xf]
    %v3037 = vld [vmem:[%s3035 + $0x4] sm:$0xf]
    %v3038 = vld [vmem:[%s3035 + $0x8] sm:$0xf]
    %v3039 = vld [vmem:[%s3035 + $0xc] sm:$0xf]
    %v3040 = vld [vmem:[%s9 + $0x5] sm:$0x1]
    %v3041 = vpack.c.bf16 %v3034, %v3033
    %v3042 = vlaneseq
    %v3043 = vshrl.u32 %v3042, 7
    %v3044 = vsub.s32 0, %v3043
    %v3045 = vrot.slane %v3040, %v3044
    %v3050 = vunpack.c.l.b16 %v3036
    %v3051 = vunpack.c.l.b16 %v3037
    %v3052 = vunpack.c.l.b16 %v3038
    %v3053 = vunpack.c.l.b16 %v3039
    %v3054 = vpack.c.b16 %v3051, %v3050
    %v3055 = vpack.c.b16 %v3053, %v3052
    %v3059 = vsel %vm151, %v3041, 0
    %3061 = vmatprep.subr.bf16.mxu0 0
    %3062 = vmatpush1.bf16.msra.mxu0 %v3054
    %3063 = vmatprep.subr.bf16.mxu0 0
    %3064 = vmatpush1.bf16.msra.mxu0 %v3055
    %3065 = vmatprep.subr.bf16.mxu0 0
    %3066 = vmatpush1.bf16.msra.mxu0 0
    %3067 = vmatprep.subr.bf16.mxu0 0
    %3068 = vmatpush1.bf16.msra.mxu0 0
    %3069 = vmatprep.subr.bf16.mxu0 0
    %3070 = vmatpush1.bf16.msra.mxu0 0
    %3071 = vmatprep.subr.bf16.mxu0 0
    %3072 = vmatpush1.bf16.msra.mxu0 0
    %3073 = vmatprep.subr.bf16.mxu0 0
    %3074 = vmatpush1.bf16.msra.mxu0 0
    %3075 = vmatprep.subr.bf16.mxu0 0
    %3076 = vmatpush1.bf16.msra.mxu0 0
    %3077 = vmatprep.subr.bf16.mxu0 0
    %3078 = vmatpush1.bf16.msra.mxu0 0
    %3079 = vmatprep.subr.bf16.mxu0 0
    %3080 = vmatpush1.bf16.msra.mxu0 0
    %3081 = vmatprep.subr.bf16.mxu0 0
    %3082 = vmatpush1.bf16.msra.mxu0 0
    %3083 = vmatprep.subr.bf16.mxu0 0
    %3084 = vmatpush1.bf16.msra.mxu0 0
    %3085 = vmatprep.subr.bf16.mxu0 0
    %3086 = vmatpush1.bf16.msra.mxu0 0
    %3087 = vmatprep.subr.bf16.mxu0 0
    %3088 = vmatpush1.bf16.msra.mxu0 0
    %3089 = vmatprep.subr.bf16.mxu0 0
    %3090 = vmatpush1.bf16.msra.mxu0 0
    %3091 = vmatprep.subr.bf16.mxu0 0
    %3092 = vmatpush1.bf16.msra.mxu0 0
    %3093 = vmatprep.mubr.bf16.mxu0 0
    %3094 = vmatmul.mubr.bf16.gmra.mrb[0].mxu0 %v3059
    %v3095 = vpop.f32.mrb[0].mxu0
    %v3096 = vadd.f32 %v3045, %v3095
    %v3097 = vpop.f32.mrb[0].mxu0
    %v3098 = vpop.f32.mrb[0].mxu0
    %v3099 = vadd.f32 %v3045, %v3098
    %v3100 = vpop.f32.mrb[0].mxu0
    %3101 = vdwg.mxu0
    %3102 = vrot.lane.b32.xlu0 %v3054, 96
    %v3103 = vpop.permute.xlu0 %3102
    %3104 = vrot.lane.b32.xlu0 %v3055, 96
    %v3105 = vpop.permute.xlu0 %3104
    %3109 = vrot.lane.b32.xlu0 %v3045, 96
    %v3110 = vpop.permute.xlu0 %3109
    %3112 = vmatprep.subr.bf16.mxu0 0
    %3113 = vmatpush1.bf16.msra.mxu0 %v3103
    %3114 = vmatprep.subr.bf16.mxu0 0
    %3115 = vmatpush1.bf16.msra.mxu0 %v3105
    %3116 = vmatprep.subr.bf16.mxu0 0
    %3117 = vmatpush1.bf16.msra.mxu0 0
    %3118 = vmatprep.subr.bf16.mxu0 0
    %3119 = vmatpush1.bf16.msra.mxu0 0
    %3120 = vmatprep.subr.bf16.mxu0 0
    %3121 = vmatpush1.bf16.msra.mxu0 0
    %3122 = vmatprep.subr.bf16.mxu0 0
    %3123 = vmatpush1.bf16.msra.mxu0 0
    %3124 = vmatprep.subr.bf16.mxu0 0
    %3125 = vmatpush1.bf16.msra.mxu0 0
    %3126 = vmatprep.subr.bf16.mxu0 0
    %3127 = vmatpush1.bf16.msra.mxu0 0
    %3128 = vmatprep.subr.bf16.mxu0 0
    %3129 = vmatpush1.bf16.msra.mxu0 0
    %3130 = vmatprep.subr.bf16.mxu0 0
    %3131 = vmatpush1.bf16.msra.mxu0 0
    %3132 = vmatprep.subr.bf16.mxu0 0
    %3133 = vmatpush1.bf16.msra.mxu0 0
    %3134 = vmatprep.subr.bf16.mxu0 0
    %3135 = vmatpush1.bf16.msra.mxu0 0
    %3136 = vmatprep.subr.bf16.mxu0 0
    %3137 = vmatpush1.bf16.msra.mxu0 0
    %3138 = vmatprep.subr.bf16.mxu0 0
    %3139 = vmatpush1.bf16.msra.mxu0 0
    %3140 = vmatprep.subr.bf16.mxu0 0
    %3141 = vmatpush1.bf16.msra.mxu0 0
    %3142 = vmatprep.subr.bf16.mxu0 0
    %3143 = vmatpush1.bf16.msra.mxu0 0
    %3144 = vmatprep.mubr.bf16.mxu0 0
    %3145 = vmatmul.mubr.bf16.gmra.mrb[0].mxu0 %v2097
    %v3146 = vpop.f32.mrb[0].mxu0
    %v3147 = vadd.f32 %v3110, %v3146
    %v3148 = vpop.f32.mrb[0].mxu0
    %v3149 = vpop.f32.mrb[0].mxu0
    %v3150 = vadd.f32 %v3110, %v3149
    %v3151 = vpop.f32.mrb[0].mxu0
    %3152 = vdwg.mxu0
    %s3153 = scalar_lea.vmem %s6, 80
    %v3154 = vld [vmem:[%s3153] sm:$0xf]
    %v3155 = vld [vmem:[%s3153 + $0x4] sm:$0xf]
    %v3156 = vld [vmem:[%s3153 + $0x8] sm:$0xf]
    %v3157 = vld [vmem:[%s3153 + $0xc] sm:$0xf]
    %v3158 = vld [vmem:[%s4 + $0x3c] sm:$0x1]
    %v3159 = vmul.f32 %v3147, %v329
    %v3160 = vmul.f32 %v3150, %v330
    %v3161 = vmul.f32 %v3147, %v331
    %v3162 = vmul.f32 %v3150, %v332
    %v3163 = vmul.f32 %v3147, %v333
    %v3164 = vmul.f32 %v3150, %v334
    %v3165 = vmul.f32 %v3147, %v335
    %v3166 = vmul.f32 %v3150, %v336
    %v3167 = vmul.f32 %v3147, %v423
    %v3168 = vmul.f32 %v3150, %v425
    %v3169 = vmul.f32 %v3147, %v427
    %v3170 = vmul.f32 %v3150, %v429
    %v3171 = vmul.f32 %v3147, %v431
    %v3172 = vmul.f32 %v3150, %v433
    %v3173 = vmul.f32 %v3147, %v435
    %v3174 = vmul.f32 %v3150, %v437
    %v3175 = vmul.f32 %v3096, 0.35355338
    %v3176 = vmul.f32 %v3099, 0.35355338
    %v3177 = vpack.c.bf16 %v3176, %v3175
    %v3178 = vpack.c.bf16 %v3160, %v3159
    %v3179 = vpack.c.bf16 %v3162, %v3161
    %v3180 = vpack.c.bf16 %v3164, %v3163
    %v3181 = vpack.c.bf16 %v3166, %v3165
    %v3183 = vsel %vm151, %v3177, 0
    %v3186 = vsel %vm151, %v3178, 0
    %v3189 = vsel %vm151, %v3179, 0
    %v3192 = vsel %vm151, %v3180, 0
    %v3195 = vsel %vm151, %v3181, 0
    %3197 = vmatprep.subr.bf16.mxu0 0
    %3198 = vmatpush1.bf16.xpose.msra.mxu0 %v3186
    %3199 = vmatprep.subr.bf16.mxu0 0
    %3200 = vmatpush1.bf16.xpose.msra.mxu0 %v3189
    %3201 = vmatprep.subr.bf16.mxu0 0
    %3202 = vmatpush1.bf16.xpose.msra.mxu0 %v3192
    %3203 = vmatprep.subr.bf16.mxu0 0
    %3204 = vmatpush1.bf16.xpose.msra.mxu0 %v3195
    %3205 = vmatprep.subr.bf16.mxu0 0
    %3206 = vmatpush1.bf16.xpose.msra.mxu0 0
    %3207 = vmatprep.subr.bf16.mxu0 0
    %3208 = vmatpush1.bf16.xpose.msra.mxu0 0
    %3209 = vmatprep.subr.bf16.mxu0 0
    %3210 = vmatpush1.bf16.xpose.msra.mxu0 0
    %3211 = vmatprep.subr.bf16.mxu0 0
    %3212 = vmatpush1.bf16.xpose.msra.mxu0 0
    %3213 = vmatprep.subr.bf16.mxu0 0
    %3214 = vmatpush1.bf16.xpose.msra.mxu0 0
    %3215 = vmatprep.subr.bf16.mxu0 0
    %3216 = vmatpush1.bf16.xpose.msra.mxu0 0
    %3217 = vmatprep.subr.bf16.mxu0 0
    %3218 = vmatpush1.bf16.xpose.msra.mxu0 0
    %3219 = vmatprep.subr.bf16.mxu0 0
    %3220 = vmatpush1.bf16.xpose.msra.mxu0 0
    %3221 = vmatprep.subr.bf16.mxu0 0
    %3222 = vmatpush1.bf16.xpose.msra.mxu0 0
    %3223 = vmatprep.subr.bf16.mxu0 0
    %3224 = vmatpush1.bf16.xpose.msra.mxu0 0
    %3225 = vmatprep.subr.bf16.mxu0 0
    %3226 = vmatpush1.bf16.xpose.msra.mxu0 0
    %3227 = vmatprep.subr.bf16.mxu0 0
    %3228 = vmatpush1.bf16.xpose.msra.mxu0 0
    %3229 = vmatprep.mubr.bf16.mxu0 0
    %3230 = vmatmul.mubr.bf16.gmra.mrb[0].mxu0 %v3183
    %v3231 = vpop.f32.mrb[0].mxu0
    %v3232 = vadd.f32 %v341, %v3231
    %v3233 = vpop.f32.mrb[0].mxu0
    %v3234 = vpop.f32.mrb[0].mxu0
    %v3235 = vadd.f32 %v342, %v3234
    %v3236 = vpop.f32.mrb[0].mxu0
    %3237 = vdwg.mxu0
    %v3238 = vsel %vm561, %v3232, -inf
    %3239 = vmax.xlane.f32.xlu0 %v3238
    %v3240 = vpop.xlane.xlu0 %3239
    %v3241 = vsel %vm561, %v3235, -inf
    %3242 = vmax.xlane.f32.xlu0 %v3241
    %v3243 = vpop.xlane.xlu0 %3242
    %v3244 = vsub.f32 %v3232, %v3240
    %v3245 = vsub.f32 %v3235, %v3243
    %v3246 = vmul.f32 %v3244, 1.442695
    %v3247 = vpow.pop %v3246
    %v3248 = vmul.f32 %v3245, 1.442695
    %v3249 = vpow.pop %v3248
    %3258 = vrot.lane.b32.xlu0 %v3167, 96
    %v3259 = vpop.permute.xlu0 %3258
    %3260 = vrot.lane.b32.xlu0 %v3168, 96
    %v3261 = vpop.permute.xlu0 %3260
    %3262 = vrot.lane.b32.xlu0 %v3169, 96
    %v3263 = vpop.permute.xlu0 %3262
    %3264 = vrot.lane.b32.xlu0 %v3170, 96
    %v3265 = vpop.permute.xlu0 %3264
    %3266 = vrot.lane.b32.xlu0 %v3171, 96
    %v3267 = vpop.permute.xlu0 %3266
    %3268 = vrot.lane.b32.xlu0 %v3172, 96
    %v3269 = vpop.permute.xlu0 %3268
    %3270 = vrot.lane.b32.xlu0 %v3173, 96
    %v3271 = vpop.permute.xlu0 %3270
    %3272 = vrot.lane.b32.xlu0 %v3174, 96
    %v3273 = vpop.permute.xlu0 %3272
    %v3282 = vsel %vm151, %v3259, %v423
    %v3283 = vsel %vm151, %v3261, %v425
    %v3284 = vsel %vm151, %v3263, %v427
    %v3285 = vsel %vm151, %v3265, %v429
    %v3286 = vsel %vm151, %v3267, %v431
    %v3287 = vsel %vm151, %v3269, %v433
    %v3288 = vsel %vm151, %v3271, %v435
    %v3289 = vsel %vm151, %v3273, %v437
    %v3290 = vpack.c.bf16 %v3249, %v3247
    %v3291 = vpack.c.bf16 %v3283, %v3282
    %v3292 = vpack.c.bf16 %v3285, %v3284
    %v3293 = vpack.c.bf16 %v3287, %v3286
    %v3294 = vpack.c.bf16 %v3289, %v3288
    %v3296 = vsel %vm561, %v3290, 0
    %3298 = vmatprep.subr.bf16.mxu0 0
    %3299 = vmatpush1.bf16.msra.mxu0 %v3291
    %3300 = vmatprep.subr.bf16.mxu0 0
    %3301 = vmatpush1.bf16.msra.mxu0 %v3292
    %3302 = vmatprep.subr.bf16.mxu0 0
    %3303 = vmatpush1.bf16.msra.mxu0 %v3293
    %3304 = vmatprep.subr.bf16.mxu0 0
    %3305 = vmatpush1.bf16.msra.mxu0 %v3294
    %3306 = vmatprep.subr.bf16.mxu0 0
    %3307 = vmatpush1.bf16.msra.mxu0 0
    %3308 = vmatprep.subr.bf16.mxu0 0
    %3309 = vmatpush1.bf16.msra.mxu0 0
    %3310 = vmatprep.subr.bf16.mxu0 0
    %3311 = vmatpush1.bf16.msra.mxu0 0
    %3312 = vmatprep.subr.bf16.mxu0 0
    %3313 = vmatpush1.bf16.msra.mxu0 0
    %3314 = vmatprep.subr.bf16.mxu0 0
    %3315 = vmatpush1.bf16.msra.mxu0 0
    %3316 = vmatprep.subr.bf16.mxu0 0
    %3317 = vmatpush1.bf16.msra.mxu0 0
    %3318 = vmatprep.subr.bf16.mxu0 0
    %3319 = vmatpush1.bf16.msra.mxu0 0
    %3320 = vmatprep.subr.bf16.mxu0 0
    %3321 = vmatpush1.bf16.msra.mxu0 0
    %3322 = vmatprep.subr.bf16.mxu0 0
    %3323 = vmatpush1.bf16.msra.mxu0 0
    %3324 = vmatprep.subr.bf16.mxu0 0
    %3325 = vmatpush1.bf16.msra.mxu0 0
    %3326 = vmatprep.subr.bf16.mxu0 0
    %3327 = vmatpush1.bf16.msra.mxu0 0
    %3328 = vmatprep.subr.bf16.mxu0 0
    %3329 = vmatpush1.bf16.msra.mxu0 0
    %3330 = vmatprep.mubr.bf16.mxu0 0
    %3331 = vmatmul.mubr.bf16.gmra.mrb[0].mxu0 %v3296
    %v3332 = vpop.f32.mrb[0].mxu0
    %v3333 = vadd.f32 0.0, %v3332
    %v3334 = vpop.f32.mrb[0].mxu0
    %v3335 = vpop.f32.mrb[0].mxu0
    %v3336 = vadd.f32 0.0, %v3335
    %v3337 = vpop.f32.mrb[0].mxu0
    %3338 = vdwg.mxu0
    %v3339 = vmax.f32 %v3333, 1e-30
    %v3340 = vmax.f32 %v3336, 1e-30
    %3343 = vrot.lane.b32.xlu0 %v3339, 96
    %v3344 = vpop.permute.xlu0 %3343
    %3345 = vrot.lane.b32.xlu0 %v3340, 96
    %v3346 = vpop.permute.xlu0 %3345
    %v3349 = vrcp.pop %v3344
    %v3350 = vmul.f32 %v3333, %v3349
    %v3351 = vrcp.pop %v3346
    %v3352 = vmul.f32 %v3336, %v3351
    %v3353 = vpack.c.bf16 %v3352, %v3350
    %v3354 = vlaneseq
    %v3355 = vshrl.u32 %v3354, 7
    %v3356 = vsub.s32 0, %v3355
    %v3357 = vrot.slane %v3158, %v3356
    %v3362 = vunpack.c.l.b16 %v3154
    %v3363 = vunpack.c.l.b16 %v3155
    %v3364 = vunpack.c.l.b16 %v3156
    %v3365 = vunpack.c.l.b16 %v3157
    %v3366 = vpack.c.b16 %v3363, %v3362
    %v3367 = vpack.c.b16 %v3365, %v3364
    %v3371 = vsel %vm151, %v3353, 0
    %3373 = vmatprep.subr.bf16.mxu0 0
    %3374 = vmatpush1.bf16.msra.mxu0 %v3366
    %3375 = vmatprep.subr.bf16.mxu0 0
    %3376 = vmatpush1.bf16.msra.mxu0 %v3367
    %3377 = vmatprep.subr.bf16.mxu0 0
    %3378 = vmatpush1.bf16.msra.mxu0 0
    %3379 = vmatprep.subr.bf16.mxu0 0
    %3380 = vmatpush1.bf16.msra.mxu0 0
    %3381 = vmatprep.subr.bf16.mxu0 0
    %3382 = vmatpush1.bf16.msra.mxu0 0
    %3383 = vmatprep.subr.bf16.mxu0 0
    %3384 = vmatpush1.bf16.msra.mxu0 0
    %3385 = vmatprep.subr.bf16.mxu0 0
    %3386 = vmatpush1.bf16.msra.mxu0 0
    %3387 = vmatprep.subr.bf16.mxu0 0
    %3388 = vmatpush1.bf16.msra.mxu0 0
    %3389 = vmatprep.subr.bf16.mxu0 0
    %3390 = vmatpush1.bf16.msra.mxu0 0
    %3391 = vmatprep.subr.bf16.mxu0 0
    %3392 = vmatpush1.bf16.msra.mxu0 0
    %3393 = vmatprep.subr.bf16.mxu0 0
    %3394 = vmatpush1.bf16.msra.mxu0 0
    %3395 = vmatprep.subr.bf16.mxu0 0
    %3396 = vmatpush1.bf16.msra.mxu0 0
    %3397 = vmatprep.subr.bf16.mxu0 0
    %3398 = vmatpush1.bf16.msra.mxu0 0
    %3399 = vmatprep.subr.bf16.mxu0 0
    %3400 = vmatpush1.bf16.msra.mxu0 0
    %3401 = vmatprep.subr.bf16.mxu0 0
    %3402 = vmatpush1.bf16.msra.mxu0 0
    %3403 = vmatprep.subr.bf16.mxu0 0
    %3404 = vmatpush1.bf16.msra.mxu0 0
    %3405 = vmatprep.mubr.bf16.mxu0 0
    %3406 = vmatmul.mubr.bf16.gmra.mrb[0].mxu0 %v3371
    %v3407 = vpop.f32.mrb[0].mxu0
    %v3408 = vadd.f32 %v3357, %v3407
    %v3409 = vpop.f32.mrb[0].mxu0
    %v3410 = vpop.f32.mrb[0].mxu0
    %v3411 = vadd.f32 %v3357, %v3410
    %v3412 = vpop.f32.mrb[0].mxu0
    %3413 = vdwg.mxu0
    %v3414 = vadd.f32 %v3033, %v3408
    %v3415 = vadd.f32 %v3034, %v3411
    %v3416 = vld [vmem:[%s4 + $0x3d] sm:$0x1]
    %v3417 = vld [vmem:[%s4 + $0x3e] sm:$0x1]
    %v3418 = vsel %vm151, %v3414, 0.0
    %3419 = vadd.xlane.f32.xlu0 %v3418
    %v3420 = vpop.xlane.xlu0 %3419
    %v3421 = vsel %vm151, %v3415, 0.0
    %3422 = vadd.xlane.f32.xlu0 %v3421
    %v3423 = vpop.xlane.xlu0 %3422
    %v3424 = vmul.f32 %v3420, %v158
    %v3425 = vmul.f32 %v3423, %v158
    %v3426 = vsub.f32 %v3414, %v3424
    %v3427 = vsub.f32 %v3415, %v3425
    %v3428 = vmul.f32 %v3426, %v3426
    %v3429 = vmul.f32 %v3427, %v3427
    %v3430 = vsel %vm151, %v3428, 0.0
    %3431 = vadd.xlane.f32.xlu0 %v3430
    %v3432 = vpop.xlane.xlu0 %3431
    %v3433 = vsel %vm151, %v3429, 0.0
    %3434 = vadd.xlane.f32.xlu0 %v3433
    %v3435 = vpop.xlane.xlu0 %3434
    %v3436 = vmul.f32 %v3432, %v158
    %v3437 = vmul.f32 %v3435, %v158
    %v3438 = vadd.f32 %v3436, 1e-12
    %v3439 = vadd.f32 %v3437, 1e-12
    %v3440 = vrsqrt.pop %v3438
    %v3441 = vrsqrt.pop %v3439
    %v3442 = vmul.f32 %v3426, %v3440
    %v3443 = vmul.f32 %v3427, %v3441
    %v3444 = vlaneseq
    %v3445 = vshrl.u32 %v3444, 7
    %v3446 = vsub.s32 0, %v3445
    %v3447 = vrot.slane %v3416, %v3446
    %v3448 = vmul.f32 %v3442, %v3447
    %v3449 = vmul.f32 %v3443, %v3447
    %v3450 = vlaneseq
    %v3451 = vshrl.u32 %v3450, 7
    %v3452 = vsub.s32 0, %v3451
    %v3453 = vrot.slane %v3417, %v3452
    %v3454 = vadd.f32 %v3448, %v3453
    %v3455 = vadd.f32 %v3449, %v3453
    %s3456 = scalar_lea.vmem %s7, 48
    %v3457 = vld [vmem:[%s3456] sm:$0xf]
    %v3458 = vld [vmem:[%s3456 + $0x4] sm:$0xf]
    %v3459 = vld [vmem:[%s3456 + $0x8] sm:$0xf]
    %v3460 = vld [vmem:[%s3456 + $0xc] sm:$0xf]
    %v3461 = vld [vmem:[%s10 + $0x3] sm:$0x1]
    %s3462 = scalar_lea.vmem %s8, 96
    %v3463 = vld [vmem:[%s3462] sm:$0xf]
    %v3464 = vld [vmem:[%s3462 + $0x4] sm:$0xf]
    %v3465 = vld [vmem:[%s3462 + $0x8] sm:$0xf]
    %v3466 = vld [vmem:[%s3462 + $0xc] sm:$0xf]
    %v3467 = vld [vmem:[%s3462 + $0x10] sm:$0xf]
    %v3468 = vld [vmem:[%s3462 + $0x14] sm:$0xf]
    %v3469 = vld [vmem:[%s3462 + $0x18] sm:$0xf]
    %v3470 = vld [vmem:[%s3462 + $0x1c] sm:$0xf]
    %v3471 = vld [vmem:[%s4 + $0x3f] sm:$0x1]
    %v3472 = vpack.c.bf16 %v3455, %v3454
    %v3473 = vlaneseq
    %v3474 = vshrl.u32 %v3473, 7
    %v3475 = vsub.s32 0, %v3474
    %v3476 = vrot.slane %v3461, %v3475
    %v3481 = vunpack.c.l.b16 %v3457
    %v3482 = vunpack.c.l.b16 %v3458
    %v3483 = vunpack.c.l.b16 %v3459
    %v3484 = vunpack.c.l.b16 %v3460
    %v3485 = vpack.c.b16 %v3482, %v3481
    %v3486 = vpack.c.b16 %v3484, %v3483
    %v3490 = vsel %vm151, %v3472, 0
    %3492 = vmatprep.subr.bf16.mxu0 0
    %3493 = vmatpush1.bf16.msra.mxu0 %v3485
    %3494 = vmatprep.subr.bf16.mxu0 0
    %3495 = vmatpush1.bf16.msra.mxu0 %v3486
    %3496 = vmatprep.subr.bf16.mxu0 0
    %3497 = vmatpush1.bf16.msra.mxu0 0
    %3498 = vmatprep.subr.bf16.mxu0 0
    %3499 = vmatpush1.bf16.msra.mxu0 0
    %3500 = vmatprep.subr.bf16.mxu0 0
    %3501 = vmatpush1.bf16.msra.mxu0 0
    %3502 = vmatprep.subr.bf16.mxu0 0
    %3503 = vmatpush1.bf16.msra.mxu0 0
    %3504 = vmatprep.subr.bf16.mxu0 0
    %3505 = vmatpush1.bf16.msra.mxu0 0
    %3506 = vmatprep.subr.bf16.mxu0 0
    %3507 = vmatpush1.bf16.msra.mxu0 0
    %3508 = vmatprep.subr.bf16.mxu0 0
    %3509 = vmatpush1.bf16.msra.mxu0 0
    %3510 = vmatprep.subr.bf16.mxu0 0
    %3511 = vmatpush1.bf16.msra.mxu0 0
    %3512 = vmatprep.subr.bf16.mxu0 0
    %3513 = vmatpush1.bf16.msra.mxu0 0
    %3514 = vmatprep.subr.bf16.mxu0 0
    %3515 = vmatpush1.bf16.msra.mxu0 0
    %3516 = vmatprep.subr.bf16.mxu0 0
    %3517 = vmatpush1.bf16.msra.mxu0 0
    %3518 = vmatprep.subr.bf16.mxu0 0
    %3519 = vmatpush1.bf16.msra.mxu0 0
    %3520 = vmatprep.subr.bf16.mxu0 0
    %3521 = vmatpush1.bf16.msra.mxu0 0
    %3522 = vmatprep.subr.bf16.mxu0 0
    %3523 = vmatpush1.bf16.msra.mxu0 0
    %3524 = vmatprep.mubr.bf16.mxu0 0
    %3525 = vmatmul.mubr.bf16.gmra.mrb[0].mxu0 %v3490
    %v3526 = vpop.f32.mrb[0].mxu0
    %v3527 = vadd.f32 %v3476, %v3526
    %v3528 = vpop.f32.mrb[0].mxu0
    %v3529 = vpop.f32.mrb[0].mxu0
    %v3530 = vadd.f32 %v3476, %v3529
    %v3531 = vpop.f32.mrb[0].mxu0
    %3532 = vdwg.mxu0
    %v3533 = vmul.f32 %v3527, 0.5
    %v3534 = vmul.f32 %v3530, 0.5
    %v3535 = vmul.f32 %v3527, 0.044715
    %v3536 = vmul.f32 %v3530, 0.044715
    %v3537 = vmul.f32 %v3535, %v3527
    %v3538 = vmul.f32 %v3536, %v3530
    %v3539 = vmul.f32 %v3537, %v3527
    %v3540 = vmul.f32 %v3538, %v3530
    %v3541 = vadd.f32 %v3527, %v3539
    %v3542 = vadd.f32 %v3530, %v3540
    %v3543 = vmul.f32 %v3541, 0.7978846
    %v3544 = vmul.f32 %v3542, 0.7978846
    %v3545 = vtanh.pop %v3543
    %v3546 = vtanh.pop %v3544
    %v3547 = vadd.f32 %v3545, 1.0
    %v3548 = vadd.f32 %v3546, 1.0
    %v3549 = vmul.f32 %v3533, %v3547
    %v3550 = vmul.f32 %v3534, %v3548
    %v3551 = vpack.c.bf16 %v3550, %v3549
    %v3552 = vlaneseq
    %v3553 = vshrl.u32 %v3552, 7
    %v3554 = vsub.s32 0, %v3553
    %v3555 = vrot.slane %v3471, %v3554
    %v3564 = vunpack.c.l.b16 %v3463
    %v3565 = vunpack.c.l.b16 %v3464
    %v3566 = vunpack.c.l.b16 %v3465
    %v3567 = vunpack.c.l.b16 %v3466
    %v3568 = vunpack.c.l.b16 %v3467
    %v3569 = vunpack.c.l.b16 %v3468
    %v3570 = vunpack.c.l.b16 %v3469
    %v3571 = vunpack.c.l.b16 %v3470
    %v3572 = vpack.c.b16 %v3565, %v3564
    %v3573 = vpack.c.b16 %v3567, %v3566
    %v3574 = vpack.c.b16 %v3569, %v3568
    %v3575 = vpack.c.b16 %v3571, %v3570
    %v3581 = vsel %vm561, %v3551, 0
    %3583 = vmatprep.subr.bf16.mxu0 0
    %3584 = vmatpush1.bf16.msra.mxu0 %v3572
    %3585 = vmatprep.subr.bf16.mxu0 0
    %3586 = vmatpush1.bf16.msra.mxu0 %v3573
    %3587 = vmatprep.subr.bf16.mxu0 0
    %3588 = vmatpush1.bf16.msra.mxu0 %v3574
    %3589 = vmatprep.subr.bf16.mxu0 0
    %3590 = vmatpush1.bf16.msra.mxu0 %v3575
    %3591 = vmatprep.subr.bf16.mxu0 0
    %3592 = vmatpush1.bf16.msra.mxu0 0
    %3593 = vmatprep.subr.bf16.mxu0 0
    %3594 = vmatpush1.bf16.msra.mxu0 0
    %3595 = vmatprep.subr.bf16.mxu0 0
    %3596 = vmatpush1.bf16.msra.mxu0 0
    %3597 = vmatprep.subr.bf16.mxu0 0
    %3598 = vmatpush1.bf16.msra.mxu0 0
    %3599 = vmatprep.subr.bf16.mxu0 0
    %3600 = vmatpush1.bf16.msra.mxu0 0
    %3601 = vmatprep.subr.bf16.mxu0 0
    %3602 = vmatpush1.bf16.msra.mxu0 0
    %3603 = vmatprep.subr.bf16.mxu0 0
    %3604 = vmatpush1.bf16.msra.mxu0 0
    %3605 = vmatprep.subr.bf16.mxu0 0
    %3606 = vmatpush1.bf16.msra.mxu0 0
    %3607 = vmatprep.subr.bf16.mxu0 0
    %3608 = vmatpush1.bf16.msra.mxu0 0
    %3609 = vmatprep.subr.bf16.mxu0 0
    %3610 = vmatpush1.bf16.msra.mxu0 0
    %3611 = vmatprep.subr.bf16.mxu0 0
    %3612 = vmatpush1.bf16.msra.mxu0 0
    %3613 = vmatprep.subr.bf16.mxu0 0
    %3614 = vmatpush1.bf16.msra.mxu0 0
    %3615 = vmatprep.mubr.bf16.mxu0 0
    %3616 = vmatmul.mubr.bf16.gmra.mrb[0].mxu0 %v3581
    %v3617 = vpop.f32.mrb[0].mxu0
    %v3618 = vadd.f32 %v3555, %v3617
    %v3619 = vpop.f32.mrb[0].mxu0
    %v3620 = vpop.f32.mrb[0].mxu0
    %v3621 = vadd.f32 %v3555, %v3620
    %v3622 = vpop.f32.mrb[0].mxu0
    %3623 = vdwg.mxu0
    %v3624 = vadd.f32 %v3454, %v3618
    %v3625 = vadd.f32 %v3455, %v3621
    %v3626 = vld [vmem:[%s4 + $0x40] sm:$0x1]
    %v3627 = vld [vmem:[%s4 + $0x41] sm:$0x1]
    %v3628 = vsel %vm151, %v3624, 0.0
    %3629 = vadd.xlane.f32.xlu0 %v3628
    %v3630 = vpop.xlane.xlu0 %3629
    %v3631 = vsel %vm151, %v3625, 0.0
    %3632 = vadd.xlane.f32.xlu0 %v3631
    %v3633 = vpop.xlane.xlu0 %3632
    %v3634 = vmul.f32 %v3630, %v158
    %v3635 = vmul.f32 %v3633, %v158
    %v3636 = vsub.f32 %v3624, %v3634
    %v3637 = vsub.f32 %v3625, %v3635
    %v3638 = vmul.f32 %v3636, %v3636
    %v3639 = vmul.f32 %v3637, %v3637
    %v3640 = vsel %vm151, %v3638, 0.0
    %3641 = vadd.xlane.f32.xlu0 %v3640
    %v3642 = vpop.xlane.xlu0 %3641
    %v3643 = vsel %vm151, %v3639, 0.0
    %3644 = vadd.xlane.f32.xlu0 %v3643
    %v3645 = vpop.xlane.xlu0 %3644
    %v3646 = vmul.f32 %v3642, %v158
    %v3647 = vmul.f32 %v3645, %v158
    %v3648 = vadd.f32 %v3646, 1e-12
    %v3649 = vadd.f32 %v3647, 1e-12
    %v3650 = vrsqrt.pop %v3648
    %v3651 = vrsqrt.pop %v3649
    %v3652 = vmul.f32 %v3636, %v3650
    %v3653 = vmul.f32 %v3637, %v3651
    %v3654 = vlaneseq
    %v3655 = vshrl.u32 %v3654, 7
    %v3656 = vsub.s32 0, %v3655
    %v3657 = vrot.slane %v3626, %v3656
    %v3658 = vmul.f32 %v3652, %v3657
    %v3659 = vmul.f32 %v3653, %v3657
    %v3660 = vlaneseq
    %v3661 = vshrl.u32 %v3660, 7
    %v3662 = vsub.s32 0, %v3661
    %v3663 = vrot.slane %v3627, %v3662
    %v3664 = vadd.f32 %v3658, %v3663
    %v3665 = vadd.f32 %v3659, %v3663
    %s3666 = scalar_lea.vmem %s6, 96
    %v3667 = vld [vmem:[%s3666] sm:$0xf]
    %v3668 = vld [vmem:[%s3666 + $0x4] sm:$0xf]
    %v3669 = vld [vmem:[%s3666 + $0x8] sm:$0xf]
    %v3670 = vld [vmem:[%s3666 + $0xc] sm:$0xf]
    %v3671 = vpack.c.bf16 %v3665, %v3664
    %v3672 = vld [vmem:[%s4 + $0x42] sm:$0x1]
    %v3673 = vlaneseq
    %v3674 = vshrl.u32 %v3673, 7
    %v3675 = vsub.s32 0, %v3674
    %v3676 = vrot.slane %v3672, %v3675
    %v3681 = vunpack.c.l.b16 %v3667
    %v3682 = vunpack.c.l.b16 %v3668
    %v3683 = vunpack.c.l.b16 %v3669
    %v3684 = vunpack.c.l.b16 %v3670
    %v3685 = vpack.c.b16 %v3682, %v3681
    %v3686 = vpack.c.b16 %v3684, %v3683
    %v3690 = vsel %vm151, %v3671, 0
    %3692 = vmatprep.subr.bf16.mxu0 0
    %3693 = vmatpush1.bf16.msra.mxu0 %v3685
    %3694 = vmatprep.subr.bf16.mxu0 0
    %3695 = vmatpush1.bf16.msra.mxu0 %v3686
    %3696 = vmatprep.subr.bf16.mxu0 0
    %3697 = vmatpush1.bf16.msra.mxu0 0
    %3698 = vmatprep.subr.bf16.mxu0 0
    %3699 = vmatpush1.bf16.msra.mxu0 0
    %3700 = vmatprep.subr.bf16.mxu0 0
    %3701 = vmatpush1.bf16.msra.mxu0 0
    %3702 = vmatprep.subr.bf16.mxu0 0
    %3703 = vmatpush1.bf16.msra.mxu0 0
    %3704 = vmatprep.subr.bf16.mxu0 0
    %3705 = vmatpush1.bf16.msra.mxu0 0
    %3706 = vmatprep.subr.bf16.mxu0 0
    %3707 = vmatpush1.bf16.msra.mxu0 0
    %3708 = vmatprep.subr.bf16.mxu0 0
    %3709 = vmatpush1.bf16.msra.mxu0 0
    %3710 = vmatprep.subr.bf16.mxu0 0
    %3711 = vmatpush1.bf16.msra.mxu0 0
    %3712 = vmatprep.subr.bf16.mxu0 0
    %3713 = vmatpush1.bf16.msra.mxu0 0
    %3714 = vmatprep.subr.bf16.mxu0 0
    %3715 = vmatpush1.bf16.msra.mxu0 0
    %3716 = vmatprep.subr.bf16.mxu0 0
    %3717 = vmatpush1.bf16.msra.mxu0 0
    %3718 = vmatprep.subr.bf16.mxu0 0
    %3719 = vmatpush1.bf16.msra.mxu0 0
    %3720 = vmatprep.subr.bf16.mxu0 0
    %3721 = vmatpush1.bf16.msra.mxu0 0
    %3722 = vmatprep.subr.bf16.mxu0 0
    %3723 = vmatpush1.bf16.msra.mxu0 0
    %3724 = vmatprep.mubr.bf16.mxu0 0
    %3725 = vmatmul.mubr.bf16.gmra.mrb[0].mxu0 %v3690
    %v3726 = vpop.f32.mrb[0].mxu0
    %v3727 = vadd.f32 %v3676, %v3726
    %v3728 = vpop.f32.mrb[0].mxu0
    %v3729 = vpop.f32.mrb[0].mxu0
    %v3730 = vadd.f32 %v3676, %v3729
    %v3731 = vpop.f32.mrb[0].mxu0
    %3732 = vdwg.mxu0
    %3733 = vst.msk [vmem:[#allocation2] sm:$0xff] %vm151, %v3727
    %3734 = vst.msk [vmem:[#allocation2 + $0x8] sm:$0xff] %vm151, %v3730
    // Predicated region
    $region66: #{decoder_forward.1} parent=1 // pred_check
      _
    $region67: #{decoder_forward.1} parent=1 // pred_check_branch
      %3736 = sbr.rel (0) target = $region69
    $region68: #{decoder_forward.1} parent=1 // pred_region
      %s3738 = ssub.s32 256, 256
      %3739 = vsyncadd [#allocation3], %s3738
      %s3740 = sshll.u32 [#allocation2], 4
      %s3741 = int_to_ptr.vmem [resolvable:$true] %s3740
      %3746 = dma.vmem_to_hbm [thread:$0]  %s3741, 256, %s16, [#allocation3], 128, 128, 8
    $region69: #{decoder_forward.1} parent=1 // pred_fallthru
      _
    // Predicated region
    $region70: #{decoder_forward.1} parent=1 // pred_check
      _
    $region71: #{decoder_forward.1} parent=1 // pred_check_branch
      %3748 = sbr.rel (0) target = $region73
    $region72: #{decoder_forward.1} parent=1 // pred_region
      %3749 = dma.done [#allocation3], 256
    $region73: #{decoder_forward.1} parent=1 // pred_fallthru
      _
    %3750 = vsyncpa [#allocation3], 1

</llo_original>
